<compile_context>
chip_gen: v7x
topology: tpu7x:2x2x1
jax: 0.10.0
libtpu: 0.0.40
codegen_flags: <defaults>
</compile_context>

<pallas_src>
import functools
import numpy as np

import jax
import jax.numpy as jnp
from jax.experimental import pallas as pl
from jax.experimental.pallas import tpu as pltpu

# ---------------- config (small, consistent with the module's forward) ----------------
VOCAB      = 100
TYPE_VOCAB = 2
MAX_POS    = 16
HIDDEN     = 32          # config.hidden_size
HEADS      = 2
HEAD_DIM   = HIDDEN // HEADS
INTER      = 64
LAYERS     = 2
NUM_LABELS = 5           # len(all_labels)
CLS_PAD    = 128         # classifier output padded to a full lane group
LN_EPS     = 1e-12


# ---------------- fused Pallas kernel ----------------
def _layernorm(h, g, b):
    mu  = jnp.mean(h, axis=-1, keepdims=True)
    var = jnp.mean(jnp.square(h - mu), axis=-1, keepdims=True)
    return (h - mu) * jax.lax.rsqrt(var + LN_EPS) * g + b


def _fused_kernel(emb_ref, amask_ref,
                  eg_ref, eb_ref,
                  wqkv_ref, bqkv_ref, wo_ref, bo_ref,
                  w1_ref, b1_ref, w2_ref, b2_ref,
                  ln1g_ref, ln1b_ref, ln2g_ref, ln2b_ref,
                  clsw_ref, clsb_ref,
                  out_ref, *, batch, seq):
    """Whole encoder + classifier in one grid step; everything VMEM/vreg resident."""
    scale = 1.0 / float(np.sqrt(HEAD_DIM))

    x = _layernorm(emb_ref[...], eg_ref[...], eb_ref[...])           # [M, H]
    neg_bias = (1.0 - amask_ref[...]) * (-1e9)                        # [B, S]

    for l in range(LAYERS):                                           # static unroll (2)
        # fused QKV projection: one MXU pass producing a lane-dense [M, 3H] slab
        qkv = jnp.dot(x, wqkv_ref[l], preferred_element_type=jnp.float32) + bqkv_ref[l]
        q = qkv[:, 0 * HIDDEN:1 * HIDDEN]
        k = qkv[:, 1 * HIDDEN:2 * HIDDEN]
        v = qkv[:, 2 * HIDDEN:3 * HIDDEN]

        # attention for every (batch, head) pair inside this same grid step
        ctx_batches = []
        for b in range(batch):
            r0, r1 = b * seq, (b + 1) * seq
            bias_row = neg_bias[b:b + 1, :]                           # [1, S]
            head_outs = []
            for h in range(HEADS):
                c0, c1 = h * HEAD_DIM, (h + 1) * HEAD_DIM
                q_bh = q[r0:r1, c0:c1]                                # [S, D]
                k_bh = k[r0:r1, c0:c1]                                # [S, D]
                v_bh = v[r0:r1, c0:c1]                                # [S, D]
                s = jax.lax.dot_general(
                    q_bh, k_bh, (((1,), (1,)), ((), ())),
                    preferred_element_type=jnp.float32) * scale       # [S, S]
                s = s + bias_row
                s = s - jnp.max(s, axis=-1, keepdims=True)
                p = jnp.exp(s)
                p = p * pl.reciprocal(jnp.sum(p, axis=-1, keepdims=True), approx=True)
                head_outs.append(
                    jnp.dot(p, v_bh, preferred_element_type=jnp.float32))  # [S, D]
            ctx_batches.append(jnp.concatenate(head_outs, axis=-1))   # [S, H]
        ctx = jnp.concatenate(ctx_batches, axis=0)                    # [M, H]

        attn_out = jnp.dot(ctx, wo_ref[l], preferred_element_type=jnp.float32) + bo_ref[l]
        x = _layernorm(attn_out + x, ln1g_ref[l], ln1b_ref[l])

        h1 = jnp.dot(x, w1_ref[l], preferred_element_type=jnp.float32) + b1_ref[l]
        h1 = jax.nn.gelu(h1, approximate=True)
        h2 = jnp.dot(h1, w2_ref[l], preferred_element_type=jnp.float32) + b2_ref[l]
        x = _layernorm(h2 + x, ln2g_ref[l], ln2b_ref[l])

    # classifier head: lane-dense (128-wide) store; columns >= NUM_LABELS are zero.
    out_ref[...] = (jnp.dot(x, clsw_ref[...], preferred_element_type=jnp.float32)
                    + clsb_ref[...]).astype(out_ref.dtype)


def _resident_spec(a):
    """Full-array block (whole tensor resident in VMEM for the single grid step)."""
    zeros = (0,) * a.ndim
    return pl.BlockSpec(a.shape, lambda i, _z=zeros: _z)


def fused_forward_logits(params, input_ids, attention_mask, token_type_ids):
    """Embeddings (tiny XLA gathers) + one fused pallas_call. Returns [B*S, NUM_LABELS]."""
    B, S = input_ids.shape
    M = B * S

    emb = (jnp.take(params["word_emb"], input_ids, axis=0)
           + params["pos_emb"][None, :S, :]
           + jnp.take(params["type_emb"], token_type_ids, axis=0))
    emb = emb.reshape(M, HIDDEN).astype(jnp.float32)
    amask = attention_mask.astype(jnp.float32)

    inputs = (emb, amask,
              params["emb_ln_g"], params["emb_ln_b"],
              params["wqkv"], params["bqkv"],
              params["wo"], params["bo"],
              params["w1"], params["b1"],
              params["w2"], params["b2"],
              params["ln1_g"], params["ln1_b"],
              params["ln2_g"], params["ln2_b"],
              params["cls_w"], params["cls_b"])

    logits_pad = pl.pallas_call(
        functools.partial(_fused_kernel, batch=B, seq=S),
        out_shape=jax.ShapeDtypeStruct((M, CLS_PAD), jnp.float32),
        grid_spec=pltpu.PrefetchScalarGridSpec(
            num_scalar_prefetch=0,
            grid=(1,),                                    # single step: no per-step overhead
            in_specs=[_resident_spec(a) for a in inputs],
            out_specs=pl.BlockSpec((M, CLS_PAD), lambda i: (0, 0)),
        ),
        compiler_params=pltpu.CompilerParams(dimension_semantics=("arbitrary",)),
    )(*inputs)

    return logits_pad[:, :NUM_LABELS]


_fused_forward_logits_jit = jax.jit(fused_forward_logits)


# ---------------- parameters (deterministic init) ----------------
def init_params(key):
    def nrm(k, shape, scale=0.02):
        return scale * jax.random.normal(k, shape, dtype=jnp.float32)

    keys = iter(jax.random.split(key, 16))
    cls_w = nrm(next(keys), (HIDDEN, NUM_LABELS))
    params = {
        "word_emb": nrm(next(keys), (VOCAB, HIDDEN)),
        "pos_emb":  nrm(next(keys), (MAX_POS, HIDDEN)),
        "type_emb": nrm(next(keys), (TYPE_VOCAB, HIDDEN)),
        "emb_ln_g": jnp.ones((1, HIDDEN), jnp.float32),
        "emb_ln_b": jnp.zeros((1, HIDDEN), jnp.float32),
        # per-layer weights stacked on a leading LAYERS axis; QKV fused to [H, 3H]
        "wqkv": nrm(next(keys), (LAYERS, HIDDEN, 3 * HIDDEN)),
        "bqkv": jnp.zeros((LAYERS, 1, 3 * HIDDEN), jnp.float32),
        "wo":   nrm(next(keys), (LAYERS, HIDDEN, HIDDEN)),
        "bo":   jnp.zeros((LAYERS, 1, HIDDEN), jnp.float32),
        "w1":   nrm(next(keys), (LAYERS, HIDDEN, INTER)),
        "b1":   jnp.zeros((LAYERS, 1, INTER), jnp.float32),
        "w2":   nrm(next(keys), (LAYERS, INTER, HIDDEN)),
        "b2":   jnp.zeros((LAYERS, 1, HIDDEN), jnp.float32),
        "ln1_g": jnp.ones((LAYERS, 1, HIDDEN), jnp.float32),
        "ln1_b": jnp.zeros((LAYERS, 1, HIDDEN), jnp.float32),
        "ln2_g": jnp.ones((LAYERS, 1, HIDDEN), jnp.float32),
        "ln2_b": jnp.zeros((LAYERS, 1, HIDDEN), jnp.float32),
        # classifier zero-padded to 128 output lanes (unmasked full-vreg stores)
        "cls_w": jnp.concatenate(
            [cls_w, jnp.zeros((HIDDEN, CLS_PAD - NUM_LABELS), jnp.float32)], axis=1),
        "cls_b": jnp.zeros((1, CLS_PAD), jnp.float32),
    }
    return params


# ---------------- model forward ----------------
def token_classification_forward(params, input_ids, attention_mask, token_type_ids,
                                 candidate_mask):
    """Matches the PyTorch forward with label_ids=None: returns [num_selected, NUM_LABELS]."""
    logits_all = _fused_forward_logits_jit(params, input_ids, attention_mask,
                                           token_type_ids)            # [B*S, NUM_LABELS]
    # torch.masked_select(...).view(-1, H) -> dropout(identity) -> linear is row-wise,
    # so selecting rows of per-token logits is equivalent.  The selection output shape
    # is data dependent, so it runs eagerly on the tiny result (single device->host sync).
    sel = jnp.reshape(candidate_mask, (-1,))
    return logits_all[sel]


# ---------------- main ----------------
if __name__ == "__main__":
    key = jax.random.PRNGKey(0)
    pkey, ikey = jax.random.split(key)
    params = init_params(pkey)

    B, S = 2, 8
    k1, k2, k3 = jax.random.split(ikey, 3)
    input_ids      = jax.random.randint(k1, (B, S), 0, VOCAB, dtype=jnp.int32)
    attention_mask = jnp.ones((B, S), dtype=jnp.int32)
    token_type_ids = jnp.zeros((B, S), dtype=jnp.int32)
    candidate_mask = jax.random.bernoulli(k3, 0.5, (B, S))
    candidate_mask = candidate_mask.at[0, 0].set(True)   # guarantee >=1 selected token

    logits = token_classification_forward(params, input_ids, attention_mask,
                                          token_type_ids, candidate_mask)
    logits = jax.block_until_ready(logits)
    assert logits.ndim == 2 and logits.shape[1] == NUM_LABELS
    assert logits.shape[0] == int(np.asarray(candidate_mask).sum())
    print("KERNEL_OK")
</pallas_src>

<mosaic_0001>
module attributes {stable_mosaic.version = 11 : i64} {
  func.func @_fused_kernel(%arg0: i32, %arg1: memref<16x32xf32, #tpu.memory_space<vmem>>, %arg2: memref<2x8xf32, #tpu.memory_space<vmem>>, %arg3: memref<1x32xf32, #tpu.memory_space<vmem>>, %arg4: memref<1x32xf32, #tpu.memory_space<vmem>>, %arg5: memref<2x32x96xf32, #tpu.memory_space<vmem>>, %arg6: memref<2x1x96xf32, #tpu.memory_space<vmem>>, %arg7: memref<2x32x32xf32, #tpu.memory_space<vmem>>, %arg8: memref<2x1x32xf32, #tpu.memory_space<vmem>>, %arg9: memref<2x32x64xf32, #tpu.memory_space<vmem>>, %arg10: memref<2x1x64xf32, #tpu.memory_space<vmem>>, %arg11: memref<2x64x32xf32, #tpu.memory_space<vmem>>, %arg12: memref<2x1x32xf32, #tpu.memory_space<vmem>>, %arg13: memref<2x1x32xf32, #tpu.memory_space<vmem>>, %arg14: memref<2x1x32xf32, #tpu.memory_space<vmem>>, %arg15: memref<2x1x32xf32, #tpu.memory_space<vmem>>, %arg16: memref<2x1x32xf32, #tpu.memory_space<vmem>>, %arg17: memref<32x128xf32, #tpu.memory_space<vmem>>, %arg18: memref<1x128xf32, #tpu.memory_space<vmem>>, %arg19: memref<16x128xf32, #tpu.memory_space<vmem>>) attributes {dimension_semantics = [#tpu.dimension_semantics<arbitrary>], iteration_bounds = array<i64: 1>, scalar_prefetch = 0 : i64, scratch_operands = 0 : i64, tpu.core_type = #tpu.core_type<tc>, window_params = [{pipeline_mode = #tpu.pipeline_mode<synchronous>, transform_indices = @transform_0, window_bounds = array<i64: 16, 32>}, {pipeline_mode = #tpu.pipeline_mode<synchronous>, transform_indices = @transform_1, window_bounds = array<i64: 2, 8>}, {pipeline_mode = #tpu.pipeline_mode<synchronous>, transform_indices = @transform_2, window_bounds = array<i64: 1, 32>}, {pipeline_mode = #tpu.pipeline_mode<synchronous>, transform_indices = @transform_3, window_bounds = array<i64: 1, 32>}, {pipeline_mode = #tpu.pipeline_mode<synchronous>, transform_indices = @transform_4, window_bounds = array<i64: 2, 32, 96>}, {pipeline_mode = #tpu.pipeline_mode<synchronous>, transform_indices = @transform_5, window_bounds = array<i64: 2, 1, 96>}, {pipeline_mode = #tpu.pipeline_mode<synchronous>, transform_indices = @transform_6, window_bounds = array<i64: 2, 32, 32>}, {pipeline_mode = #tpu.pipeline_mode<synchronous>, transform_indices = @transform_7, window_bounds = array<i64: 2, 1, 32>}, {pipeline_mode = #tpu.pipeline_mode<synchronous>, transform_indices = @transform_8, window_bounds = array<i64: 2, 32, 64>}, {pipeline_mode = #tpu.pipeline_mode<synchronous>, transform_indices = @transform_9, window_bounds = array<i64: 2, 1, 64>}, {pipeline_mode = #tpu.pipeline_mode<synchronous>, transform_indices = @transform_10, window_bounds = array<i64: 2, 64, 32>}, {pipeline_mode = #tpu.pipeline_mode<synchronous>, transform_indices = @transform_11, window_bounds = array<i64: 2, 1, 32>}, {pipeline_mode = #tpu.pipeline_mode<synchronous>, transform_indices = @transform_12, window_bounds = array<i64: 2, 1, 32>}, {pipeline_mode = #tpu.pipeline_mode<synchronous>, transform_indices = @transform_13, window_bounds = array<i64: 2, 1, 32>}, {pipeline_mode = #tpu.pipeline_mode<synchronous>, transform_indices = @transform_14, window_bounds = array<i64: 2, 1, 32>}, {pipeline_mode = #tpu.pipeline_mode<synchronous>, transform_indices = @transform_15, window_bounds = array<i64: 2, 1, 32>}, {pipeline_mode = #tpu.pipeline_mode<synchronous>, transform_indices = @transform_16, window_bounds = array<i64: 32, 128>}, {pipeline_mode = #tpu.pipeline_mode<synchronous>, transform_indices = @transform_17, window_bounds = array<i64: 1, 128>}, {pipeline_mode = #tpu.pipeline_mode<synchronous>, transform_indices = @transform_18, window_bounds = array<i64: 16, 128>}]} {
    %c0 = arith.constant 0 : index
    %c0_0 = arith.constant 0 : index
    %0 = vector.load %arg1[%c0, %c0_0] : memref<16x32xf32, #tpu.memory_space<vmem>>, vector<16x32xf32>
    %c0_1 = arith.constant 0 : index
    %c0_2 = arith.constant 0 : index
    %1 = vector.load %arg3[%c0_1, %c0_2] : memref<1x32xf32, #tpu.memory_space<vmem>>, vector<1x32xf32>
    %c0_3 = arith.constant 0 : index
    %c0_4 = arith.constant 0 : index
    %2 = vector.load %arg4[%c0_3, %c0_4] : memref<1x32xf32, #tpu.memory_space<vmem>>, vector<1x32xf32>
    %cst = arith.constant dense<0.000000e+00> : vector<16xf32>
    %3 = vector.multi_reduction <add>, %0, %cst [1] : vector<16x32xf32> to vector<16xf32>
    %4 = vector.shape_cast %3 : vector<16xf32> to vector<16x1xf32>
    %cst_5 = arith.constant 3.200000e+01 : f32
    %5 = vector.broadcast %cst_5 : f32 to vector<16x1xf32>
    %6 = arith.divf %4, %5 : vector<16x1xf32>
    %7 = vector.broadcast %6 : vector<16x1xf32> to vector<16x32xf32>
    %8 = arith.subf %0, %7 : vector<16x32xf32>
    %9 = arith.mulf %8, %8 : vector<16x32xf32>
    %cst_6 = arith.constant dense<0.000000e+00> : vector<16xf32>
    %10 = vector.multi_reduction <add>, %9, %cst_6 [1] : vector<16x32xf32> to vector<16xf32>
    %11 = vector.shape_cast %10 : vector<16xf32> to vector<16x1xf32>
    %cst_7 = arith.constant 3.200000e+01 : f32
    %12 = vector.broadcast %cst_7 : f32 to vector<16x1xf32>
    %13 = arith.divf %11, %12 : vector<16x1xf32>
    %14 = vector.broadcast %6 : vector<16x1xf32> to vector<16x32xf32>
    %15 = arith.subf %0, %14 : vector<16x32xf32>
    %cst_8 = arith.constant 9.99999996E-13 : f32
    %16 = vector.broadcast %cst_8 : f32 to vector<16x1xf32>
    %17 = arith.addf %13, %16 : vector<16x1xf32>
    %18 = math.rsqrt %17 : vector<16x1xf32>
    %19 = vector.broadcast %18 : vector<16x1xf32> to vector<16x32xf32>
    %20 = arith.mulf %15, %19 : vector<16x32xf32>
    %21 = vector.broadcast %1 : vector<1x32xf32> to vector<16x32xf32>
    %22 = arith.mulf %20, %21 : vector<16x32xf32>
    %23 = vector.broadcast %2 : vector<1x32xf32> to vector<16x32xf32>
    %24 = arith.addf %22, %23 : vector<16x32xf32>
    %c0_9 = arith.constant 0 : index
    %c0_10 = arith.constant 0 : index
    %25 = vector.load %arg2[%c0_9, %c0_10] : memref<2x8xf32, #tpu.memory_space<vmem>>, vector<2x8xf32>
    %cst_11 = arith.constant 1.000000e+00 : f32
    %26 = vector.broadcast %cst_11 : f32 to vector<2x8xf32>
    %27 = arith.subf %26, %25 : vector<2x8xf32>
    %cst_12 = arith.constant -1.000000e+09 : f32
    %28 = vector.broadcast %cst_12 : f32 to vector<2x8xf32>
    %29 = arith.mulf %27, %28 : vector<2x8xf32>
    %c0_13 = arith.constant 0 : index
    %c0_14 = arith.constant 0 : index
    %c0_15 = arith.constant 0 : index
    %30 = vector.load %arg5[%c0_13, %c0_14, %c0_15] : memref<2x32x96xf32, #tpu.memory_space<vmem>>, vector<1x32x96xf32>
    %31 = vector.shape_cast %30 : vector<1x32x96xf32> to vector<32x96xf32>
    %cst_16 = arith.constant dense<0.000000e+00> : vector<16x96xf32>
    %32 = tpu.matmul %24, %31, %cst_16 {dimension_numbers = #tpu.dot_dimension_numbers<[1], [0], [0], [1], [0, 0, 1, 1], [], []>} : vector<16x32xf32>, vector<32x96xf32>, vector<16x96xf32> -> vector<16x96xf32>
    %c0_17 = arith.constant 0 : index
    %c0_18 = arith.constant 0 : index
    %c0_19 = arith.constant 0 : index
    %33 = vector.load %arg6[%c0_17, %c0_18, %c0_19] : memref<2x1x96xf32, #tpu.memory_space<vmem>>, vector<1x1x96xf32>
    %34 = vector.shape_cast %33 : vector<1x1x96xf32> to vector<1x96xf32>
    %35 = vector.broadcast %34 : vector<1x96xf32> to vector<16x96xf32>
    %36 = arith.addf %32, %35 : vector<16x96xf32>
    %37 = vector.extract_strided_slice %36 {offsets = [0, 0], sizes = [16, 32], strides = [1, 1]} : vector<16x96xf32> to vector<16x32xf32>
    %38 = vector.extract_strided_slice %36 {offsets = [0, 32], sizes = [16, 32], strides = [1, 1]} : vector<16x96xf32> to vector<16x32xf32>
    %39 = vector.extract_strided_slice %36 {offsets = [0, 64], sizes = [16, 32], strides = [1, 1]} : vector<16x96xf32> to vector<16x32xf32>
    %40 = vector.extract_strided_slice %29 {offsets = [0, 0], sizes = [1, 8], strides = [1, 1]} : vector<2x8xf32> to vector<1x8xf32>
    %41 = vector.extract_strided_slice %37 {offsets = [0, 0], sizes = [8, 16], strides = [1, 1]} : vector<16x32xf32> to vector<8x16xf32>
    %42 = vector.extract_strided_slice %38 {offsets = [0, 0], sizes = [8, 16], strides = [1, 1]} : vector<16x32xf32> to vector<8x16xf32>
    %43 = vector.extract_strided_slice %39 {offsets = [0, 0], sizes = [8, 16], strides = [1, 1]} : vector<16x32xf32> to vector<8x16xf32>
    %cst_20 = arith.constant dense<0.000000e+00> : vector<8x8xf32>
    %44 = tpu.matmul %41, %42, %cst_20 {dimension_numbers = #tpu.dot_dimension_numbers<[1], [1], [0], [0], [0, 0, 1, 0], [], []>} : vector<8x16xf32>, vector<8x16xf32>, vector<8x8xf32> -> vector<8x8xf32>
    %cst_21 = arith.constant 2.500000e-01 : f32
    %45 = vector.broadcast %cst_21 : f32 to vector<8x8xf32>
    %46 = arith.mulf %44, %45 : vector<8x8xf32>
    %47 = vector.broadcast %40 : vector<1x8xf32> to vector<8x8xf32>
    %48 = arith.addf %46, %47 : vector<8x8xf32>
    %cst_22 = arith.constant dense<0xFF800000> : vector<8xf32>
    %49 = vector.multi_reduction <maximumf>, %48, %cst_22 [1] : vector<8x8xf32> to vector<8xf32>
    %50 = vector.shape_cast %49 : vector<8xf32> to vector<8x1xf32>
    %51 = vector.broadcast %50 : vector<8x1xf32> to vector<8x8xf32>
    %52 = arith.subf %48, %51 : vector<8x8xf32>
    %53 = math.exp %52 : vector<8x8xf32>
    %cst_23 = arith.constant dense<0.000000e+00> : vector<8xf32>
    %54 = vector.multi_reduction <add>, %53, %cst_23 [1] : vector<8x8xf32> to vector<8xf32>
    %55 = vector.shape_cast %54 : vector<8xf32> to vector<8x1xf32>
    %56 = tpu.reciprocal %55 {approx = true} : vector<8x1xf32> -> vector<8x1xf32>
    %57 = vector.broadcast %56 : vector<8x1xf32> to vector<8x8xf32>
    %58 = arith.mulf %53, %57 : vector<8x8xf32>
    %cst_24 = arith.constant dense<0.000000e+00> : vector<8x16xf32>
    %59 = tpu.matmul %58, %43, %cst_24 {dimension_numbers = #tpu.dot_dimension_numbers<[1], [0], [0], [1], [0, 0, 1, 1], [], []>} : vector<8x8xf32>, vector<8x16xf32>, vector<8x16xf32> -> vector<8x16xf32>
    %60 = vector.extract_strided_slice %37 {offsets = [0, 16], sizes = [8, 16], strides = [1, 1]} : vector<16x32xf32> to vector<8x16xf32>
    %61 = vector.extract_strided_slice %38 {offsets = [0, 16], sizes = [8, 16], strides = [1, 1]} : vector<16x32xf32> to vector<8x16xf32>
    %62 = vector.extract_strided_slice %39 {offsets = [0, 16], sizes = [8, 16], strides = [1, 1]} : vector<16x32xf32> to vector<8x16xf32>
    %cst_25 = arith.constant dense<0.000000e+00> : vector<8x8xf32>
    %63 = tpu.matmul %60, %61, %cst_25 {dimension_numbers = #tpu.dot_dimension_numbers<[1], [1], [0], [0], [0, 0, 1, 0], [], []>} : vector<8x16xf32>, vector<8x16xf32>, vector<8x8xf32> -> vector<8x8xf32>
    %cst_26 = arith.constant 2.500000e-01 : f32
    %64 = vector.broadcast %cst_26 : f32 to vector<8x8xf32>
    %65 = arith.mulf %63, %64 : vector<8x8xf32>
    %66 = vector.broadcast %40 : vector<1x8xf32> to vector<8x8xf32>
    %67 = arith.addf %65, %66 : vector<8x8xf32>
    %cst_27 = arith.constant dense<0xFF800000> : vector<8xf32>
    %68 = vector.multi_reduction <maximumf>, %67, %cst_27 [1] : vector<8x8xf32> to vector<8xf32>
    %69 = vector.shape_cast %68 : vector<8xf32> to vector<8x1xf32>
    %70 = vector.broadcast %69 : vector<8x1xf32> to vector<8x8xf32>
    %71 = arith.subf %67, %70 : vector<8x8xf32>
    %72 = math.exp %71 : vector<8x8xf32>
    %cst_28 = arith.constant dense<0.000000e+00> : vector<8xf32>
    %73 = vector.multi_reduction <add>, %72, %cst_28 [1] : vector<8x8xf32> to vector<8xf32>
    %74 = vector.shape_cast %73 : vector<8xf32> to vector<8x1xf32>
    %75 = tpu.reciprocal %74 {approx = true} : vector<8x1xf32> -> vector<8x1xf32>
    %76 = vector.broadcast %75 : vector<8x1xf32> to vector<8x8xf32>
    %77 = arith.mulf %72, %76 : vector<8x8xf32>
    %cst_29 = arith.constant dense<0.000000e+00> : vector<8x16xf32>
    %78 = tpu.matmul %77, %62, %cst_29 {dimension_numbers = #tpu.dot_dimension_numbers<[1], [0], [0], [1], [0, 0, 1, 1], [], []>} : vector<8x8xf32>, vector<8x16xf32>, vector<8x16xf32> -> vector<8x16xf32>
    %79 = tpu.concatenate %59, %78 in 1 : vector<8x16xf32>, vector<8x16xf32> -> vector<8x32xf32>
    %80 = vector.extract_strided_slice %29 {offsets = [1, 0], sizes = [1, 8], strides = [1, 1]} : vector<2x8xf32> to vector<1x8xf32>
    %81 = vector.extract_strided_slice %37 {offsets = [8, 0], sizes = [8, 16], strides = [1, 1]} : vector<16x32xf32> to vector<8x16xf32>
    %82 = vector.extract_strided_slice %38 {offsets = [8, 0], sizes = [8, 16], strides = [1, 1]} : vector<16x32xf32> to vector<8x16xf32>
    %83 = vector.extract_strided_slice %39 {offsets = [8, 0], sizes = [8, 16], strides = [1, 1]} : vector<16x32xf32> to vector<8x16xf32>
    %cst_30 = arith.constant dense<0.000000e+00> : vector<8x8xf32>
    %84 = tpu.matmul %81, %82, %cst_30 {dimension_numbers = #tpu.dot_dimension_numbers<[1], [1], [0], [0], [0, 0, 1, 0], [], []>} : vector<8x16xf32>, vector<8x16xf32>, vector<8x8xf32> -> vector<8x8xf32>
    %cst_31 = arith.constant 2.500000e-01 : f32
    %85 = vector.broadcast %cst_31 : f32 to vector<8x8xf32>
    %86 = arith.mulf %84, %85 : vector<8x8xf32>
    %87 = vector.broadcast %80 : vector<1x8xf32> to vector<8x8xf32>
    %88 = arith.addf %86, %87 : vector<8x8xf32>
    %cst_32 = arith.constant dense<0xFF800000> : vector<8xf32>
    %89 = vector.multi_reduction <maximumf>, %88, %cst_32 [1] : vector<8x8xf32> to vector<8xf32>
    %90 = vector.shape_cast %89 : vector<8xf32> to vector<8x1xf32>
    %91 = vector.broadcast %90 : vector<8x1xf32> to vector<8x8xf32>
    %92 = arith.subf %88, %91 : vector<8x8xf32>
    %93 = math.exp %92 : vector<8x8xf32>
    %cst_33 = arith.constant dense<0.000000e+00> : vector<8xf32>
    %94 = vector.multi_reduction <add>, %93, %cst_33 [1] : vector<8x8xf32> to vector<8xf32>
    %95 = vector.shape_cast %94 : vector<8xf32> to vector<8x1xf32>
    %96 = tpu.reciprocal %95 {approx = true} : vector<8x1xf32> -> vector<8x1xf32>
    %97 = vector.broadcast %96 : vector<8x1xf32> to vector<8x8xf32>
    %98 = arith.mulf %93, %97 : vector<8x8xf32>
    %cst_34 = arith.constant dense<0.000000e+00> : vector<8x16xf32>
    %99 = tpu.matmul %98, %83, %cst_34 {dimension_numbers = #tpu.dot_dimension_numbers<[1], [0], [0], [1], [0, 0, 1, 1], [], []>} : vector<8x8xf32>, vector<8x16xf32>, vector<8x16xf32> -> vector<8x16xf32>
    %100 = vector.extract_strided_slice %37 {offsets = [8, 16], sizes = [8, 16], strides = [1, 1]} : vector<16x32xf32> to vector<8x16xf32>
    %101 = vector.extract_strided_slice %38 {offsets = [8, 16], sizes = [8, 16], strides = [1, 1]} : vector<16x32xf32> to vector<8x16xf32>
    %102 = vector.extract_strided_slice %39 {offsets = [8, 16], sizes = [8, 16], strides = [1, 1]} : vector<16x32xf32> to vector<8x16xf32>
    %cst_35 = arith.constant dense<0.000000e+00> : vector<8x8xf32>
    %103 = tpu.matmul %100, %101, %cst_35 {dimension_numbers = #tpu.dot_dimension_numbers<[1], [1], [0], [0], [0, 0, 1, 0], [], []>} : vector<8x16xf32>, vector<8x16xf32>, vector<8x8xf32> -> vector<8x8xf32>
    %cst_36 = arith.constant 2.500000e-01 : f32
    %104 = vector.broadcast %cst_36 : f32 to vector<8x8xf32>
    %105 = arith.mulf %103, %104 : vector<8x8xf32>
    %106 = vector.broadcast %80 : vector<1x8xf32> to vector<8x8xf32>
    %107 = arith.addf %105, %106 : vector<8x8xf32>
    %cst_37 = arith.constant dense<0xFF800000> : vector<8xf32>
    %108 = vector.multi_reduction <maximumf>, %107, %cst_37 [1] : vector<8x8xf32> to vector<8xf32>
    %109 = vector.shape_cast %108 : vector<8xf32> to vector<8x1xf32>
    %110 = vector.broadcast %109 : vector<8x1xf32> to vector<8x8xf32>
    %111 = arith.subf %107, %110 : vector<8x8xf32>
    %112 = math.exp %111 : vector<8x8xf32>
    %cst_38 = arith.constant dense<0.000000e+00> : vector<8xf32>
    %113 = vector.multi_reduction <add>, %112, %cst_38 [1] : vector<8x8xf32> to vector<8xf32>
    %114 = vector.shape_cast %113 : vector<8xf32> to vector<8x1xf32>
    %115 = tpu.reciprocal %114 {approx = true} : vector<8x1xf32> -> vector<8x1xf32>
    %116 = vector.broadcast %115 : vector<8x1xf32> to vector<8x8xf32>
    %117 = arith.mulf %112, %116 : vector<8x8xf32>
    %cst_39 = arith.constant dense<0.000000e+00> : vector<8x16xf32>
    %118 = tpu.matmul %117, %102, %cst_39 {dimension_numbers = #tpu.dot_dimension_numbers<[1], [0], [0], [1], [0, 0, 1, 1], [], []>} : vector<8x8xf32>, vector<8x16xf32>, vector<8x16xf32> -> vector<8x16xf32>
    %119 = tpu.concatenate %99, %118 in 1 : vector<8x16xf32>, vector<8x16xf32> -> vector<8x32xf32>
    %120 = tpu.concatenate %79, %119 in 0 : vector<8x32xf32>, vector<8x32xf32> -> vector<16x32xf32>
    %c0_40 = arith.constant 0 : index
    %c0_41 = arith.constant 0 : index
    %c0_42 = arith.constant 0 : index
    %121 = vector.load %arg7[%c0_40, %c0_41, %c0_42] : memref<2x32x32xf32, #tpu.memory_space<vmem>>, vector<1x32x32xf32>
    %122 = vector.shape_cast %121 : vector<1x32x32xf32> to vector<32x32xf32>
    %cst_43 = arith.constant dense<0.000000e+00> : vector<16x32xf32>
    %123 = tpu.matmul %120, %122, %cst_43 {dimension_numbers = #tpu.dot_dimension_numbers<[1], [0], [0], [1], [0, 0, 1, 1], [], []>} : vector<16x32xf32>, vector<32x32xf32>, vector<16x32xf32> -> vector<16x32xf32>
    %c0_44 = arith.constant 0 : index
    %c0_45 = arith.constant 0 : index
    %c0_46 = arith.constant 0 : index
    %124 = vector.load %arg8[%c0_44, %c0_45, %c0_46] : memref<2x1x32xf32, #tpu.memory_space<vmem>>, vector<1x1x32xf32>
    %125 = vector.shape_cast %124 : vector<1x1x32xf32> to vector<1x32xf32>
    %126 = vector.broadcast %125 : vector<1x32xf32> to vector<16x32xf32>
    %127 = arith.addf %123, %126 : vector<16x32xf32>
    %128 = arith.addf %127, %24 : vector<16x32xf32>
    %c0_47 = arith.constant 0 : index
    %c0_48 = arith.constant 0 : index
    %c0_49 = arith.constant 0 : index
    %129 = vector.load %arg13[%c0_47, %c0_48, %c0_49] : memref<2x1x32xf32, #tpu.memory_space<vmem>>, vector<1x1x32xf32>
    %130 = vector.shape_cast %129 : vector<1x1x32xf32> to vector<1x32xf32>
    %c0_50 = arith.constant 0 : index
    %c0_51 = arith.constant 0 : index
    %c0_52 = arith.constant 0 : index
    %131 = vector.load %arg14[%c0_50, %c0_51, %c0_52] : memref<2x1x32xf32, #tpu.memory_space<vmem>>, vector<1x1x32xf32>
    %132 = vector.shape_cast %131 : vector<1x1x32xf32> to vector<1x32xf32>
    %cst_53 = arith.constant dense<0.000000e+00> : vector<16xf32>
    %133 = vector.multi_reduction <add>, %128, %cst_53 [1] : vector<16x32xf32> to vector<16xf32>
    %134 = vector.shape_cast %133 : vector<16xf32> to vector<16x1xf32>
    %cst_54 = arith.constant 3.200000e+01 : f32
    %135 = vector.broadcast %cst_54 : f32 to vector<16x1xf32>
    %136 = arith.divf %134, %135 : vector<16x1xf32>
    %137 = vector.broadcast %136 : vector<16x1xf32> to vector<16x32xf32>
    %138 = arith.subf %128, %137 : vector<16x32xf32>
    %139 = arith.mulf %138, %138 : vector<16x32xf32>
    %cst_55 = arith.constant dense<0.000000e+00> : vector<16xf32>
    %140 = vector.multi_reduction <add>, %139, %cst_55 [1] : vector<16x32xf32> to vector<16xf32>
    %141 = vector.shape_cast %140 : vector<16xf32> to vector<16x1xf32>
    %cst_56 = arith.constant 3.200000e+01 : f32
    %142 = vector.broadcast %cst_56 : f32 to vector<16x1xf32>
    %143 = arith.divf %141, %142 : vector<16x1xf32>
    %144 = vector.broadcast %136 : vector<16x1xf32> to vector<16x32xf32>
    %145 = arith.subf %128, %144 : vector<16x32xf32>
    %cst_57 = arith.constant 9.99999996E-13 : f32
    %146 = vector.broadcast %cst_57 : f32 to vector<16x1xf32>
    %147 = arith.addf %143, %146 : vector<16x1xf32>
    %148 = math.rsqrt %147 : vector<16x1xf32>
    %149 = vector.broadcast %148 : vector<16x1xf32> to vector<16x32xf32>
    %150 = arith.mulf %145, %149 : vector<16x32xf32>
    %151 = vector.broadcast %130 : vector<1x32xf32> to vector<16x32xf32>
    %152 = arith.mulf %150, %151 : vector<16x32xf32>
    %153 = vector.broadcast %132 : vector<1x32xf32> to vector<16x32xf32>
    %154 = arith.addf %152, %153 : vector<16x32xf32>
    %c0_58 = arith.constant 0 : index
    %c0_59 = arith.constant 0 : index
    %c0_60 = arith.constant 0 : index
    %155 = vector.load %arg9[%c0_58, %c0_59, %c0_60] : memref<2x32x64xf32, #tpu.memory_space<vmem>>, vector<1x32x64xf32>
    %156 = vector.shape_cast %155 : vector<1x32x64xf32> to vector<32x64xf32>
    %cst_61 = arith.constant dense<0.000000e+00> : vector<16x64xf32>
    %157 = tpu.matmul %154, %156, %cst_61 {dimension_numbers = #tpu.dot_dimension_numbers<[1], [0], [0], [1], [0, 0, 1, 1], [], []>} : vector<16x32xf32>, vector<32x64xf32>, vector<16x64xf32> -> vector<16x64xf32>
    %c0_62 = arith.constant 0 : index
    %c0_63 = arith.constant 0 : index
    %c0_64 = arith.constant 0 : index
    %158 = vector.load %arg10[%c0_62, %c0_63, %c0_64] : memref<2x1x64xf32, #tpu.memory_space<vmem>>, vector<1x1x64xf32>
    %159 = vector.shape_cast %158 : vector<1x1x64xf32> to vector<1x64xf32>
    %160 = vector.broadcast %159 : vector<1x64xf32> to vector<16x64xf32>
    %161 = arith.addf %157, %160 : vector<16x64xf32>
    %162 = arith.mulf %161, %161 : vector<16x64xf32>
    %163 = arith.mulf %161, %162 : vector<16x64xf32>
    %cst_65 = arith.constant 4.471500e-02 : f32
    %164 = vector.broadcast %cst_65 : f32 to vector<16x64xf32>
    %165 = arith.mulf %164, %163 : vector<16x64xf32>
    %166 = arith.addf %161, %165 : vector<16x64xf32>
    %cst_66 = arith.constant 0.797884583 : f32
    %167 = vector.broadcast %cst_66 : f32 to vector<16x64xf32>
    %168 = arith.mulf %167, %166 : vector<16x64xf32>
    %169 = math.tanh %168 : vector<16x64xf32>
    %cst_67 = arith.constant 1.000000e+00 : f32
    %170 = vector.broadcast %cst_67 : f32 to vector<16x64xf32>
    %171 = arith.addf %170, %169 : vector<16x64xf32>
    %cst_68 = arith.constant 5.000000e-01 : f32
    %172 = vector.broadcast %cst_68 : f32 to vector<16x64xf32>
    %173 = arith.mulf %172, %171 : vector<16x64xf32>
    %174 = arith.mulf %161, %173 : vector<16x64xf32>
    %c0_69 = arith.constant 0 : index
    %c0_70 = arith.constant 0 : index
    %c0_71 = arith.constant 0 : index
    %175 = vector.load %arg11[%c0_69, %c0_70, %c0_71] : memref<2x64x32xf32, #tpu.memory_space<vmem>>, vector<1x64x32xf32>
    %176 = vector.shape_cast %175 : vector<1x64x32xf32> to vector<64x32xf32>
    %cst_72 = arith.constant dense<0.000000e+00> : vector<16x32xf32>
    %177 = tpu.matmul %174, %176, %cst_72 {dimension_numbers = #tpu.dot_dimension_numbers<[1], [0], [0], [1], [0, 0, 1, 1], [], []>} : vector<16x64xf32>, vector<64x32xf32>, vector<16x32xf32> -> vector<16x32xf32>
    %c0_73 = arith.constant 0 : index
    %c0_74 = arith.constant 0 : index
    %c0_75 = arith.constant 0 : index
    %178 = vector.load %arg12[%c0_73, %c0_74, %c0_75] : memref<2x1x32xf32, #tpu.memory_space<vmem>>, vector<1x1x32xf32>
    %179 = vector.shape_cast %178 : vector<1x1x32xf32> to vector<1x32xf32>
    %180 = vector.broadcast %179 : vector<1x32xf32> to vector<16x32xf32>
    %181 = arith.addf %177, %180 : vector<16x32xf32>
    %182 = arith.addf %181, %154 : vector<16x32xf32>
    %c0_76 = arith.constant 0 : index
    %c0_77 = arith.constant 0 : index
    %c0_78 = arith.constant 0 : index
    %183 = vector.load %arg15[%c0_76, %c0_77, %c0_78] : memref<2x1x32xf32, #tpu.memory_space<vmem>>, vector<1x1x32xf32>
    %184 = vector.shape_cast %183 : vector<1x1x32xf32> to vector<1x32xf32>
    %c0_79 = arith.constant 0 : index
    %c0_80 = arith.constant 0 : index
    %c0_81 = arith.constant 0 : index
    %185 = vector.load %arg16[%c0_79, %c0_80, %c0_81] : memref<2x1x32xf32, #tpu.memory_space<vmem>>, vector<1x1x32xf32>
    %186 = vector.shape_cast %185 : vector<1x1x32xf32> to vector<1x32xf32>
    %cst_82 = arith.constant dense<0.000000e+00> : vector<16xf32>
    %187 = vector.multi_reduction <add>, %182, %cst_82 [1] : vector<16x32xf32> to vector<16xf32>
    %188 = vector.shape_cast %187 : vector<16xf32> to vector<16x1xf32>
    %cst_83 = arith.constant 3.200000e+01 : f32
    %189 = vector.broadcast %cst_83 : f32 to vector<16x1xf32>
    %190 = arith.divf %188, %189 : vector<16x1xf32>
    %191 = vector.broadcast %190 : vector<16x1xf32> to vector<16x32xf32>
    %192 = arith.subf %182, %191 : vector<16x32xf32>
    %193 = arith.mulf %192, %192 : vector<16x32xf32>
    %cst_84 = arith.constant dense<0.000000e+00> : vector<16xf32>
    %194 = vector.multi_reduction <add>, %193, %cst_84 [1] : vector<16x32xf32> to vector<16xf32>
    %195 = vector.shape_cast %194 : vector<16xf32> to vector<16x1xf32>
    %cst_85 = arith.constant 3.200000e+01 : f32
    %196 = vector.broadcast %cst_85 : f32 to vector<16x1xf32>
    %197 = arith.divf %195, %196 : vector<16x1xf32>
    %198 = vector.broadcast %190 : vector<16x1xf32> to vector<16x32xf32>
    %199 = arith.subf %182, %198 : vector<16x32xf32>
    %cst_86 = arith.constant 9.99999996E-13 : f32
    %200 = vector.broadcast %cst_86 : f32 to vector<16x1xf32>
    %201 = arith.addf %197, %200 : vector<16x1xf32>
    %202 = math.rsqrt %201 : vector<16x1xf32>
    %203 = vector.broadcast %202 : vector<16x1xf32> to vector<16x32xf32>
    %204 = arith.mulf %199, %203 : vector<16x32xf32>
    %205 = vector.broadcast %184 : vector<1x32xf32> to vector<16x32xf32>
    %206 = arith.mulf %204, %205 : vector<16x32xf32>
    %207 = vector.broadcast %186 : vector<1x32xf32> to vector<16x32xf32>
    %208 = arith.addf %206, %207 : vector<16x32xf32>
    %c1 = arith.constant 1 : index
    %c0_87 = arith.constant 0 : index
    %c0_88 = arith.constant 0 : index
    %209 = vector.load %arg5[%c1, %c0_87, %c0_88] : memref<2x32x96xf32, #tpu.memory_space<vmem>>, vector<1x32x96xf32>
    %210 = vector.shape_cast %209 : vector<1x32x96xf32> to vector<32x96xf32>
    %cst_89 = arith.constant dense<0.000000e+00> : vector<16x96xf32>
    %211 = tpu.matmul %208, %210, %cst_89 {dimension_numbers = #tpu.dot_dimension_numbers<[1], [0], [0], [1], [0, 0, 1, 1], [], []>} : vector<16x32xf32>, vector<32x96xf32>, vector<16x96xf32> -> vector<16x96xf32>
    %c1_90 = arith.constant 1 : index
    %c0_91 = arith.constant 0 : index
    %c0_92 = arith.constant 0 : index
    %212 = vector.load %arg6[%c1_90, %c0_91, %c0_92] : memref<2x1x96xf32, #tpu.memory_space<vmem>>, vector<1x1x96xf32>
    %213 = vector.shape_cast %212 : vector<1x1x96xf32> to vector<1x96xf32>
    %214 = vector.broadcast %213 : vector<1x96xf32> to vector<16x96xf32>
    %215 = arith.addf %211, %214 : vector<16x96xf32>
    %216 = vector.extract_strided_slice %215 {offsets = [0, 0], sizes = [16, 32], strides = [1, 1]} : vector<16x96xf32> to vector<16x32xf32>
    %217 = vector.extract_strided_slice %215 {offsets = [0, 32], sizes = [16, 32], strides = [1, 1]} : vector<16x96xf32> to vector<16x32xf32>
    %218 = vector.extract_strided_slice %215 {offsets = [0, 64], sizes = [16, 32], strides = [1, 1]} : vector<16x96xf32> to vector<16x32xf32>
    %219 = vector.extract_strided_slice %29 {offsets = [0, 0], sizes = [1, 8], strides = [1, 1]} : vector<2x8xf32> to vector<1x8xf32>
    %220 = vector.extract_strided_slice %216 {offsets = [0, 0], sizes = [8, 16], strides = [1, 1]} : vector<16x32xf32> to vector<8x16xf32>
    %221 = vector.extract_strided_slice %217 {offsets = [0, 0], sizes = [8, 16], strides = [1, 1]} : vector<16x32xf32> to vector<8x16xf32>
    %222 = vector.extract_strided_slice %218 {offsets = [0, 0], sizes = [8, 16], strides = [1, 1]} : vector<16x32xf32> to vector<8x16xf32>
    %cst_93 = arith.constant dense<0.000000e+00> : vector<8x8xf32>
    %223 = tpu.matmul %220, %221, %cst_93 {dimension_numbers = #tpu.dot_dimension_numbers<[1], [1], [0], [0], [0, 0, 1, 0], [], []>} : vector<8x16xf32>, vector<8x16xf32>, vector<8x8xf32> -> vector<8x8xf32>
    %cst_94 = arith.constant 2.500000e-01 : f32
    %224 = vector.broadcast %cst_94 : f32 to vector<8x8xf32>
    %225 = arith.mulf %223, %224 : vector<8x8xf32>
    %226 = vector.broadcast %219 : vector<1x8xf32> to vector<8x8xf32>
    %227 = arith.addf %225, %226 : vector<8x8xf32>
    %cst_95 = arith.constant dense<0xFF800000> : vector<8xf32>
    %228 = vector.multi_reduction <maximumf>, %227, %cst_95 [1] : vector<8x8xf32> to vector<8xf32>
    %229 = vector.shape_cast %228 : vector<8xf32> to vector<8x1xf32>
    %230 = vector.broadcast %229 : vector<8x1xf32> to vector<8x8xf32>
    %231 = arith.subf %227, %230 : vector<8x8xf32>
    %232 = math.exp %231 : vector<8x8xf32>
    %cst_96 = arith.constant dense<0.000000e+00> : vector<8xf32>
    %233 = vector.multi_reduction <add>, %232, %cst_96 [1] : vector<8x8xf32> to vector<8xf32>
    %234 = vector.shape_cast %233 : vector<8xf32> to vector<8x1xf32>
    %235 = tpu.reciprocal %234 {approx = true} : vector<8x1xf32> -> vector<8x1xf32>
    %236 = vector.broadcast %235 : vector<8x1xf32> to vector<8x8xf32>
    %237 = arith.mulf %232, %236 : vector<8x8xf32>
    %cst_97 = arith.constant dense<0.000000e+00> : vector<8x16xf32>
    %238 = tpu.matmul %237, %222, %cst_97 {dimension_numbers = #tpu.dot_dimension_numbers<[1], [0], [0], [1], [0, 0, 1, 1], [], []>} : vector<8x8xf32>, vector<8x16xf32>, vector<8x16xf32> -> vector<8x16xf32>
    %239 = vector.extract_strided_slice %216 {offsets = [0, 16], sizes = [8, 16], strides = [1, 1]} : vector<16x32xf32> to vector<8x16xf32>
    %240 = vector.extract_strided_slice %217 {offsets = [0, 16], sizes = [8, 16], strides = [1, 1]} : vector<16x32xf32> to vector<8x16xf32>
    %241 = vector.extract_strided_slice %218 {offsets = [0, 16], sizes = [8, 16], strides = [1, 1]} : vector<16x32xf32> to vector<8x16xf32>
    %cst_98 = arith.constant dense<0.000000e+00> : vector<8x8xf32>
    %242 = tpu.matmul %239, %240, %cst_98 {dimension_numbers = #tpu.dot_dimension_numbers<[1], [1], [0], [0], [0, 0, 1, 0], [], []>} : vector<8x16xf32>, vector<8x16xf32>, vector<8x8xf32> -> vector<8x8xf32>
    %cst_99 = arith.constant 2.500000e-01 : f32
    %243 = vector.broadcast %cst_99 : f32 to vector<8x8xf32>
    %244 = arith.mulf %242, %243 : vector<8x8xf32>
    %245 = vector.broadcast %219 : vector<1x8xf32> to vector<8x8xf32>
    %246 = arith.addf %244, %245 : vector<8x8xf32>
    %cst_100 = arith.constant dense<0xFF800000> : vector<8xf32>
    %247 = vector.multi_reduction <maximumf>, %246, %cst_100 [1] : vector<8x8xf32> to vector<8xf32>
    %248 = vector.shape_cast %247 : vector<8xf32> to vector<8x1xf32>
    %249 = vector.broadcast %248 : vector<8x1xf32> to vector<8x8xf32>
    %250 = arith.subf %246, %249 : vector<8x8xf32>
    %251 = math.exp %250 : vector<8x8xf32>
    %cst_101 = arith.constant dense<0.000000e+00> : vector<8xf32>
    %252 = vector.multi_reduction <add>, %251, %cst_101 [1] : vector<8x8xf32> to vector<8xf32>
    %253 = vector.shape_cast %252 : vector<8xf32> to vector<8x1xf32>
    %254 = tpu.reciprocal %253 {approx = true} : vector<8x1xf32> -> vector<8x1xf32>
    %255 = vector.broadcast %254 : vector<8x1xf32> to vector<8x8xf32>
    %256 = arith.mulf %251, %255 : vector<8x8xf32>
    %cst_102 = arith.constant dense<0.000000e+00> : vector<8x16xf32>
    %257 = tpu.matmul %256, %241, %cst_102 {dimension_numbers = #tpu.dot_dimension_numbers<[1], [0], [0], [1], [0, 0, 1, 1], [], []>} : vector<8x8xf32>, vector<8x16xf32>, vector<8x16xf32> -> vector<8x16xf32>
    %258 = tpu.concatenate %238, %257 in 1 : vector<8x16xf32>, vector<8x16xf32> -> vector<8x32xf32>
    %259 = vector.extract_strided_slice %29 {offsets = [1, 0], sizes = [1, 8], strides = [1, 1]} : vector<2x8xf32> to vector<1x8xf32>
    %260 = vector.extract_strided_slice %216 {offsets = [8, 0], sizes = [8, 16], strides = [1, 1]} : vector<16x32xf32> to vector<8x16xf32>
    %261 = vector.extract_strided_slice %217 {offsets = [8, 0], sizes = [8, 16], strides = [1, 1]} : vector<16x32xf32> to vector<8x16xf32>
    %262 = vector.extract_strided_slice %218 {offsets = [8, 0], sizes = [8, 16], strides = [1, 1]} : vector<16x32xf32> to vector<8x16xf32>
    %cst_103 = arith.constant dense<0.000000e+00> : vector<8x8xf32>
    %263 = tpu.matmul %260, %261, %cst_103 {dimension_numbers = #tpu.dot_dimension_numbers<[1], [1], [0], [0], [0, 0, 1, 0], [], []>} : vector<8x16xf32>, vector<8x16xf32>, vector<8x8xf32> -> vector<8x8xf32>
    %cst_104 = arith.constant 2.500000e-01 : f32
    %264 = vector.broadcast %cst_104 : f32 to vector<8x8xf32>
    %265 = arith.mulf %263, %264 : vector<8x8xf32>
    %266 = vector.broadcast %259 : vector<1x8xf32> to vector<8x8xf32>
    %267 = arith.addf %265, %266 : vector<8x8xf32>
    %cst_105 = arith.constant dense<0xFF800000> : vector<8xf32>
    %268 = vector.multi_reduction <maximumf>, %267, %cst_105 [1] : vector<8x8xf32> to vector<8xf32>
    %269 = vector.shape_cast %268 : vector<8xf32> to vector<8x1xf32>
    %270 = vector.broadcast %269 : vector<8x1xf32> to vector<8x8xf32>
    %271 = arith.subf %267, %270 : vector<8x8xf32>
    %272 = math.exp %271 : vector<8x8xf32>
    %cst_106 = arith.constant dense<0.000000e+00> : vector<8xf32>
    %273 = vector.multi_reduction <add>, %272, %cst_106 [1] : vector<8x8xf32> to vector<8xf32>
    %274 = vector.shape_cast %273 : vector<8xf32> to vector<8x1xf32>
    %275 = tpu.reciprocal %274 {approx = true} : vector<8x1xf32> -> vector<8x1xf32>
    %276 = vector.broadcast %275 : vector<8x1xf32> to vector<8x8xf32>
    %277 = arith.mulf %272, %276 : vector<8x8xf32>
    %cst_107 = arith.constant dense<0.000000e+00> : vector<8x16xf32>
    %278 = tpu.matmul %277, %262, %cst_107 {dimension_numbers = #tpu.dot_dimension_numbers<[1], [0], [0], [1], [0, 0, 1, 1], [], []>} : vector<8x8xf32>, vector<8x16xf32>, vector<8x16xf32> -> vector<8x16xf32>
    %279 = vector.extract_strided_slice %216 {offsets = [8, 16], sizes = [8, 16], strides = [1, 1]} : vector<16x32xf32> to vector<8x16xf32>
    %280 = vector.extract_strided_slice %217 {offsets = [8, 16], sizes = [8, 16], strides = [1, 1]} : vector<16x32xf32> to vector<8x16xf32>
    %281 = vector.extract_strided_slice %218 {offsets = [8, 16], sizes = [8, 16], strides = [1, 1]} : vector<16x32xf32> to vector<8x16xf32>
    %cst_108 = arith.constant dense<0.000000e+00> : vector<8x8xf32>
    %282 = tpu.matmul %279, %280, %cst_108 {dimension_numbers = #tpu.dot_dimension_numbers<[1], [1], [0], [0], [0, 0, 1, 0], [], []>} : vector<8x16xf32>, vector<8x16xf32>, vector<8x8xf32> -> vector<8x8xf32>
    %cst_109 = arith.constant 2.500000e-01 : f32
    %283 = vector.broadcast %cst_109 : f32 to vector<8x8xf32>
    %284 = arith.mulf %282, %283 : vector<8x8xf32>
    %285 = vector.broadcast %259 : vector<1x8xf32> to vector<8x8xf32>
    %286 = arith.addf %284, %285 : vector<8x8xf32>
    %cst_110 = arith.constant dense<0xFF800000> : vector<8xf32>
    %287 = vector.multi_reduction <maximumf>, %286, %cst_110 [1] : vector<8x8xf32> to vector<8xf32>
    %288 = vector.shape_cast %287 : vector<8xf32> to vector<8x1xf32>
    %289 = vector.broadcast %288 : vector<8x1xf32> to vector<8x8xf32>
    %290 = arith.subf %286, %289 : vector<8x8xf32>
    %291 = math.exp %290 : vector<8x8xf32>
    %cst_111 = arith.constant dense<0.000000e+00> : vector<8xf32>
    %292 = vector.multi_reduction <add>, %291, %cst_111 [1] : vector<8x8xf32> to vector<8xf32>
    %293 = vector.shape_cast %292 : vector<8xf32> to vector<8x1xf32>
    %294 = tpu.reciprocal %293 {approx = true} : vector<8x1xf32> -> vector<8x1xf32>
    %295 = vector.broadcast %294 : vector<8x1xf32> to vector<8x8xf32>
    %296 = arith.mulf %291, %295 : vector<8x8xf32>
    %cst_112 = arith.constant dense<0.000000e+00> : vector<8x16xf32>
    %297 = tpu.matmul %296, %281, %cst_112 {dimension_numbers = #tpu.dot_dimension_numbers<[1], [0], [0], [1], [0, 0, 1, 1], [], []>} : vector<8x8xf32>, vector<8x16xf32>, vector<8x16xf32> -> vector<8x16xf32>
    %298 = tpu.concatenate %278, %297 in 1 : vector<8x16xf32>, vector<8x16xf32> -> vector<8x32xf32>
    %299 = tpu.concatenate %258, %298 in 0 : vector<8x32xf32>, vector<8x32xf32> -> vector<16x32xf32>
    %c1_113 = arith.constant 1 : index
    %c0_114 = arith.constant 0 : index
    %c0_115 = arith.constant 0 : index
    %300 = vector.load %arg7[%c1_113, %c0_114, %c0_115] : memref<2x32x32xf32, #tpu.memory_space<vmem>>, vector<1x32x32xf32>
    %301 = vector.shape_cast %300 : vector<1x32x32xf32> to vector<32x32xf32>
    %cst_116 = arith.constant dense<0.000000e+00> : vector<16x32xf32>
    %302 = tpu.matmul %299, %301, %cst_116 {dimension_numbers = #tpu.dot_dimension_numbers<[1], [0], [0], [1], [0, 0, 1, 1], [], []>} : vector<16x32xf32>, vector<32x32xf32>, vector<16x32xf32> -> vector<16x32xf32>
    %c1_117 = arith.constant 1 : index
    %c0_118 = arith.constant 0 : index
    %c0_119 = arith.constant 0 : index
    %303 = vector.load %arg8[%c1_117, %c0_118, %c0_119] : memref<2x1x32xf32, #tpu.memory_space<vmem>>, vector<1x1x32xf32>
    %304 = vector.shape_cast %303 : vector<1x1x32xf32> to vector<1x32xf32>
    %305 = vector.broadcast %304 : vector<1x32xf32> to vector<16x32xf32>
    %306 = arith.addf %302, %305 : vector<16x32xf32>
    %307 = arith.addf %306, %208 : vector<16x32xf32>
    %c1_120 = arith.constant 1 : index
    %c0_121 = arith.constant 0 : index
    %c0_122 = arith.constant 0 : index
    %308 = vector.load %arg13[%c1_120, %c0_121, %c0_122] : memref<2x1x32xf32, #tpu.memory_space<vmem>>, vector<1x1x32xf32>
    %309 = vector.shape_cast %308 : vector<1x1x32xf32> to vector<1x32xf32>
    %c1_123 = arith.constant 1 : index
    %c0_124 = arith.constant 0 : index
    %c0_125 = arith.constant 0 : index
    %310 = vector.load %arg14[%c1_123, %c0_124, %c0_125] : memref<2x1x32xf32, #tpu.memory_space<vmem>>, vector<1x1x32xf32>
    %311 = vector.shape_cast %310 : vector<1x1x32xf32> to vector<1x32xf32>
    %cst_126 = arith.constant dense<0.000000e+00> : vector<16xf32>
    %312 = vector.multi_reduction <add>, %307, %cst_126 [1] : vector<16x32xf32> to vector<16xf32>
    %313 = vector.shape_cast %312 : vector<16xf32> to vector<16x1xf32>
    %cst_127 = arith.constant 3.200000e+01 : f32
    %314 = vector.broadcast %cst_127 : f32 to vector<16x1xf32>
    %315 = arith.divf %313, %314 : vector<16x1xf32>
    %316 = vector.broadcast %315 : vector<16x1xf32> to vector<16x32xf32>
    %317 = arith.subf %307, %316 : vector<16x32xf32>
    %318 = arith.mulf %317, %317 : vector<16x32xf32>
    %cst_128 = arith.constant dense<0.000000e+00> : vector<16xf32>
    %319 = vector.multi_reduction <add>, %318, %cst_128 [1] : vector<16x32xf32> to vector<16xf32>
    %320 = vector.shape_cast %319 : vector<16xf32> to vector<16x1xf32>
    %cst_129 = arith.constant 3.200000e+01 : f32
    %321 = vector.broadcast %cst_129 : f32 to vector<16x1xf32>
    %322 = arith.divf %320, %321 : vector<16x1xf32>
    %323 = vector.broadcast %315 : vector<16x1xf32> to vector<16x32xf32>
    %324 = arith.subf %307, %323 : vector<16x32xf32>
    %cst_130 = arith.constant 9.99999996E-13 : f32
    %325 = vector.broadcast %cst_130 : f32 to vector<16x1xf32>
    %326 = arith.addf %322, %325 : vector<16x1xf32>
    %327 = math.rsqrt %326 : vector<16x1xf32>
    %328 = vector.broadcast %327 : vector<16x1xf32> to vector<16x32xf32>
    %329 = arith.mulf %324, %328 : vector<16x32xf32>
    %330 = vector.broadcast %309 : vector<1x32xf32> to vector<16x32xf32>
    %331 = arith.mulf %329, %330 : vector<16x32xf32>
    %332 = vector.broadcast %311 : vector<1x32xf32> to vector<16x32xf32>
    %333 = arith.addf %331, %332 : vector<16x32xf32>
    %c1_131 = arith.constant 1 : index
    %c0_132 = arith.constant 0 : index
    %c0_133 = arith.constant 0 : index
    %334 = vector.load %arg9[%c1_131, %c0_132, %c0_133] : memref<2x32x64xf32, #tpu.memory_space<vmem>>, vector<1x32x64xf32>
    %335 = vector.shape_cast %334 : vector<1x32x64xf32> to vector<32x64xf32>
    %cst_134 = arith.constant dense<0.000000e+00> : vector<16x64xf32>
    %336 = tpu.matmul %333, %335, %cst_134 {dimension_numbers = #tpu.dot_dimension_numbers<[1], [0], [0], [1], [0, 0, 1, 1], [], []>} : vector<16x32xf32>, vector<32x64xf32>, vector<16x64xf32> -> vector<16x64xf32>
    %c1_135 = arith.constant 1 : index
    %c0_136 = arith.constant 0 : index
    %c0_137 = arith.constant 0 : index
    %337 = vector.load %arg10[%c1_135, %c0_136, %c0_137] : memref<2x1x64xf32, #tpu.memory_space<vmem>>, vector<1x1x64xf32>
    %338 = vector.shape_cast %337 : vector<1x1x64xf32> to vector<1x64xf32>
    %339 = vector.broadcast %338 : vector<1x64xf32> to vector<16x64xf32>
    %340 = arith.addf %336, %339 : vector<16x64xf32>
    %341 = arith.mulf %340, %340 : vector<16x64xf32>
    %342 = arith.mulf %340, %341 : vector<16x64xf32>
    %cst_138 = arith.constant 4.471500e-02 : f32
    %343 = vector.broadcast %cst_138 : f32 to vector<16x64xf32>
    %344 = arith.mulf %343, %342 : vector<16x64xf32>
    %345 = arith.addf %340, %344 : vector<16x64xf32>
    %cst_139 = arith.constant 0.797884583 : f32
    %346 = vector.broadcast %cst_139 : f32 to vector<16x64xf32>
    %347 = arith.mulf %346, %345 : vector<16x64xf32>
    %348 = math.tanh %347 : vector<16x64xf32>
    %cst_140 = arith.constant 1.000000e+00 : f32
    %349 = vector.broadcast %cst_140 : f32 to vector<16x64xf32>
    %350 = arith.addf %349, %348 : vector<16x64xf32>
    %cst_141 = arith.constant 5.000000e-01 : f32
    %351 = vector.broadcast %cst_141 : f32 to vector<16x64xf32>
    %352 = arith.mulf %351, %350 : vector<16x64xf32>
    %353 = arith.mulf %340, %352 : vector<16x64xf32>
    %c1_142 = arith.constant 1 : index
    %c0_143 = arith.constant 0 : index
    %c0_144 = arith.constant 0 : index
    %354 = vector.load %arg11[%c1_142, %c0_143, %c0_144] : memref<2x64x32xf32, #tpu.memory_space<vmem>>, vector<1x64x32xf32>
    %355 = vector.shape_cast %354 : vector<1x64x32xf32> to vector<64x32xf32>
    %cst_145 = arith.constant dense<0.000000e+00> : vector<16x32xf32>
    %356 = tpu.matmul %353, %355, %cst_145 {dimension_numbers = #tpu.dot_dimension_numbers<[1], [0], [0], [1], [0, 0, 1, 1], [], []>} : vector<16x64xf32>, vector<64x32xf32>, vector<16x32xf32> -> vector<16x32xf32>
    %c1_146 = arith.constant 1 : index
    %c0_147 = arith.constant 0 : index
    %c0_148 = arith.constant 0 : index
    %357 = vector.load %arg12[%c1_146, %c0_147, %c0_148] : memref<2x1x32xf32, #tpu.memory_space<vmem>>, vector<1x1x32xf32>
    %358 = vector.shape_cast %357 : vector<1x1x32xf32> to vector<1x32xf32>
    %359 = vector.broadcast %358 : vector<1x32xf32> to vector<16x32xf32>
    %360 = arith.addf %356, %359 : vector<16x32xf32>
    %361 = arith.addf %360, %333 : vector<16x32xf32>
    %c1_149 = arith.constant 1 : index
    %c0_150 = arith.constant 0 : index
    %c0_151 = arith.constant 0 : index
    %362 = vector.load %arg15[%c1_149, %c0_150, %c0_151] : memref<2x1x32xf32, #tpu.memory_space<vmem>>, vector<1x1x32xf32>
    %363 = vector.shape_cast %362 : vector<1x1x32xf32> to vector<1x32xf32>
    %c1_152 = arith.constant 1 : index
    %c0_153 = arith.constant 0 : index
    %c0_154 = arith.constant 0 : index
    %364 = vector.load %arg16[%c1_152, %c0_153, %c0_154] : memref<2x1x32xf32, #tpu.memory_space<vmem>>, vector<1x1x32xf32>
    %365 = vector.shape_cast %364 : vector<1x1x32xf32> to vector<1x32xf32>
    %cst_155 = arith.constant dense<0.000000e+00> : vector<16xf32>
    %366 = vector.multi_reduction <add>, %361, %cst_155 [1] : vector<16x32xf32> to vector<16xf32>
    %367 = vector.shape_cast %366 : vector<16xf32> to vector<16x1xf32>
    %cst_156 = arith.constant 3.200000e+01 : f32
    %368 = vector.broadcast %cst_156 : f32 to vector<16x1xf32>
    %369 = arith.divf %367, %368 : vector<16x1xf32>
    %370 = vector.broadcast %369 : vector<16x1xf32> to vector<16x32xf32>
    %371 = arith.subf %361, %370 : vector<16x32xf32>
    %372 = arith.mulf %371, %371 : vector<16x32xf32>
    %cst_157 = arith.constant dense<0.000000e+00> : vector<16xf32>
    %373 = vector.multi_reduction <add>, %372, %cst_157 [1] : vector<16x32xf32> to vector<16xf32>
    %374 = vector.shape_cast %373 : vector<16xf32> to vector<16x1xf32>
    %cst_158 = arith.constant 3.200000e+01 : f32
    %375 = vector.broadcast %cst_158 : f32 to vector<16x1xf32>
    %376 = arith.divf %374, %375 : vector<16x1xf32>
    %377 = vector.broadcast %369 : vector<16x1xf32> to vector<16x32xf32>
    %378 = arith.subf %361, %377 : vector<16x32xf32>
    %cst_159 = arith.constant 9.99999996E-13 : f32
    %379 = vector.broadcast %cst_159 : f32 to vector<16x1xf32>
    %380 = arith.addf %376, %379 : vector<16x1xf32>
    %381 = math.rsqrt %380 : vector<16x1xf32>
    %382 = vector.broadcast %381 : vector<16x1xf32> to vector<16x32xf32>
    %383 = arith.mulf %378, %382 : vector<16x32xf32>
    %384 = vector.broadcast %363 : vector<1x32xf32> to vector<16x32xf32>
    %385 = arith.mulf %383, %384 : vector<16x32xf32>
    %386 = vector.broadcast %365 : vector<1x32xf32> to vector<16x32xf32>
    %387 = arith.addf %385, %386 : vector<16x32xf32>
    %c0_160 = arith.constant 0 : index
    %c0_161 = arith.constant 0 : index
    %388 = vector.load %arg17[%c0_160, %c0_161] : memref<32x128xf32, #tpu.memory_space<vmem>>, vector<32x128xf32>
    %cst_162 = arith.constant dense<0.000000e+00> : vector<16x128xf32>
    %389 = tpu.matmul %387, %388, %cst_162 {dimension_numbers = #tpu.dot_dimension_numbers<[1], [0], [0], [1], [0, 0, 1, 1], [], []>} : vector<16x32xf32>, vector<32x128xf32>, vector<16x128xf32> -> vector<16x128xf32>
    %c0_163 = arith.constant 0 : index
    %c0_164 = arith.constant 0 : index
    %390 = vector.load %arg18[%c0_163, %c0_164] : memref<1x128xf32, #tpu.memory_space<vmem>>, vector<1x128xf32>
    %391 = vector.broadcast %390 : vector<1x128xf32> to vector<16x128xf32>
    %392 = arith.addf %389, %391 : vector<16x128xf32>
    %c0_165 = arith.constant 0 : index
    %c0_166 = arith.constant 0 : index
    %393 = vector.load %arg19[%c0_165, %c0_166] : memref<16x128xf32, #tpu.memory_space<vmem>>, vector<16x128xf32>
    tpu.vector_store %arg19[%c0_165, %c0_166], %392 {strides = array<i32>} : memref<16x128xf32, #tpu.memory_space<vmem>>, vector<16x128xf32>,
    return
  }
  func.func @transform_0(%arg0: i32) -> (i32, i32) {
    %c0_i32 = arith.constant 0 : i32
    %c0_i32_0 = arith.constant 0 : i32
    %c0_i32_1 = arith.constant 0 : i32
    return %c0_i32, %c0_i32_0 : i32, i32
  }
  func.func @transform_1(%arg0: i32) -> (i32, i32) {
    %c0_i32 = arith.constant 0 : i32
    %c0_i32_0 = arith.constant 0 : i32
    %c0_i32_1 = arith.constant 0 : i32
    return %c0_i32, %c0_i32_0 : i32, i32
  }
  func.func @transform_2(%arg0: i32) -> (i32, i32) {
    %c0_i32 = arith.constant 0 : i32
    %c0_i32_0 = arith.constant 0 : i32
    %c0_i32_1 = arith.constant 0 : i32
    return %c0_i32, %c0_i32_0 : i32, i32
  }
  func.func @transform_3(%arg0: i32) -> (i32, i32) {
    %c0_i32 = arith.constant 0 : i32
    %c0_i32_0 = arith.constant 0 : i32
    %c0_i32_1 = arith.constant 0 : i32
    return %c0_i32, %c0_i32_0 : i32, i32
  }
  func.func @transform_4(%arg0: i32) -> (i32, i32, i32) {
    %c0_i32 = arith.constant 0 : i32
    %c0_i32_0 = arith.constant 0 : i32
    %c0_i32_1 = arith.constant 0 : i32
    %c0_i32_2 = arith.constant 0 : i32
    return %c0_i32, %c0_i32_0, %c0_i32_1 : i32, i32, i32
  }
  func.func @transform_5(%arg0: i32) -> (i32, i32, i32) {
    %c0_i32 = arith.constant 0 : i32
    %c0_i32_0 = arith.constant 0 : i32
    %c0_i32_1 = arith.constant 0 : i32
    %c0_i32_2 = arith.constant 0 : i32
    return %c0_i32, %c0_i32_0, %c0_i32_1 : i32, i32, i32
  }
  func.func @transform_6(%arg0: i32) -> (i32, i32, i32) {
    %c0_i32 = arith.constant 0 : i32
    %c0_i32_0 = arith.constant 0 : i32
    %c0_i32_1 = arith.constant 0 : i32
    %c0_i32_2 = arith.constant 0 : i32
    return %c0_i32, %c0_i32_0, %c0_i32_1 : i32, i32, i32
  }
  func.func @transform_7(%arg0: i32) -> (i32, i32, i32) {
    %c0_i32 = arith.constant 0 : i32
    %c0_i32_0 = arith.constant 0 : i32
    %c0_i32_1 = arith.constant 0 : i32
    %c0_i32_2 = arith.constant 0 : i32
    return %c0_i32, %c0_i32_0, %c0_i32_1 : i32, i32, i32
  }
  func.func @transform_8(%arg0: i32) -> (i32, i32, i32) {
    %c0_i32 = arith.constant 0 : i32
    %c0_i32_0 = arith.constant 0 : i32
    %c0_i32_1 = arith.constant 0 : i32
    %c0_i32_2 = arith.constant 0 : i32
    return %c0_i32, %c0_i32_0, %c0_i32_1 : i32, i32, i32
  }
  func.func @transform_9(%arg0: i32) -> (i32, i32, i32) {
    %c0_i32 = arith.constant 0 : i32
    %c0_i32_0 = arith.constant 0 : i32
    %c0_i32_1 = arith.constant 0 : i32
    %c0_i32_2 = arith.constant 0 : i32
    return %c0_i32, %c0_i32_0, %c0_i32_1 : i32, i32, i32
  }
  func.func @transform_10(%arg0: i32) -> (i32, i32, i32) {
    %c0_i32 = arith.constant 0 : i32
    %c0_i32_0 = arith.constant 0 : i32
    %c0_i32_1 = arith.constant 0 : i32
    %c0_i32_2 = arith.constant 0 : i32
    return %c0_i32, %c0_i32_0, %c0_i32_1 : i32, i32, i32
  }
  func.func @transform_11(%arg0: i32) -> (i32, i32, i32) {
    %c0_i32 = arith.constant 0 : i32
    %c0_i32_0 = arith.constant 0 : i32
    %c0_i32_1 = arith.constant 0 : i32
    %c0_i32_2 = arith.constant 0 : i32
    return %c0_i32, %c0_i32_0, %c0_i32_1 : i32, i32, i32
  }
  func.func @transform_12(%arg0: i32) -> (i32, i32, i32) {
    %c0_i32 = arith.constant 0 : i32
    %c0_i32_0 = arith.constant 0 : i32
    %c0_i32_1 = arith.constant 0 : i32
    %c0_i32_2 = arith.constant 0 : i32
    return %c0_i32, %c0_i32_0, %c0_i32_1 : i32, i32, i32
  }
  func.func @transform_13(%arg0: i32) -> (i32, i32, i32) {
    %c0_i32 = arith.constant 0 : i32
    %c0_i32_0 = arith.constant 0 : i32
    %c0_i32_1 = arith.constant 0 : i32
    %c0_i32_2 = arith.constant 0 : i32
    return %c0_i32, %c0_i32_0, %c0_i32_1 : i32, i32, i32
  }
  func.func @transform_14(%arg0: i32) -> (i32, i32, i32) {
    %c0_i32 = arith.constant 0 : i32
    %c0_i32_0 = arith.constant 0 : i32
    %c0_i32_1 = arith.constant 0 : i32
    %c0_i32_2 = arith.constant 0 : i32
    return %c0_i32, %c0_i32_0, %c0_i32_1 : i32, i32, i32
  }
  func.func @transform_15(%arg0: i32) -> (i32, i32, i32) {
    %c0_i32 = arith.constant 0 : i32
    %c0_i32_0 = arith.constant 0 : i32
    %c0_i32_1 = arith.constant 0 : i32
    %c0_i32_2 = arith.constant 0 : i32
    return %c0_i32, %c0_i32_0, %c0_i32_1 : i32, i32, i32
  }
  func.func @transform_16(%arg0: i32) -> (i32, i32) {
    %c0_i32 = arith.constant 0 : i32
    %c0_i32_0 = arith.constant 0 : i32
    %c0_i32_1 = arith.constant 0 : i32
    return %c0_i32, %c0_i32_0 : i32, i32
  }
  func.func @transform_17(%arg0: i32) -> (i32, i32) {
    %c0_i32 = arith.constant 0 : i32
    %c0_i32_0 = arith.constant 0 : i32
    %c0_i32_1 = arith.constant 0 : i32
    return %c0_i32, %c0_i32_0 : i32, i32
  }
  func.func @transform_18(%arg0: i32) -> (i32, i32) {
    %c0_i32 = arith.constant 0 : i32
    %c0_i32_0 = arith.constant 0 : i32
    %c0_i32_1 = arith.constant 0 : i32
    return %c0_i32, %c0_i32_0 : i32, i32
  }
}

</mosaic_0001>

<llo_original>
// kernel: fused_forward_logits.1
$region0: #{fused_forward_logits.1}
  #allocation0 [shape = 'u32[]', space=smem, size = 0x4, offset = 0x4, fixed_abs, tag = 'smem constant byte address 0x4 - core index']
  #allocation1 [shape = 'u32[144,128]{1,0:T(1,128)}', space=vmem, size = 0x12000, scoped, tag = 'internal scratch']
  %s0 = inlined_call_operand.vmem [shape: f32[16,32], index: 0, kind: input, shape index: {}]
  %s1 = inlined_call_operand.vmem [shape: f32[2,8], index: 1, kind: input, shape index: {}]
  %s2 = inlined_call_operand.vmem [shape: f32[1,32], index: 2, kind: input, shape index: {}]
  %s3 = inlined_call_operand.vmem [shape: f32[1,32], index: 3, kind: input, shape index: {}]
  %s4 = inlined_call_operand.vmem [shape: f32[2,32,96], index: 4, kind: input, shape index: {}]
  %s5 = inlined_call_operand.vmem [shape: f32[2,1,96], index: 5, kind: input, shape index: {}]
  %s6 = inlined_call_operand.vmem [shape: f32[2,32,32], index: 6, kind: input, shape index: {}]
  %s7 = inlined_call_operand.vmem [shape: f32[2,1,32], index: 7, kind: input, shape index: {}]
  %s8 = inlined_call_operand.vmem [shape: f32[2,32,64], index: 8, kind: input, shape index: {}]
  %s9 = inlined_call_operand.vmem [shape: f32[2,1,64], index: 9, kind: input, shape index: {}]
  %s10 = inlined_call_operand.vmem [shape: f32[2,64,32], index: 10, kind: input, shape index: {}]
  %s11 = inlined_call_operand.vmem [shape: f32[2,1,32], index: 11, kind: input, shape index: {}]
  %s12 = inlined_call_operand.vmem [shape: f32[2,1,32], index: 12, kind: input, shape index: {}]
  %s13 = inlined_call_operand.vmem [shape: f32[2,1,32], index: 13, kind: input, shape index: {}]
  %s14 = inlined_call_operand.vmem [shape: f32[2,1,32], index: 14, kind: input, shape index: {}]
  %s15 = inlined_call_operand.vmem [shape: f32[2,1,32], index: 15, kind: input, shape index: {}]
  %s16 = inlined_call_operand.vmem [shape: f32[32,128], index: 16, kind: input, shape index: {}]
  %s17 = inlined_call_operand.vmem [shape: f32[1,128], index: 17, kind: input, shape index: {}]
  %s18 = inlined_call_operand.vmem [shape: f32[16,128], index: 18, kind: output, shape index: {}]
  %s19 = sld [smem:[#allocation0]]
  $region82: #{fused_forward_logits.1} parent=0
    _
  %s21 = ssub.s32 1, %s19
  %s22 = scalar_select 0, %s21, %s19
  // Predicated region
  $region2: #{fused_forward_logits.1} parent=0 // pred_check
    _
  $region3: #{fused_forward_logits.1} parent=0 // pred_check_branch
    %24 = sbr.rel (0) target = $region5
  $region4: #{fused_forward_logits.1} parent=0 // pred_region
    _
  $region5: #{fused_forward_logits.1} parent=0 // pred_fallthru
    _
  // Predicated region
  $region6: #{fused_forward_logits.1} parent=0 // pred_check
    _
  $region7: #{fused_forward_logits.1} parent=0 // pred_check_branch
    %26 = sbr.rel (0) target = $region9
  $region8: #{fused_forward_logits.1} parent=0 // pred_region
    _
  $region9: #{fused_forward_logits.1} parent=0 // pred_fallthru
    _
  // Predicated region
  $region10: #{fused_forward_logits.1} parent=0 // pred_check
    _
  $region11: #{fused_forward_logits.1} parent=0 // pred_check_branch
    %28 = sbr.rel (0) target = $region13
  $region12: #{fused_forward_logits.1} parent=0 // pred_region
    _
  $region13: #{fused_forward_logits.1} parent=0 // pred_fallthru
    _
  // Predicated region
  $region14: #{fused_forward_logits.1} parent=0 // pred_check
    _
  $region15: #{fused_forward_logits.1} parent=0 // pred_check_branch
    %30 = sbr.rel (0) target = $region17
  $region16: #{fused_forward_logits.1} parent=0 // pred_region
    _
  $region17: #{fused_forward_logits.1} parent=0 // pred_fallthru
    _
  // Predicated region
  $region18: #{fused_forward_logits.1} parent=0 // pred_check
    _
  $region19: #{fused_forward_logits.1} parent=0 // pred_check_branch
    %32 = sbr.rel (0) target = $region21
  $region20: #{fused_forward_logits.1} parent=0 // pred_region
    _
  $region21: #{fused_forward_logits.1} parent=0 // pred_fallthru
    _
  // Predicated region
  $region22: #{fused_forward_logits.1} parent=0 // pred_check
    _
  $region23: #{fused_forward_logits.1} parent=0 // pred_check_branch
    %34 = sbr.rel (0) target = $region25
  $region24: #{fused_forward_logits.1} parent=0 // pred_region
    _
  $region25: #{fused_forward_logits.1} parent=0 // pred_fallthru
    _
  // Predicated region
  $region26: #{fused_forward_logits.1} parent=0 // pred_check
    _
  $region27: #{fused_forward_logits.1} parent=0 // pred_check_branch
    %36 = sbr.rel (0) target = $region29
  $region28: #{fused_forward_logits.1} parent=0 // pred_region
    _
  $region29: #{fused_forward_logits.1} parent=0 // pred_fallthru
    _
  // Predicated region
  $region30: #{fused_forward_logits.1} parent=0 // pred_check
    _
  $region31: #{fused_forward_logits.1} parent=0 // pred_check_branch
    %38 = sbr.rel (0) target = $region33
  $region32: #{fused_forward_logits.1} parent=0 // pred_region
    _
  $region33: #{fused_forward_logits.1} parent=0 // pred_fallthru
    _
  // Predicated region
  $region34: #{fused_forward_logits.1} parent=0 // pred_check
    _
  $region35: #{fused_forward_logits.1} parent=0 // pred_check_branch
    %40 = sbr.rel (0) target = $region37
  $region36: #{fused_forward_logits.1} parent=0 // pred_region
    _
  $region37: #{fused_forward_logits.1} parent=0 // pred_fallthru
    _
  // Predicated region
  $region38: #{fused_forward_logits.1} parent=0 // pred_check
    _
  $region39: #{fused_forward_logits.1} parent=0 // pred_check_branch
    %42 = sbr.rel (0) target = $region41
  $region40: #{fused_forward_logits.1} parent=0 // pred_region
    _
  $region41: #{fused_forward_logits.1} parent=0 // pred_fallthru
    _
  // Predicated region
  $region42: #{fused_forward_logits.1} parent=0 // pred_check
    _
  $region43: #{fused_forward_logits.1} parent=0 // pred_check_branch
    %44 = sbr.rel (0) target = $region45
  $region44: #{fused_forward_logits.1} parent=0 // pred_region
    _
  $region45: #{fused_forward_logits.1} parent=0 // pred_fallthru
    _
  // Predicated region
  $region46: #{fused_forward_logits.1} parent=0 // pred_check
    _
  $region47: #{fused_forward_logits.1} parent=0 // pred_check_branch
    %46 = sbr.rel (0) target = $region49
  $region48: #{fused_forward_logits.1} parent=0 // pred_region
    _
  $region49: #{fused_forward_logits.1} parent=0 // pred_fallthru
    _
  // Predicated region
  $region50: #{fused_forward_logits.1} parent=0 // pred_check
    _
  $region51: #{fused_forward_logits.1} parent=0 // pred_check_branch
    %48 = sbr.rel (0) target = $region53
  $region52: #{fused_forward_logits.1} parent=0 // pred_region
    _
  $region53: #{fused_forward_logits.1} parent=0 // pred_fallthru
    _
  // Predicated region
  $region54: #{fused_forward_logits.1} parent=0 // pred_check
    _
  $region55: #{fused_forward_logits.1} parent=0 // pred_check_branch
    %50 = sbr.rel (0) target = $region57
  $region56: #{fused_forward_logits.1} parent=0 // pred_region
    _
  $region57: #{fused_forward_logits.1} parent=0 // pred_fallthru
    _
  // Predicated region
  $region58: #{fused_forward_logits.1} parent=0 // pred_check
    _
  $region59: #{fused_forward_logits.1} parent=0 // pred_check_branch
    %52 = sbr.rel (0) target = $region61
  $region60: #{fused_forward_logits.1} parent=0 // pred_region
    _
  $region61: #{fused_forward_logits.1} parent=0 // pred_fallthru
    _
  // Predicated region
  $region62: #{fused_forward_logits.1} parent=0 // pred_check
    _
  $region63: #{fused_forward_logits.1} parent=0 // pred_check_branch
    %54 = sbr.rel (0) target = $region65
  $region64: #{fused_forward_logits.1} parent=0 // pred_region
    _
  $region65: #{fused_forward_logits.1} parent=0 // pred_fallthru
    _
  // Predicated region
  $region66: #{fused_forward_logits.1} parent=0 // pred_check
    _
  $region67: #{fused_forward_logits.1} parent=0 // pred_check_branch
    %56 = sbr.rel (0) target = $region69
  $region68: #{fused_forward_logits.1} parent=0 // pred_region
    _
  $region69: #{fused_forward_logits.1} parent=0 // pred_fallthru
    _
  // Predicated region
  $region70: #{fused_forward_logits.1} parent=0 // pred_check
    _
  $region71: #{fused_forward_logits.1} parent=0 // pred_check_branch
    %58 = sbr.rel (0) target = $region73
  $region72: #{fused_forward_logits.1} parent=0 // pred_region
    _
  $region73: #{fused_forward_logits.1} parent=0 // pred_fallthru
    _
  %v59 = vld [vmem:[%s0] sm:$0xff]
  %v60 = vld [vmem:[%s0 + $0x8] sm:$0xff]
  %v61 = vld [vmem:[%s2] sm:$0x1]
  %v62 = vld [vmem:[%s3] sm:$0x1]
  %vm63 = vcmask 261120
  %v64 = vsel %vm63, %v59, 0.0
  %65 = vadd.xlane.f32.xlu0 %v64
  %v66 = vpop.xlane.xlu0 %65
  %v67 = vsel %vm63, %v60, 0.0
  %68 = vadd.xlane.f32.xlu0 %v67
  %v69 = vpop.xlane.xlu0 %68
  %v70 = vrcp.pop 32.0
  %v71 = vmul.f32 %v66, %v70
  %v72 = vmul.f32 %v69, %v70
  %v73 = vsub.f32 %v59, %v71
  %v74 = vsub.f32 %v60, %v72
  %v75 = vmul.f32 %v73, %v73
  %v76 = vmul.f32 %v74, %v74
  %v77 = vsel %vm63, %v75, 0.0
  %78 = vadd.xlane.f32.xlu0 %v77
  %v79 = vpop.xlane.xlu0 %78
  %v80 = vsel %vm63, %v76, 0.0
  %81 = vadd.xlane.f32.xlu0 %v80
  %v82 = vpop.xlane.xlu0 %81
  %v83 = vmul.f32 %v79, %v70
  %v84 = vmul.f32 %v82, %v70
  %v85 = vadd.f32 %v83, 1e-12
  %v86 = vadd.f32 %v84, 1e-12
  %v87 = vrsqrt.pop %v85
  %v88 = vrsqrt.pop %v86
  %v89 = vmul.f32 %v73, %v87
  %v90 = vmul.f32 %v74, %v88
  %v92 = vlaneseq
  %v93 = vshrl.u32 %v92, 7
  %v94 = vsub.s32 0, %v93
  %v95 = vrot.slane %v61, %v94
  %v97 = vmul.f32 %v89, %v95
  %v98 = vmul.f32 %v90, %v95
  %v100 = vlaneseq
  %v101 = vshrl.u32 %v100, 7
  %v102 = vsub.s32 0, %v101
  %v103 = vrot.slane %v62, %v102
  %v105 = vadd.f32 %v97, %v103
  %v106 = vadd.f32 %v98, %v103
  %v107 = vld [vmem:[%s1] sm:$0x3]
  %v108 = vsub.f32 1.0, %v107
  %v109 = vmul.f32 %v108, -1e+09
  %v110 = vld [vmem:[%s4] sm:$0xff]
  %v111 = vld [vmem:[%s4 + $0x8] sm:$0xff]
  %v112 = vld [vmem:[%s4 + $0x10] sm:$0xff]
  %v113 = vld [vmem:[%s4 + $0x18] sm:$0xff]
  %v114 = vld [vmem:[%s5] sm:$0x1]
  %v116 = vlaneseq
  %v117 = vshrl.u32 %v116, 7
  %v118 = vsub.s32 0, %v117
  %v119 = vrot.slane %v114, %v118
  %v122 = vsel %vm63, %v105, 0
  %v125 = vsel %vm63, %v106, 0
  %127 = vmatprep.subr.mxu0 0.0
  %128 = vmatpush1.msra.mxu0 %v110
  %129 = vmatprep.subr.mxu0 0.0
  %130 = vmatpush1.msra.mxu0 %v111
  %131 = vmatprep.subr.mxu0 0.0
  %132 = vmatpush1.msra.mxu0 %v112
  %133 = vmatprep.subr.mxu0 0.0
  %134 = vmatpush1.msra.mxu0 %v113
  %135 = vmatprep.subr.mxu0 0.0
  %136 = vmatpush1.msra.mxu0 0.0
  %137 = vmatprep.subr.mxu0 0.0
  %138 = vmatpush1.msra.mxu0 0.0
  %139 = vmatprep.subr.mxu0 0.0
  %140 = vmatpush1.msra.mxu0 0.0
  %141 = vmatprep.subr.mxu0 0.0
  %142 = vmatpush1.msra.mxu0 0.0
  %143 = vmatprep.subr.mxu0 0.0
  %144 = vmatpush1.msra.mxu0 0.0
  %145 = vmatprep.subr.mxu0 0.0
  %146 = vmatpush1.msra.mxu0 0.0
  %147 = vmatprep.subr.mxu0 0.0
  %148 = vmatpush1.msra.mxu0 0.0
  %149 = vmatprep.subr.mxu0 0.0
  %150 = vmatpush1.msra.mxu0 0.0
  %151 = vmatprep.subr.mxu0 0.0
  %152 = vmatpush1.msra.mxu0 0.0
  %153 = vmatprep.subr.mxu0 0.0
  %154 = vmatpush1.msra.mxu0 0.0
  %155 = vmatprep.subr.mxu0 0.0
  %156 = vmatpush1.msra.mxu0 0.0
  %157 = vmatprep.subr.mxu0 0.0
  %158 = vmatpush1.msra.mxu0 0.0
  %159 = vmatprep.subr.mxu0 0.0
  %160 = vmatpush1.msra.mxu0 0.0
  %161 = vmatprep.subr.mxu0 0.0
  %162 = vmatpush1.msra.mxu0 0.0
  %163 = vmatprep.subr.mxu0 0.0
  %164 = vmatpush1.msra.mxu0 0.0
  %165 = vmatprep.subr.mxu0 0.0
  %166 = vmatpush1.msra.mxu0 0.0
  %167 = vmatprep.subr.mxu0 0.0
  %168 = vmatpush1.msra.mxu0 0.0
  %169 = vmatprep.subr.mxu0 0.0
  %170 = vmatpush1.msra.mxu0 0.0
  %171 = vmatprep.subr.mxu0 0.0
  %172 = vmatpush1.msra.mxu0 0.0
  %173 = vmatprep.subr.mxu0 0.0
  %174 = vmatpush1.msra.mxu0 0.0
  %175 = vmatprep.subr.mxu0 0.0
  %176 = vmatpush1.msra.mxu0 0.0
  %177 = vmatprep.subr.mxu0 0.0
  %178 = vmatpush1.msra.mxu0 0.0
  %179 = vmatprep.subr.mxu0 0.0
  %180 = vmatpush1.msra.mxu0 0.0
  %181 = vmatprep.subr.mxu0 0.0
  %182 = vmatpush1.msra.mxu0 0.0
  %183 = vmatprep.subr.mxu0 0.0
  %184 = vmatpush1.msra.mxu0 0.0
  %185 = vmatprep.subr.mxu0 0.0
  %186 = vmatpush1.msra.mxu0 0.0
  %187 = vmatprep.subr.mxu0 0.0
  %188 = vmatpush1.msra.mxu0 0.0
  %189 = vmatprep.subr.mxu0 0.0
  %190 = vmatpush1.msra.mxu0 0.0
  %191 = vmatprep.mubr.f32.mxu0 0.0
  %192 = vmatmul.mubr.f32.gmra.mrb[0].mxu0 %v122
  %v193 = vpop.f32.mrb[0].mxu0
  %v194 = vadd.f32 %v119, %v193
  %v195 = vpop.f32.mrb[0].mxu0
  %196 = vmatprep.mubr.f32.mxu0 0.0
  %197 = vmatmul.mubr.f32.gmra.mrb[0].mxu0 %v125
  %v198 = vpop.f32.mrb[0].mxu0
  %v199 = vadd.f32 %v119, %v198
  %v200 = vpop.f32.mrb[0].mxu0
  %201 = vdwg.mxu0
  %203 = vrot.lane.b32.xlu0 %v194, 96
  %v204 = vpop.permute.xlu0 %203
  %vm205 = vcmask 130048
  %v206 = vsel %vm205, %v194, 0
  %v208 = vsel %vm205, %v204, 0
  %210 = vmatprep.subr.mxu0 0.0
  %211 = vmatpush1.xpose.msra.mxu0 %v208
  %212 = vmatprep.subr.mxu0 0.0
  %213 = vmatpush1.xpose.msra.mxu0 0.0
  %214 = vmatprep.subr.mxu0 0.0
  %215 = vmatpush1.xpose.msra.mxu0 0.0
  %216 = vmatprep.subr.mxu0 0.0
  %217 = vmatpush1.xpose.msra.mxu0 0.0
  %218 = vmatprep.subr.mxu0 0.0
  %219 = vmatpush1.xpose.msra.mxu0 0.0
  %220 = vmatprep.subr.mxu0 0.0
  %221 = vmatpush1.xpose.msra.mxu0 0.0
  %222 = vmatprep.subr.mxu0 0.0
  %223 = vmatpush1.xpose.msra.mxu0 0.0
  %224 = vmatprep.subr.mxu0 0.0
  %225 = vmatpush1.xpose.msra.mxu0 0.0
  %226 = vmatprep.subr.mxu0 0.0
  %227 = vmatpush1.xpose.msra.mxu0 0.0
  %228 = vmatprep.subr.mxu0 0.0
  %229 = vmatpush1.xpose.msra.mxu0 0.0
  %230 = vmatprep.subr.mxu0 0.0
  %231 = vmatpush1.xpose.msra.mxu0 0.0
  %232 = vmatprep.subr.mxu0 0.0
  %233 = vmatpush1.xpose.msra.mxu0 0.0
  %234 = vmatprep.subr.mxu0 0.0
  %235 = vmatpush1.xpose.msra.mxu0 0.0
  %236 = vmatprep.subr.mxu0 0.0
  %237 = vmatpush1.xpose.msra.mxu0 0.0
  %238 = vmatprep.subr.mxu0 0.0
  %239 = vmatpush1.xpose.msra.mxu0 0.0
  %240 = vmatprep.subr.mxu0 0.0
  %241 = vmatpush1.xpose.msra.mxu0 0.0
  %242 = vmatprep.subr.mxu0 0.0
  %243 = vmatpush1.xpose.msra.mxu0 0.0
  %244 = vmatprep.subr.mxu0 0.0
  %245 = vmatpush1.xpose.msra.mxu0 0.0
  %246 = vmatprep.subr.mxu0 0.0
  %247 = vmatpush1.xpose.msra.mxu0 0.0
  %248 = vmatprep.subr.mxu0 0.0
  %249 = vmatpush1.xpose.msra.mxu0 0.0
  %250 = vmatprep.subr.mxu0 0.0
  %251 = vmatpush1.xpose.msra.mxu0 0.0
  %252 = vmatprep.subr.mxu0 0.0
  %253 = vmatpush1.xpose.msra.mxu0 0.0
  %254 = vmatprep.subr.mxu0 0.0
  %255 = vmatpush1.xpose.msra.mxu0 0.0
  %256 = vmatprep.subr.mxu0 0.0
  %257 = vmatpush1.xpose.msra.mxu0 0.0
  %258 = vmatprep.subr.mxu0 0.0
  %259 = vmatpush1.xpose.msra.mxu0 0.0
  %260 = vmatprep.subr.mxu0 0.0
  %261 = vmatpush1.xpose.msra.mxu0 0.0
  %262 = vmatprep.subr.mxu0 0.0
  %263 = vmatpush1.xpose.msra.mxu0 0.0
  %264 = vmatprep.subr.mxu0 0.0
  %265 = vmatpush1.xpose.msra.mxu0 0.0
  %266 = vmatprep.subr.mxu0 0.0
  %267 = vmatpush1.xpose.msra.mxu0 0.0
  %268 = vmatprep.subr.mxu0 0.0
  %269 = vmatpush1.xpose.msra.mxu0 0.0
  %270 = vmatprep.subr.mxu0 0.0
  %271 = vmatpush1.xpose.msra.mxu0 0.0
  %272 = vmatprep.subr.mxu0 0.0
  %273 = vmatpush1.xpose.msra.mxu0 0.0
  %274 = vmatprep.mubr.f32.mxu0 0.0
  %275 = vmatmul.mubr.f32.gmra.mrb[0].mxu0 %v206
  %v276 = vpop.f32.mrb[0].mxu0
  %v277 = vadd.f32 0.0, %v276
  %v278 = vpop.f32.mrb[0].mxu0
  %279 = vdwg.mxu0
  %v280 = vmul.f32 %v277, 0.25
  %v281 = vlaneseq
  %v282 = vshrl.u32 %v281, 7
  %v283 = vsub.s32 0, %v282
  %v284 = vrot.slane %v109, %v283
  %v285 = vadd.f32 %v280, %v284
  %vm286 = vcmask 64512
  %v287 = vsel %vm286, %v285, -inf
  %288 = vmax.xlane.f32.xlu0 %v287
  %v289 = vpop.xlane.xlu0 %288
  %v290 = vsub.f32 %v285, %v289
  %v291 = vmul.f32 %v290, 1.442695
  %v292 = vpow.pop %v291
  %v293 = vsel %vm286, %v292, 0.0
  %294 = vadd.xlane.f32.xlu0 %v293
  %v295 = vpop.xlane.xlu0 %294
  %v296 = vrcp.pop %v295
  %v297 = vmul.f32 %v292, %v296
  %298 = vrot.lane.b32.xlu0 %v194, 64
  %v299 = vpop.permute.xlu0 %298
  %v302 = vsel %vm286, %v297, 0
  %304 = vmatprep.subr.mxu0 0.0
  %305 = vmatpush1.msra.mxu0 %v299
  %306 = vmatprep.subr.mxu0 0.0
  %307 = vmatpush1.msra.mxu0 0.0
  %308 = vmatprep.subr.mxu0 0.0
  %309 = vmatpush1.msra.mxu0 0.0
  %310 = vmatprep.subr.mxu0 0.0
  %311 = vmatpush1.msra.mxu0 0.0
  %312 = vmatprep.subr.mxu0 0.0
  %313 = vmatpush1.msra.mxu0 0.0
  %314 = vmatprep.subr.mxu0 0.0
  %315 = vmatpush1.msra.mxu0 0.0
  %316 = vmatprep.subr.mxu0 0.0
  %317 = vmatpush1.msra.mxu0 0.0
  %318 = vmatprep.subr.mxu0 0.0
  %319 = vmatpush1.msra.mxu0 0.0
  %320 = vmatprep.subr.mxu0 0.0
  %321 = vmatpush1.msra.mxu0 0.0
  %322 = vmatprep.subr.mxu0 0.0
  %323 = vmatpush1.msra.mxu0 0.0
  %324 = vmatprep.subr.mxu0 0.0
  %325 = vmatpush1.msra.mxu0 0.0
  %326 = vmatprep.subr.mxu0 0.0
  %327 = vmatpush1.msra.mxu0 0.0
  %328 = vmatprep.subr.mxu0 0.0
  %329 = vmatpush1.msra.mxu0 0.0
  %330 = vmatprep.subr.mxu0 0.0
  %331 = vmatpush1.msra.mxu0 0.0
  %332 = vmatprep.subr.mxu0 0.0
  %333 = vmatpush1.msra.mxu0 0.0
  %334 = vmatprep.subr.mxu0 0.0
  %335 = vmatpush1.msra.mxu0 0.0
  %336 = vmatprep.subr.mxu0 0.0
  %337 = vmatpush1.msra.mxu0 0.0
  %338 = vmatprep.subr.mxu0 0.0
  %339 = vmatpush1.msra.mxu0 0.0
  %340 = vmatprep.subr.mxu0 0.0
  %341 = vmatpush1.msra.mxu0 0.0
  %342 = vmatprep.subr.mxu0 0.0
  %343 = vmatpush1.msra.mxu0 0.0
  %344 = vmatprep.subr.mxu0 0.0
  %345 = vmatpush1.msra.mxu0 0.0
  %346 = vmatprep.subr.mxu0 0.0
  %347 = vmatpush1.msra.mxu0 0.0
  %348 = vmatprep.subr.mxu0 0.0
  %349 = vmatpush1.msra.mxu0 0.0
  %350 = vmatprep.subr.mxu0 0.0
  %351 = vmatpush1.msra.mxu0 0.0
  %352 = vmatprep.subr.mxu0 0.0
  %353 = vmatpush1.msra.mxu0 0.0
  %354 = vmatprep.subr.mxu0 0.0
  %355 = vmatpush1.msra.mxu0 0.0
  %356 = vmatprep.subr.mxu0 0.0
  %357 = vmatpush1.msra.mxu0 0.0
  %358 = vmatprep.subr.mxu0 0.0
  %359 = vmatpush1.msra.mxu0 0.0
  %360 = vmatprep.subr.mxu0 0.0
  %361 = vmatpush1.msra.mxu0 0.0
  %362 = vmatprep.subr.mxu0 0.0
  %363 = vmatpush1.msra.mxu0 0.0
  %364 = vmatprep.subr.mxu0 0.0
  %365 = vmatpush1.msra.mxu0 0.0
  %366 = vmatprep.subr.mxu0 0.0
  %367 = vmatpush1.msra.mxu0 0.0
  %368 = vmatprep.mubr.f32.mxu0 0.0
  %369 = vmatmul.mubr.f32.gmra.mrb[0].mxu0 %v302
  %v370 = vpop.f32.mrb[0].mxu0
  %v371 = vadd.f32 0.0, %v370
  %v372 = vpop.f32.mrb[0].mxu0
  %373 = vdwg.mxu0
  %374 = vrot.lane.b32.xlu0 %v194, 112
  %v375 = vpop.permute.xlu0 %374
  %376 = vrot.lane.b32.xlu0 %v194, 80
  %v377 = vpop.permute.xlu0 %376
  %v378 = vsel %vm205, %v375, 0
  %v380 = vsel %vm205, %v377, 0
  %382 = vmatprep.subr.mxu0 0.0
  %383 = vmatpush1.xpose.msra.mxu0 %v380
  %384 = vmatprep.subr.mxu0 0.0
  %385 = vmatpush1.xpose.msra.mxu0 0.0
  %386 = vmatprep.subr.mxu0 0.0
  %387 = vmatpush1.xpose.msra.mxu0 0.0
  %388 = vmatprep.subr.mxu0 0.0
  %389 = vmatpush1.xpose.msra.mxu0 0.0
  %390 = vmatprep.subr.mxu0 0.0
  %391 = vmatpush1.xpose.msra.mxu0 0.0
  %392 = vmatprep.subr.mxu0 0.0
  %393 = vmatpush1.xpose.msra.mxu0 0.0
  %394 = vmatprep.subr.mxu0 0.0
  %395 = vmatpush1.xpose.msra.mxu0 0.0
  %396 = vmatprep.subr.mxu0 0.0
  %397 = vmatpush1.xpose.msra.mxu0 0.0
  %398 = vmatprep.subr.mxu0 0.0
  %399 = vmatpush1.xpose.msra.mxu0 0.0
  %400 = vmatprep.subr.mxu0 0.0
  %401 = vmatpush1.xpose.msra.mxu0 0.0
  %402 = vmatprep.subr.mxu0 0.0
  %403 = vmatpush1.xpose.msra.mxu0 0.0
  %404 = vmatprep.subr.mxu0 0.0
  %405 = vmatpush1.xpose.msra.mxu0 0.0
  %406 = vmatprep.subr.mxu0 0.0
  %407 = vmatpush1.xpose.msra.mxu0 0.0
  %408 = vmatprep.subr.mxu0 0.0
  %409 = vmatpush1.xpose.msra.mxu0 0.0
  %410 = vmatprep.subr.mxu0 0.0
  %411 = vmatpush1.xpose.msra.mxu0 0.0
  %412 = vmatprep.subr.mxu0 0.0
  %413 = vmatpush1.xpose.msra.mxu0 0.0
  %414 = vmatprep.subr.mxu0 0.0
  %415 = vmatpush1.xpose.msra.mxu0 0.0
  %416 = vmatprep.subr.mxu0 0.0
  %417 = vmatpush1.xpose.msra.mxu0 0.0
  %418 = vmatprep.subr.mxu0 0.0
  %419 = vmatpush1.xpose.msra.mxu0 0.0
  %420 = vmatprep.subr.mxu0 0.0
  %421 = vmatpush1.xpose.msra.mxu0 0.0
  %422 = vmatprep.subr.mxu0 0.0
  %423 = vmatpush1.xpose.msra.mxu0 0.0
  %424 = vmatprep.subr.mxu0 0.0
  %425 = vmatpush1.xpose.msra.mxu0 0.0
  %426 = vmatprep.subr.mxu0 0.0
  %427 = vmatpush1.xpose.msra.mxu0 0.0
  %428 = vmatprep.subr.mxu0 0.0
  %429 = vmatpush1.xpose.msra.mxu0 0.0
  %430 = vmatprep.subr.mxu0 0.0
  %431 = vmatpush1.xpose.msra.mxu0 0.0
  %432 = vmatprep.subr.mxu0 0.0
  %433 = vmatpush1.xpose.msra.mxu0 0.0
  %434 = vmatprep.subr.mxu0 0.0
  %435 = vmatpush1.xpose.msra.mxu0 0.0
  %436 = vmatprep.subr.mxu0 0.0
  %437 = vmatpush1.xpose.msra.mxu0 0.0
  %438 = vmatprep.subr.mxu0 0.0
  %439 = vmatpush1.xpose.msra.mxu0 0.0
  %440 = vmatprep.subr.mxu0 0.0
  %441 = vmatpush1.xpose.msra.mxu0 0.0
  %442 = vmatprep.subr.mxu0 0.0
  %443 = vmatpush1.xpose.msra.mxu0 0.0
  %444 = vmatprep.subr.mxu0 0.0
  %445 = vmatpush1.xpose.msra.mxu0 0.0
  %446 = vmatprep.mubr.f32.mxu0 0.0
  %447 = vmatmul.mubr.f32.gmra.mrb[0].mxu0 %v378
  %v448 = vpop.f32.mrb[0].mxu0
  %v449 = vadd.f32 0.0, %v448
  %v450 = vpop.f32.mrb[0].mxu0
  %451 = vdwg.mxu0
  %v452 = vmul.f32 %v449, 0.25
  %v453 = vadd.f32 %v452, %v284
  %v454 = vsel %vm286, %v453, -inf
  %455 = vmax.xlane.f32.xlu0 %v454
  %v456 = vpop.xlane.xlu0 %455
  %v457 = vsub.f32 %v453, %v456
  %v458 = vmul.f32 %v457, 1.442695
  %v459 = vpow.pop %v458
  %v460 = vsel %vm286, %v459, 0.0
  %461 = vadd.xlane.f32.xlu0 %v460
  %v462 = vpop.xlane.xlu0 %461
  %v463 = vrcp.pop %v462
  %v464 = vmul.f32 %v459, %v463
  %465 = vrot.lane.b32.xlu0 %v194, 48
  %v466 = vpop.permute.xlu0 %465
  %v469 = vsel %vm286, %v464, 0
  %471 = vmatprep.subr.mxu0 0.0
  %472 = vmatpush1.msra.mxu0 %v466
  %473 = vmatprep.subr.mxu0 0.0
  %474 = vmatpush1.msra.mxu0 0.0
  %475 = vmatprep.subr.mxu0 0.0
  %476 = vmatpush1.msra.mxu0 0.0
  %477 = vmatprep.subr.mxu0 0.0
  %478 = vmatpush1.msra.mxu0 0.0
  %479 = vmatprep.subr.mxu0 0.0
  %480 = vmatpush1.msra.mxu0 0.0
  %481 = vmatprep.subr.mxu0 0.0
  %482 = vmatpush1.msra.mxu0 0.0
  %483 = vmatprep.subr.mxu0 0.0
  %484 = vmatpush1.msra.mxu0 0.0
  %485 = vmatprep.subr.mxu0 0.0
  %486 = vmatpush1.msra.mxu0 0.0
  %487 = vmatprep.subr.mxu0 0.0
  %488 = vmatpush1.msra.mxu0 0.0
  %489 = vmatprep.subr.mxu0 0.0
  %490 = vmatpush1.msra.mxu0 0.0
  %491 = vmatprep.subr.mxu0 0.0
  %492 = vmatpush1.msra.mxu0 0.0
  %493 = vmatprep.subr.mxu0 0.0
  %494 = vmatpush1.msra.mxu0 0.0
  %495 = vmatprep.subr.mxu0 0.0
  %496 = vmatpush1.msra.mxu0 0.0
  %497 = vmatprep.subr.mxu0 0.0
  %498 = vmatpush1.msra.mxu0 0.0
  %499 = vmatprep.subr.mxu0 0.0
  %500 = vmatpush1.msra.mxu0 0.0
  %501 = vmatprep.subr.mxu0 0.0
  %502 = vmatpush1.msra.mxu0 0.0
  %503 = vmatprep.subr.mxu0 0.0
  %504 = vmatpush1.msra.mxu0 0.0
  %505 = vmatprep.subr.mxu0 0.0
  %506 = vmatpush1.msra.mxu0 0.0
  %507 = vmatprep.subr.mxu0 0.0
  %508 = vmatpush1.msra.mxu0 0.0
  %509 = vmatprep.subr.mxu0 0.0
  %510 = vmatpush1.msra.mxu0 0.0
  %511 = vmatprep.subr.mxu0 0.0
  %512 = vmatpush1.msra.mxu0 0.0
  %513 = vmatprep.subr.mxu0 0.0
  %514 = vmatpush1.msra.mxu0 0.0
  %515 = vmatprep.subr.mxu0 0.0
  %516 = vmatpush1.msra.mxu0 0.0
  %517 = vmatprep.subr.mxu0 0.0
  %518 = vmatpush1.msra.mxu0 0.0
  %519 = vmatprep.subr.mxu0 0.0
  %520 = vmatpush1.msra.mxu0 0.0
  %521 = vmatprep.subr.mxu0 0.0
  %522 = vmatpush1.msra.mxu0 0.0
  %523 = vmatprep.subr.mxu0 0.0
  %524 = vmatpush1.msra.mxu0 0.0
  %525 = vmatprep.subr.mxu0 0.0
  %526 = vmatpush1.msra.mxu0 0.0
  %527 = vmatprep.subr.mxu0 0.0
  %528 = vmatpush1.msra.mxu0 0.0
  %529 = vmatprep.subr.mxu0 0.0
  %530 = vmatpush1.msra.mxu0 0.0
  %531 = vmatprep.subr.mxu0 0.0
  %532 = vmatpush1.msra.mxu0 0.0
  %533 = vmatprep.subr.mxu0 0.0
  %534 = vmatpush1.msra.mxu0 0.0
  %535 = vmatprep.mubr.f32.mxu0 0.0
  %536 = vmatmul.mubr.f32.gmra.mrb[0].mxu0 %v469
  %v537 = vpop.f32.mrb[0].mxu0
  %v538 = vadd.f32 0.0, %v537
  %v539 = vpop.f32.mrb[0].mxu0
  %540 = vdwg.mxu0
  %542 = vrot.lane.b32.xlu0 %v538, 16
  %v543 = vpop.permute.xlu0 %542
  %v545 = vsel %vm205, %v371, %v543
  %547 = vrot.lane.b32.xlu0 %v199, 96
  %v548 = vpop.permute.xlu0 %547
  %v549 = vsel %vm205, %v199, 0
  %v551 = vsel %vm205, %v548, 0
  %553 = vmatprep.subr.mxu0 0.0
  %554 = vmatpush1.xpose.msra.mxu0 %v551
  %555 = vmatprep.subr.mxu0 0.0
  %556 = vmatpush1.xpose.msra.mxu0 0.0
  %557 = vmatprep.subr.mxu0 0.0
  %558 = vmatpush1.xpose.msra.mxu0 0.0
  %559 = vmatprep.subr.mxu0 0.0
  %560 = vmatpush1.xpose.msra.mxu0 0.0
  %561 = vmatprep.subr.mxu0 0.0
  %562 = vmatpush1.xpose.msra.mxu0 0.0
  %563 = vmatprep.subr.mxu0 0.0
  %564 = vmatpush1.xpose.msra.mxu0 0.0
  %565 = vmatprep.subr.mxu0 0.0
  %566 = vmatpush1.xpose.msra.mxu0 0.0
  %567 = vmatprep.subr.mxu0 0.0
  %568 = vmatpush1.xpose.msra.mxu0 0.0
  %569 = vmatprep.subr.mxu0 0.0
  %570 = vmatpush1.xpose.msra.mxu0 0.0
  %571 = vmatprep.subr.mxu0 0.0
  %572 = vmatpush1.xpose.msra.mxu0 0.0
  %573 = vmatprep.subr.mxu0 0.0
  %574 = vmatpush1.xpose.msra.mxu0 0.0
  %575 = vmatprep.subr.mxu0 0.0
  %576 = vmatpush1.xpose.msra.mxu0 0.0
  %577 = vmatprep.subr.mxu0 0.0
  %578 = vmatpush1.xpose.msra.mxu0 0.0
  %579 = vmatprep.subr.mxu0 0.0
  %580 = vmatpush1.xpose.msra.mxu0 0.0
  %581 = vmatprep.subr.mxu0 0.0
  %582 = vmatpush1.xpose.msra.mxu0 0.0
  %583 = vmatprep.subr.mxu0 0.0
  %584 = vmatpush1.xpose.msra.mxu0 0.0
  %585 = vmatprep.subr.mxu0 0.0
  %586 = vmatpush1.xpose.msra.mxu0 0.0
  %587 = vmatprep.subr.mxu0 0.0
  %588 = vmatpush1.xpose.msra.mxu0 0.0
  %589 = vmatprep.subr.mxu0 0.0
  %590 = vmatpush1.xpose.msra.mxu0 0.0
  %591 = vmatprep.subr.mxu0 0.0
  %592 = vmatpush1.xpose.msra.mxu0 0.0
  %593 = vmatprep.subr.mxu0 0.0
  %594 = vmatpush1.xpose.msra.mxu0 0.0
  %595 = vmatprep.subr.mxu0 0.0
  %596 = vmatpush1.xpose.msra.mxu0 0.0
  %597 = vmatprep.subr.mxu0 0.0
  %598 = vmatpush1.xpose.msra.mxu0 0.0
  %599 = vmatprep.subr.mxu0 0.0
  %600 = vmatpush1.xpose.msra.mxu0 0.0
  %601 = vmatprep.subr.mxu0 0.0
  %602 = vmatpush1.xpose.msra.mxu0 0.0
  %603 = vmatprep.subr.mxu0 0.0
  %604 = vmatpush1.xpose.msra.mxu0 0.0
  %605 = vmatprep.subr.mxu0 0.0
  %606 = vmatpush1.xpose.msra.mxu0 0.0
  %607 = vmatprep.subr.mxu0 0.0
  %608 = vmatpush1.xpose.msra.mxu0 0.0
  %609 = vmatprep.subr.mxu0 0.0
  %610 = vmatpush1.xpose.msra.mxu0 0.0
  %611 = vmatprep.subr.mxu0 0.0
  %612 = vmatpush1.xpose.msra.mxu0 0.0
  %613 = vmatprep.subr.mxu0 0.0
  %614 = vmatpush1.xpose.msra.mxu0 0.0
  %615 = vmatprep.subr.mxu0 0.0
  %616 = vmatpush1.xpose.msra.mxu0 0.0
  %617 = vmatprep.mubr.f32.mxu0 0.0
  %618 = vmatmul.mubr.f32.gmra.mrb[0].mxu0 %v549
  %v619 = vpop.f32.mrb[0].mxu0
  %v620 = vadd.f32 0.0, %v619
  %v621 = vpop.f32.mrb[0].mxu0
  %622 = vdwg.mxu0
  %v623 = vmul.f32 %v620, 0.25
  %v624 = vlaneseq
  %v625 = vshrl.u32 %v624, 7
  %v626 = vsub.s32 1, %v625
  %v627 = vrot.slane %v109, %v626
  %v628 = vadd.f32 %v623, %v627
  %v629 = vsel %vm286, %v628, -inf
  %630 = vmax.xlane.f32.xlu0 %v629
  %v631 = vpop.xlane.xlu0 %630
  %v632 = vsub.f32 %v628, %v631
  %v633 = vmul.f32 %v632, 1.442695
  %v634 = vpow.pop %v633
  %v635 = vsel %vm286, %v634, 0.0
  %636 = vadd.xlane.f32.xlu0 %v635
  %v637 = vpop.xlane.xlu0 %636
  %v638 = vrcp.pop %v637
  %v639 = vmul.f32 %v634, %v638
  %640 = vrot.lane.b32.xlu0 %v199, 64
  %v641 = vpop.permute.xlu0 %640
  %v644 = vsel %vm286, %v639, 0
  %646 = vmatprep.subr.mxu0 0.0
  %647 = vmatpush1.msra.mxu0 %v641
  %648 = vmatprep.subr.mxu0 0.0
  %649 = vmatpush1.msra.mxu0 0.0
  %650 = vmatprep.subr.mxu0 0.0
  %651 = vmatpush1.msra.mxu0 0.0
  %652 = vmatprep.subr.mxu0 0.0
  %653 = vmatpush1.msra.mxu0 0.0
  %654 = vmatprep.subr.mxu0 0.0
  %655 = vmatpush1.msra.mxu0 0.0
  %656 = vmatprep.subr.mxu0 0.0
  %657 = vmatpush1.msra.mxu0 0.0
  %658 = vmatprep.subr.mxu0 0.0
  %659 = vmatpush1.msra.mxu0 0.0
  %660 = vmatprep.subr.mxu0 0.0
  %661 = vmatpush1.msra.mxu0 0.0
  %662 = vmatprep.subr.mxu0 0.0
  %663 = vmatpush1.msra.mxu0 0.0
  %664 = vmatprep.subr.mxu0 0.0
  %665 = vmatpush1.msra.mxu0 0.0
  %666 = vmatprep.subr.mxu0 0.0
  %667 = vmatpush1.msra.mxu0 0.0
  %668 = vmatprep.subr.mxu0 0.0
  %669 = vmatpush1.msra.mxu0 0.0
  %670 = vmatprep.subr.mxu0 0.0
  %671 = vmatpush1.msra.mxu0 0.0
  %672 = vmatprep.subr.mxu0 0.0
  %673 = vmatpush1.msra.mxu0 0.0
  %674 = vmatprep.subr.mxu0 0.0
  %675 = vmatpush1.msra.mxu0 0.0
  %676 = vmatprep.subr.mxu0 0.0
  %677 = vmatpush1.msra.mxu0 0.0
  %678 = vmatprep.subr.mxu0 0.0
  %679 = vmatpush1.msra.mxu0 0.0
  %680 = vmatprep.subr.mxu0 0.0
  %681 = vmatpush1.msra.mxu0 0.0
  %682 = vmatprep.subr.mxu0 0.0
  %683 = vmatpush1.msra.mxu0 0.0
  %684 = vmatprep.subr.mxu0 0.0
  %685 = vmatpush1.msra.mxu0 0.0
  %686 = vmatprep.subr.mxu0 0.0
  %687 = vmatpush1.msra.mxu0 0.0
  %688 = vmatprep.subr.mxu0 0.0
  %689 = vmatpush1.msra.mxu0 0.0
  %690 = vmatprep.subr.mxu0 0.0
  %691 = vmatpush1.msra.mxu0 0.0
  %692 = vmatprep.subr.mxu0 0.0
  %693 = vmatpush1.msra.mxu0 0.0
  %694 = vmatprep.subr.mxu0 0.0
  %695 = vmatpush1.msra.mxu0 0.0
  %696 = vmatprep.subr.mxu0 0.0
  %697 = vmatpush1.msra.mxu0 0.0
  %698 = vmatprep.subr.mxu0 0.0
  %699 = vmatpush1.msra.mxu0 0.0
  %700 = vmatprep.subr.mxu0 0.0
  %701 = vmatpush1.msra.mxu0 0.0
  %702 = vmatprep.subr.mxu0 0.0
  %703 = vmatpush1.msra.mxu0 0.0
  %704 = vmatprep.subr.mxu0 0.0
  %705 = vmatpush1.msra.mxu0 0.0
  %706 = vmatprep.subr.mxu0 0.0
  %707 = vmatpush1.msra.mxu0 0.0
  %708 = vmatprep.subr.mxu0 0.0
  %709 = vmatpush1.msra.mxu0 0.0
  %710 = vmatprep.mubr.f32.mxu0 0.0
  %711 = vmatmul.mubr.f32.gmra.mrb[0].mxu0 %v644
  %v712 = vpop.f32.mrb[0].mxu0
  %v713 = vadd.f32 0.0, %v712
  %v714 = vpop.f32.mrb[0].mxu0
  %715 = vdwg.mxu0
  %716 = vrot.lane.b32.xlu0 %v199, 112
  %v717 = vpop.permute.xlu0 %716
  %718 = vrot.lane.b32.xlu0 %v199, 80
  %v719 = vpop.permute.xlu0 %718
  %v720 = vsel %vm205, %v717, 0
  %v722 = vsel %vm205, %v719, 0
  %724 = vmatprep.subr.mxu0 0.0
  %725 = vmatpush1.xpose.msra.mxu0 %v722
  %726 = vmatprep.subr.mxu0 0.0
  %727 = vmatpush1.xpose.msra.mxu0 0.0
  %728 = vmatprep.subr.mxu0 0.0
  %729 = vmatpush1.xpose.msra.mxu0 0.0
  %730 = vmatprep.subr.mxu0 0.0
  %731 = vmatpush1.xpose.msra.mxu0 0.0
  %732 = vmatprep.subr.mxu0 0.0
  %733 = vmatpush1.xpose.msra.mxu0 0.0
  %734 = vmatprep.subr.mxu0 0.0
  %735 = vmatpush1.xpose.msra.mxu0 0.0
  %736 = vmatprep.subr.mxu0 0.0
  %737 = vmatpush1.xpose.msra.mxu0 0.0
  %738 = vmatprep.subr.mxu0 0.0
  %739 = vmatpush1.xpose.msra.mxu0 0.0
  %740 = vmatprep.subr.mxu0 0.0
  %741 = vmatpush1.xpose.msra.mxu0 0.0
  %742 = vmatprep.subr.mxu0 0.0
  %743 = vmatpush1.xpose.msra.mxu0 0.0
  %744 = vmatprep.subr.mxu0 0.0
  %745 = vmatpush1.xpose.msra.mxu0 0.0
  %746 = vmatprep.subr.mxu0 0.0
  %747 = vmatpush1.xpose.msra.mxu0 0.0
  %748 = vmatprep.subr.mxu0 0.0
  %749 = vmatpush1.xpose.msra.mxu0 0.0
  %750 = vmatprep.subr.mxu0 0.0
  %751 = vmatpush1.xpose.msra.mxu0 0.0
  %752 = vmatprep.subr.mxu0 0.0
  %753 = vmatpush1.xpose.msra.mxu0 0.0
  %754 = vmatprep.subr.mxu0 0.0
  %755 = vmatpush1.xpose.msra.mxu0 0.0
  %756 = vmatprep.subr.mxu0 0.0
  %757 = vmatpush1.xpose.msra.mxu0 0.0
  %758 = vmatprep.subr.mxu0 0.0
  %759 = vmatpush1.xpose.msra.mxu0 0.0
  %760 = vmatprep.subr.mxu0 0.0
  %761 = vmatpush1.xpose.msra.mxu0 0.0
  %762 = vmatprep.subr.mxu0 0.0
  %763 = vmatpush1.xpose.msra.mxu0 0.0
  %764 = vmatprep.subr.mxu0 0.0
  %765 = vmatpush1.xpose.msra.mxu0 0.0
  %766 = vmatprep.subr.mxu0 0.0
  %767 = vmatpush1.xpose.msra.mxu0 0.0
  %768 = vmatprep.subr.mxu0 0.0
  %769 = vmatpush1.xpose.msra.mxu0 0.0
  %770 = vmatprep.subr.mxu0 0.0
  %771 = vmatpush1.xpose.msra.mxu0 0.0
  %772 = vmatprep.subr.mxu0 0.0
  %773 = vmatpush1.xpose.msra.mxu0 0.0
  %774 = vmatprep.subr.mxu0 0.0
  %775 = vmatpush1.xpose.msra.mxu0 0.0
  %776 = vmatprep.subr.mxu0 0.0
  %777 = vmatpush1.xpose.msra.mxu0 0.0
  %778 = vmatprep.subr.mxu0 0.0
  %779 = vmatpush1.xpose.msra.mxu0 0.0
  %780 = vmatprep.subr.mxu0 0.0
  %781 = vmatpush1.xpose.msra.mxu0 0.0
  %782 = vmatprep.subr.mxu0 0.0
  %783 = vmatpush1.xpose.msra.mxu0 0.0
  %784 = vmatprep.subr.mxu0 0.0
  %785 = vmatpush1.xpose.msra.mxu0 0.0
  %786 = vmatprep.subr.mxu0 0.0
  %787 = vmatpush1.xpose.msra.mxu0 0.0
  %788 = vmatprep.mubr.f32.mxu0 0.0
  %789 = vmatmul.mubr.f32.gmra.mrb[0].mxu0 %v720
  %v790 = vpop.f32.mrb[0].mxu0
  %v791 = vadd.f32 0.0, %v790
  %v792 = vpop.f32.mrb[0].mxu0
  %793 = vdwg.mxu0
  %v794 = vmul.f32 %v791, 0.25
  %v795 = vadd.f32 %v794, %v627
  %v796 = vsel %vm286, %v795, -inf
  %797 = vmax.xlane.f32.xlu0 %v796
  %v798 = vpop.xlane.xlu0 %797
  %v799 = vsub.f32 %v795, %v798
  %v800 = vmul.f32 %v799, 1.442695
  %v801 = vpow.pop %v800
  %v802 = vsel %vm286, %v801, 0.0
  %803 = vadd.xlane.f32.xlu0 %v802
  %v804 = vpop.xlane.xlu0 %803
  %v805 = vrcp.pop %v804
  %v806 = vmul.f32 %v801, %v805
  %807 = vrot.lane.b32.xlu0 %v199, 48
  %v808 = vpop.permute.xlu0 %807
  %v811 = vsel %vm286, %v806, 0
  %813 = vmatprep.subr.mxu0 0.0
  %814 = vmatpush1.msra.mxu0 %v808
  %815 = vmatprep.subr.mxu0 0.0
  %816 = vmatpush1.msra.mxu0 0.0
  %817 = vmatprep.subr.mxu0 0.0
  %818 = vmatpush1.msra.mxu0 0.0
  %819 = vmatprep.subr.mxu0 0.0
  %820 = vmatpush1.msra.mxu0 0.0
  %821 = vmatprep.subr.mxu0 0.0
  %822 = vmatpush1.msra.mxu0 0.0
  %823 = vmatprep.subr.mxu0 0.0
  %824 = vmatpush1.msra.mxu0 0.0
  %825 = vmatprep.subr.mxu0 0.0
  %826 = vmatpush1.msra.mxu0 0.0
  %827 = vmatprep.subr.mxu0 0.0
  %828 = vmatpush1.msra.mxu0 0.0
  %829 = vmatprep.subr.mxu0 0.0
  %830 = vmatpush1.msra.mxu0 0.0
  %831 = vmatprep.subr.mxu0 0.0
  %832 = vmatpush1.msra.mxu0 0.0
  %833 = vmatprep.subr.mxu0 0.0
  %834 = vmatpush1.msra.mxu0 0.0
  %835 = vmatprep.subr.mxu0 0.0
  %836 = vmatpush1.msra.mxu0 0.0
  %837 = vmatprep.subr.mxu0 0.0
  %838 = vmatpush1.msra.mxu0 0.0
  %839 = vmatprep.subr.mxu0 0.0
  %840 = vmatpush1.msra.mxu0 0.0
  %841 = vmatprep.subr.mxu0 0.0
  %842 = vmatpush1.msra.mxu0 0.0
  %843 = vmatprep.subr.mxu0 0.0
  %844 = vmatpush1.msra.mxu0 0.0
  %845 = vmatprep.subr.mxu0 0.0
  %846 = vmatpush1.msra.mxu0 0.0
  %847 = vmatprep.subr.mxu0 0.0
  %848 = vmatpush1.msra.mxu0 0.0
  %849 = vmatprep.subr.mxu0 0.0
  %850 = vmatpush1.msra.mxu0 0.0
  %851 = vmatprep.subr.mxu0 0.0
  %852 = vmatpush1.msra.mxu0 0.0
  %853 = vmatprep.subr.mxu0 0.0
  %854 = vmatpush1.msra.mxu0 0.0
  %855 = vmatprep.subr.mxu0 0.0
  %856 = vmatpush1.msra.mxu0 0.0
  %857 = vmatprep.subr.mxu0 0.0
  %858 = vmatpush1.msra.mxu0 0.0
  %859 = vmatprep.subr.mxu0 0.0
  %860 = vmatpush1.msra.mxu0 0.0
  %861 = vmatprep.subr.mxu0 0.0
  %862 = vmatpush1.msra.mxu0 0.0
  %863 = vmatprep.subr.mxu0 0.0
  %864 = vmatpush1.msra.mxu0 0.0
  %865 = vmatprep.subr.mxu0 0.0
  %866 = vmatpush1.msra.mxu0 0.0
  %867 = vmatprep.subr.mxu0 0.0
  %868 = vmatpush1.msra.mxu0 0.0
  %869 = vmatprep.subr.mxu0 0.0
  %870 = vmatpush1.msra.mxu0 0.0
  %871 = vmatprep.subr.mxu0 0.0
  %872 = vmatpush1.msra.mxu0 0.0
  %873 = vmatprep.subr.mxu0 0.0
  %874 = vmatpush1.msra.mxu0 0.0
  %875 = vmatprep.subr.mxu0 0.0
  %876 = vmatpush1.msra.mxu0 0.0
  %877 = vmatprep.mubr.f32.mxu0 0.0
  %878 = vmatmul.mubr.f32.gmra.mrb[0].mxu0 %v811
  %v879 = vpop.f32.mrb[0].mxu0
  %v880 = vadd.f32 0.0, %v879
  %v881 = vpop.f32.mrb[0].mxu0
  %882 = vdwg.mxu0
  %884 = vrot.lane.b32.xlu0 %v880, 16
  %v885 = vpop.permute.xlu0 %884
  %v887 = vsel %vm205, %v713, %v885
  %v888 = vld [vmem:[%s6] sm:$0xff]
  %v889 = vld [vmem:[%s6 + $0x8] sm:$0xff]
  %v890 = vld [vmem:[%s6 + $0x10] sm:$0xff]
  %v891 = vld [vmem:[%s6 + $0x18] sm:$0xff]
  %v892 = vld [vmem:[%s7] sm:$0x1]
  %v894 = vlaneseq
  %v895 = vshrl.u32 %v894, 7
  %v896 = vsub.s32 0, %v895
  %v897 = vrot.slane %v892, %v896
  %v900 = vsel %vm63, %v545, 0
  %v903 = vsel %vm63, %v887, 0
  %905 = vmatprep.subr.mxu0 0.0
  %906 = vmatpush1.msra.mxu0 %v888
  %907 = vmatprep.subr.mxu0 0.0
  %908 = vmatpush1.msra.mxu0 %v889
  %909 = vmatprep.subr.mxu0 0.0
  %910 = vmatpush1.msra.mxu0 %v890
  %911 = vmatprep.subr.mxu0 0.0
  %912 = vmatpush1.msra.mxu0 %v891
  %913 = vmatprep.subr.mxu0 0.0
  %914 = vmatpush1.msra.mxu0 0.0
  %915 = vmatprep.subr.mxu0 0.0
  %916 = vmatpush1.msra.mxu0 0.0
  %917 = vmatprep.subr.mxu0 0.0
  %918 = vmatpush1.msra.mxu0 0.0
  %919 = vmatprep.subr.mxu0 0.0
  %920 = vmatpush1.msra.mxu0 0.0
  %921 = vmatprep.subr.mxu0 0.0
  %922 = vmatpush1.msra.mxu0 0.0
  %923 = vmatprep.subr.mxu0 0.0
  %924 = vmatpush1.msra.mxu0 0.0
  %925 = vmatprep.subr.mxu0 0.0
  %926 = vmatpush1.msra.mxu0 0.0
  %927 = vmatprep.subr.mxu0 0.0
  %928 = vmatpush1.msra.mxu0 0.0
  %929 = vmatprep.subr.mxu0 0.0
  %930 = vmatpush1.msra.mxu0 0.0
  %931 = vmatprep.subr.mxu0 0.0
  %932 = vmatpush1.msra.mxu0 0.0
  %933 = vmatprep.subr.mxu0 0.0
  %934 = vmatpush1.msra.mxu0 0.0
  %935 = vmatprep.subr.mxu0 0.0
  %936 = vmatpush1.msra.mxu0 0.0
  %937 = vmatprep.subr.mxu0 0.0
  %938 = vmatpush1.msra.mxu0 0.0
  %939 = vmatprep.subr.mxu0 0.0
  %940 = vmatpush1.msra.mxu0 0.0
  %941 = vmatprep.subr.mxu0 0.0
  %942 = vmatpush1.msra.mxu0 0.0
  %943 = vmatprep.subr.mxu0 0.0
  %944 = vmatpush1.msra.mxu0 0.0
  %945 = vmatprep.subr.mxu0 0.0
  %946 = vmatpush1.msra.mxu0 0.0
  %947 = vmatprep.subr.mxu0 0.0
  %948 = vmatpush1.msra.mxu0 0.0
  %949 = vmatprep.subr.mxu0 0.0
  %950 = vmatpush1.msra.mxu0 0.0
  %951 = vmatprep.subr.mxu0 0.0
  %952 = vmatpush1.msra.mxu0 0.0
  %953 = vmatprep.subr.mxu0 0.0
  %954 = vmatpush1.msra.mxu0 0.0
  %955 = vmatprep.subr.mxu0 0.0
  %956 = vmatpush1.msra.mxu0 0.0
  %957 = vmatprep.subr.mxu0 0.0
  %958 = vmatpush1.msra.mxu0 0.0
  %959 = vmatprep.subr.mxu0 0.0
  %960 = vmatpush1.msra.mxu0 0.0
  %961 = vmatprep.subr.mxu0 0.0
  %962 = vmatpush1.msra.mxu0 0.0
  %963 = vmatprep.subr.mxu0 0.0
  %964 = vmatpush1.msra.mxu0 0.0
  %965 = vmatprep.subr.mxu0 0.0
  %966 = vmatpush1.msra.mxu0 0.0
  %967 = vmatprep.subr.mxu0 0.0
  %968 = vmatpush1.msra.mxu0 0.0
  %969 = vmatprep.mubr.f32.mxu0 0.0
  %970 = vmatmul.mubr.f32.gmra.mrb[0].mxu0 %v900
  %v971 = vpop.f32.mrb[0].mxu0
  %v972 = vadd.f32 %v897, %v971
  %v973 = vpop.f32.mrb[0].mxu0
  %974 = vmatprep.mubr.f32.mxu0 0.0
  %975 = vmatmul.mubr.f32.gmra.mrb[0].mxu0 %v903
  %v976 = vpop.f32.mrb[0].mxu0
  %v977 = vadd.f32 %v897, %v976
  %v978 = vpop.f32.mrb[0].mxu0
  %979 = vdwg.mxu0
  %v980 = vadd.f32 %v972, %v105
  %v981 = vadd.f32 %v977, %v106
  %v982 = vld [vmem:[%s12] sm:$0x1]
  %v983 = vld [vmem:[%s13] sm:$0x1]
  %v984 = vsel %vm63, %v980, 0.0
  %985 = vadd.xlane.f32.xlu0 %v984
  %v986 = vpop.xlane.xlu0 %985
  %v987 = vsel %vm63, %v981, 0.0
  %988 = vadd.xlane.f32.xlu0 %v987
  %v989 = vpop.xlane.xlu0 %988
  %v990 = vmul.f32 %v986, %v70
  %v991 = vmul.f32 %v989, %v70
  %v992 = vsub.f32 %v980, %v990
  %v993 = vsub.f32 %v981, %v991
  %v994 = vmul.f32 %v992, %v992
  %v995 = vmul.f32 %v993, %v993
  %v996 = vsel %vm63, %v994, 0.0
  %997 = vadd.xlane.f32.xlu0 %v996
  %v998 = vpop.xlane.xlu0 %997
  %v999 = vsel %vm63, %v995, 0.0
  %1000 = vadd.xlane.f32.xlu0 %v999
  %v1001 = vpop.xlane.xlu0 %1000
  %v1002 = vmul.f32 %v998, %v70
  %v1003 = vmul.f32 %v1001, %v70
  %v1004 = vadd.f32 %v1002, 1e-12
  %v1005 = vadd.f32 %v1003, 1e-12
  %v1006 = vrsqrt.pop %v1004
  %v1007 = vrsqrt.pop %v1005
  %v1008 = vmul.f32 %v992, %v1006
  %v1009 = vmul.f32 %v993, %v1007
  %v1011 = vlaneseq
  %v1012 = vshrl.u32 %v1011, 7
  %v1013 = vsub.s32 0, %v1012
  %v1014 = vrot.slane %v982, %v1013
  %v1016 = vmul.f32 %v1008, %v1014
  %v1017 = vmul.f32 %v1009, %v1014
  %v1019 = vlaneseq
  %v1020 = vshrl.u32 %v1019, 7
  %v1021 = vsub.s32 0, %v1020
  %v1022 = vrot.slane %v983, %v1021
  %v1024 = vadd.f32 %v1016, %v1022
  %v1025 = vadd.f32 %v1017, %v1022
  %v1026 = vld [vmem:[%s8] sm:$0xff]
  %v1027 = vld [vmem:[%s8 + $0x8] sm:$0xff]
  %v1028 = vld [vmem:[%s8 + $0x10] sm:$0xff]
  %v1029 = vld [vmem:[%s8 + $0x18] sm:$0xff]
  %v1030 = vld [vmem:[%s9] sm:$0x1]
  %v1032 = vlaneseq
  %v1033 = vshrl.u32 %v1032, 7
  %v1034 = vsub.s32 0, %v1033
  %v1035 = vrot.slane %v1030, %v1034
  %v1038 = vsel %vm63, %v1024, 0
  %v1041 = vsel %vm63, %v1025, 0
  %1043 = vmatprep.subr.mxu0 0.0
  %1044 = vmatpush1.msra.mxu0 %v1026
  %1045 = vmatprep.subr.mxu0 0.0
  %1046 = vmatpush1.msra.mxu0 %v1027
  %1047 = vmatprep.subr.mxu0 0.0
  %1048 = vmatpush1.msra.mxu0 %v1028
  %1049 = vmatprep.subr.mxu0 0.0
  %1050 = vmatpush1.msra.mxu0 %v1029
  %1051 = vmatprep.subr.mxu0 0.0
  %1052 = vmatpush1.msra.mxu0 0.0
  %1053 = vmatprep.subr.mxu0 0.0
  %1054 = vmatpush1.msra.mxu0 0.0
  %1055 = vmatprep.subr.mxu0 0.0
  %1056 = vmatpush1.msra.mxu0 0.0
  %1057 = vmatprep.subr.mxu0 0.0
  %1058 = vmatpush1.msra.mxu0 0.0
  %1059 = vmatprep.subr.mxu0 0.0
  %1060 = vmatpush1.msra.mxu0 0.0
  %1061 = vmatprep.subr.mxu0 0.0
  %1062 = vmatpush1.msra.mxu0 0.0
  %1063 = vmatprep.subr.mxu0 0.0
  %1064 = vmatpush1.msra.mxu0 0.0
  %1065 = vmatprep.subr.mxu0 0.0
  %1066 = vmatpush1.msra.mxu0 0.0
  %1067 = vmatprep.subr.mxu0 0.0
  %1068 = vmatpush1.msra.mxu0 0.0
  %1069 = vmatprep.subr.mxu0 0.0
  %1070 = vmatpush1.msra.mxu0 0.0
  %1071 = vmatprep.subr.mxu0 0.0
  %1072 = vmatpush1.msra.mxu0 0.0
  %1073 = vmatprep.subr.mxu0 0.0
  %1074 = vmatpush1.msra.mxu0 0.0
  %1075 = vmatprep.subr.mxu0 0.0
  %1076 = vmatpush1.msra.mxu0 0.0
  %1077 = vmatprep.subr.mxu0 0.0
  %1078 = vmatpush1.msra.mxu0 0.0
  %1079 = vmatprep.subr.mxu0 0.0
  %1080 = vmatpush1.msra.mxu0 0.0
  %1081 = vmatprep.subr.mxu0 0.0
  %1082 = vmatpush1.msra.mxu0 0.0
  %1083 = vmatprep.subr.mxu0 0.0
  %1084 = vmatpush1.msra.mxu0 0.0
  %1085 = vmatprep.subr.mxu0 0.0
  %1086 = vmatpush1.msra.mxu0 0.0
  %1087 = vmatprep.subr.mxu0 0.0
  %1088 = vmatpush1.msra.mxu0 0.0
  %1089 = vmatprep.subr.mxu0 0.0
  %1090 = vmatpush1.msra.mxu0 0.0
  %1091 = vmatprep.subr.mxu0 0.0
  %1092 = vmatpush1.msra.mxu0 0.0
  %1093 = vmatprep.subr.mxu0 0.0
  %1094 = vmatpush1.msra.mxu0 0.0
  %1095 = vmatprep.subr.mxu0 0.0
  %1096 = vmatpush1.msra.mxu0 0.0
  %1097 = vmatprep.subr.mxu0 0.0
  %1098 = vmatpush1.msra.mxu0 0.0
  %1099 = vmatprep.subr.mxu0 0.0
  %1100 = vmatpush1.msra.mxu0 0.0
  %1101 = vmatprep.subr.mxu0 0.0
  %1102 = vmatpush1.msra.mxu0 0.0
  %1103 = vmatprep.subr.mxu0 0.0
  %1104 = vmatpush1.msra.mxu0 0.0
  %1105 = vmatprep.subr.mxu0 0.0
  %1106 = vmatpush1.msra.mxu0 0.0
  %1107 = vmatprep.mubr.f32.mxu0 0.0
  %1108 = vmatmul.mubr.f32.gmra.mrb[0].mxu0 %v1038
  %v1109 = vpop.f32.mrb[0].mxu0
  %v1110 = vadd.f32 %v1035, %v1109
  %v1111 = vpop.f32.mrb[0].mxu0
  %1112 = vmatprep.mubr.f32.mxu0 0.0
  %1113 = vmatmul.mubr.f32.gmra.mrb[0].mxu0 %v1041
  %v1114 = vpop.f32.mrb[0].mxu0
  %v1115 = vadd.f32 %v1035, %v1114
  %v1116 = vpop.f32.mrb[0].mxu0
  %1117 = vdwg.mxu0
  %v1118 = vmul.f32 %v1110, %v1110
  %v1119 = vmul.f32 %v1115, %v1115
  %v1120 = vmul.f32 %v1110, %v1118
  %v1121 = vmul.f32 %v1115, %v1119
  %v1122 = vmul.f32 %v1120, 0.044715
  %v1123 = vmul.f32 %v1121, 0.044715
  %v1124 = vadd.f32 %v1110, %v1122
  %v1125 = vadd.f32 %v1115, %v1123
  %v1126 = vmul.f32 %v1124, 0.7978846
  %v1127 = vmul.f32 %v1125, 0.7978846
  %v1128 = vtanh.pop %v1126
  %v1129 = vtanh.pop %v1127
  %v1130 = vadd.f32 %v1128, 1.0
  %v1131 = vadd.f32 %v1129, 1.0
  %v1132 = vmul.f32 %v1130, 0.5
  %v1133 = vmul.f32 %v1131, 0.5
  %v1134 = vmul.f32 %v1110, %v1132
  %v1135 = vmul.f32 %v1115, %v1133
  %v1136 = vld [vmem:[%s10] sm:$0xff]
  %v1137 = vld [vmem:[%s10 + $0x8] sm:$0xff]
  %v1138 = vld [vmem:[%s10 + $0x10] sm:$0xff]
  %v1139 = vld [vmem:[%s10 + $0x18] sm:$0xff]
  %v1140 = vld [vmem:[%s10 + $0x20] sm:$0xff]
  %v1141 = vld [vmem:[%s10 + $0x28] sm:$0xff]
  %v1142 = vld [vmem:[%s10 + $0x30] sm:$0xff]
  %v1143 = vld [vmem:[%s10 + $0x38] sm:$0xff]
  %v1144 = vld [vmem:[%s11] sm:$0x1]
  %v1146 = vlaneseq
  %v1147 = vshrl.u32 %v1146, 7
  %v1148 = vsub.s32 0, %v1147
  %v1149 = vrot.slane %v1144, %v1148
  %vm1151 = vcmask 523264
  %v1153 = vsel %vm1151, %v1134, 0
  %v1156 = vsel %vm1151, %v1135, 0
  %1158 = vmatprep.subr.mxu0 0.0
  %1159 = vmatpush1.msra.mxu0 %v1136
  %1160 = vmatprep.subr.mxu0 0.0
  %1161 = vmatpush1.msra.mxu0 %v1137
  %1162 = vmatprep.subr.mxu0 0.0
  %1163 = vmatpush1.msra.mxu0 %v1138
  %1164 = vmatprep.subr.mxu0 0.0
  %1165 = vmatpush1.msra.mxu0 %v1139
  %1166 = vmatprep.subr.mxu0 0.0
  %1167 = vmatpush1.msra.mxu0 %v1140
  %1168 = vmatprep.subr.mxu0 0.0
  %1169 = vmatpush1.msra.mxu0 %v1141
  %1170 = vmatprep.subr.mxu0 0.0
  %1171 = vmatpush1.msra.mxu0 %v1142
  %1172 = vmatprep.subr.mxu0 0.0
  %1173 = vmatpush1.msra.mxu0 %v1143
  %1174 = vmatprep.subr.mxu0 0.0
  %1175 = vmatpush1.msra.mxu0 0.0
  %1176 = vmatprep.subr.mxu0 0.0
  %1177 = vmatpush1.msra.mxu0 0.0
  %1178 = vmatprep.subr.mxu0 0.0
  %1179 = vmatpush1.msra.mxu0 0.0
  %1180 = vmatprep.subr.mxu0 0.0
  %1181 = vmatpush1.msra.mxu0 0.0
  %1182 = vmatprep.subr.mxu0 0.0
  %1183 = vmatpush1.msra.mxu0 0.0
  %1184 = vmatprep.subr.mxu0 0.0
  %1185 = vmatpush1.msra.mxu0 0.0
  %1186 = vmatprep.subr.mxu0 0.0
  %1187 = vmatpush1.msra.mxu0 0.0
  %1188 = vmatprep.subr.mxu0 0.0
  %1189 = vmatpush1.msra.mxu0 0.0
  %1190 = vmatprep.subr.mxu0 0.0
  %1191 = vmatpush1.msra.mxu0 0.0
  %1192 = vmatprep.subr.mxu0 0.0
  %1193 = vmatpush1.msra.mxu0 0.0
  %1194 = vmatprep.subr.mxu0 0.0
  %1195 = vmatpush1.msra.mxu0 0.0
  %1196 = vmatprep.subr.mxu0 0.0
  %1197 = vmatpush1.msra.mxu0 0.0
  %1198 = vmatprep.subr.mxu0 0.0
  %1199 = vmatpush1.msra.mxu0 0.0
  %1200 = vmatprep.subr.mxu0 0.0
  %1201 = vmatpush1.msra.mxu0 0.0
  %1202 = vmatprep.subr.mxu0 0.0
  %1203 = vmatpush1.msra.mxu0 0.0
  %1204 = vmatprep.subr.mxu0 0.0
  %1205 = vmatpush1.msra.mxu0 0.0
  %1206 = vmatprep.subr.mxu0 0.0
  %1207 = vmatpush1.msra.mxu0 0.0
  %1208 = vmatprep.subr.mxu0 0.0
  %1209 = vmatpush1.msra.mxu0 0.0
  %1210 = vmatprep.subr.mxu0 0.0
  %1211 = vmatpush1.msra.mxu0 0.0
  %1212 = vmatprep.subr.mxu0 0.0
  %1213 = vmatpush1.msra.mxu0 0.0
  %1214 = vmatprep.subr.mxu0 0.0
  %1215 = vmatpush1.msra.mxu0 0.0
  %1216 = vmatprep.subr.mxu0 0.0
  %1217 = vmatpush1.msra.mxu0 0.0
  %1218 = vmatprep.subr.mxu0 0.0
  %1219 = vmatpush1.msra.mxu0 0.0
  %1220 = vmatprep.subr.mxu0 0.0
  %1221 = vmatpush1.msra.mxu0 0.0
  %1222 = vmatprep.mubr.f32.mxu0 0.0
  %1223 = vmatmul.mubr.f32.gmra.mrb[0].mxu0 %v1153
  %v1224 = vpop.f32.mrb[0].mxu0
  %v1225 = vadd.f32 %v1149, %v1224
  %v1226 = vpop.f32.mrb[0].mxu0
  %1227 = vmatprep.mubr.f32.mxu0 0.0
  %1228 = vmatmul.mubr.f32.gmra.mrb[0].mxu0 %v1156
  %v1229 = vpop.f32.mrb[0].mxu0
  %v1230 = vadd.f32 %v1149, %v1229
  %v1231 = vpop.f32.mrb[0].mxu0
  %1232 = vdwg.mxu0
  %v1233 = vadd.f32 %v1225, %v1024
  %v1234 = vadd.f32 %v1230, %v1025
  %v1235 = vld [vmem:[%s14] sm:$0x1]
  %v1236 = vld [vmem:[%s15] sm:$0x1]
  %v1237 = vsel %vm63, %v1233, 0.0
  %1238 = vadd.xlane.f32.xlu0 %v1237
  %v1239 = vpop.xlane.xlu0 %1238
  %v1240 = vsel %vm63, %v1234, 0.0
  %1241 = vadd.xlane.f32.xlu0 %v1240
  %v1242 = vpop.xlane.xlu0 %1241
  %v1243 = vmul.f32 %v1239, %v70
  %v1244 = vmul.f32 %v1242, %v70
  %v1245 = vsub.f32 %v1233, %v1243
  %v1246 = vsub.f32 %v1234, %v1244
  %v1247 = vmul.f32 %v1245, %v1245
  %v1248 = vmul.f32 %v1246, %v1246
  %v1249 = vsel %vm63, %v1247, 0.0
  %1250 = vadd.xlane.f32.xlu0 %v1249
  %v1251 = vpop.xlane.xlu0 %1250
  %v1252 = vsel %vm63, %v1248, 0.0
  %1253 = vadd.xlane.f32.xlu0 %v1252
  %v1254 = vpop.xlane.xlu0 %1253
  %v1255 = vmul.f32 %v1251, %v70
  %v1256 = vmul.f32 %v1254, %v70
  %v1257 = vadd.f32 %v1255, 1e-12
  %v1258 = vadd.f32 %v1256, 1e-12
  %v1259 = vrsqrt.pop %v1257
  %v1260 = vrsqrt.pop %v1258
  %v1261 = vmul.f32 %v1245, %v1259
  %v1262 = vmul.f32 %v1246, %v1260
  %v1264 = vlaneseq
  %v1265 = vshrl.u32 %v1264, 7
  %v1266 = vsub.s32 0, %v1265
  %v1267 = vrot.slane %v1235, %v1266
  %v1269 = vmul.f32 %v1261, %v1267
  %v1270 = vmul.f32 %v1262, %v1267
  %v1272 = vlaneseq
  %v1273 = vshrl.u32 %v1272, 7
  %v1274 = vsub.s32 0, %v1273
  %v1275 = vrot.slane %v1236, %v1274
  %v1277 = vadd.f32 %v1269, %v1275
  %v1278 = vadd.f32 %v1270, %v1275
  %s1279 = scalar_lea.vmem %s4, 32
  %v1280 = vld [vmem:[%s1279] sm:$0xff]
  %v1281 = vld [vmem:[%s1279 + $0x8] sm:$0xff]
  %v1282 = vld [vmem:[%s1279 + $0x10] sm:$0xff]
  %v1283 = vld [vmem:[%s1279 + $0x18] sm:$0xff]
  %s1284 = scalar_lea.vmem %s5, 1
  %v1285 = vld [vmem:[%s1284] sm:$0x1]
  %v1287 = vlaneseq
  %v1288 = vshrl.u32 %v1287, 7
  %v1289 = vsub.s32 0, %v1288
  %v1290 = vrot.slane %v1285, %v1289
  %v1293 = vsel %vm63, %v1277, 0
  %v1296 = vsel %vm63, %v1278, 0
  %1298 = vmatprep.subr.mxu0 0.0
  %1299 = vmatpush1.msra.mxu0 %v1280
  %1300 = vmatprep.subr.mxu0 0.0
  %1301 = vmatpush1.msra.mxu0 %v1281
  %1302 = vmatprep.subr.mxu0 0.0
  %1303 = vmatpush1.msra.mxu0 %v1282
  %1304 = vmatprep.subr.mxu0 0.0
  %1305 = vmatpush1.msra.mxu0 %v1283
  %1306 = vmatprep.subr.mxu0 0.0
  %1307 = vmatpush1.msra.mxu0 0.0
  %1308 = vmatprep.subr.mxu0 0.0
  %1309 = vmatpush1.msra.mxu0 0.0
  %1310 = vmatprep.subr.mxu0 0.0
  %1311 = vmatpush1.msra.mxu0 0.0
  %1312 = vmatprep.subr.mxu0 0.0
  %1313 = vmatpush1.msra.mxu0 0.0
  %1314 = vmatprep.subr.mxu0 0.0
  %1315 = vmatpush1.msra.mxu0 0.0
  %1316 = vmatprep.subr.mxu0 0.0
  %1317 = vmatpush1.msra.mxu0 0.0
  %1318 = vmatprep.subr.mxu0 0.0
  %1319 = vmatpush1.msra.mxu0 0.0
  %1320 = vmatprep.subr.mxu0 0.0
  %1321 = vmatpush1.msra.mxu0 0.0
  %1322 = vmatprep.subr.mxu0 0.0
  %1323 = vmatpush1.msra.mxu0 0.0
  %1324 = vmatprep.subr.mxu0 0.0
  %1325 = vmatpush1.msra.mxu0 0.0
  %1326 = vmatprep.subr.mxu0 0.0
  %1327 = vmatpush1.msra.mxu0 0.0
  %1328 = vmatprep.subr.mxu0 0.0
  %1329 = vmatpush1.msra.mxu0 0.0
  %1330 = vmatprep.subr.mxu0 0.0
  %1331 = vmatpush1.msra.mxu0 0.0
  %1332 = vmatprep.subr.mxu0 0.0
  %1333 = vmatpush1.msra.mxu0 0.0
  %1334 = vmatprep.subr.mxu0 0.0
  %1335 = vmatpush1.msra.mxu0 0.0
  %1336 = vmatprep.subr.mxu0 0.0
  %1337 = vmatpush1.msra.mxu0 0.0
  %1338 = vmatprep.subr.mxu0 0.0
  %1339 = vmatpush1.msra.mxu0 0.0
  %1340 = vmatprep.subr.mxu0 0.0
  %1341 = vmatpush1.msra.mxu0 0.0
  %1342 = vmatprep.subr.mxu0 0.0
  %1343 = vmatpush1.msra.mxu0 0.0
  %1344 = vmatprep.subr.mxu0 0.0
  %1345 = vmatpush1.msra.mxu0 0.0
  %1346 = vmatprep.subr.mxu0 0.0
  %1347 = vmatpush1.msra.mxu0 0.0
  %1348 = vmatprep.subr.mxu0 0.0
  %1349 = vmatpush1.msra.mxu0 0.0
  %1350 = vmatprep.subr.mxu0 0.0
  %1351 = vmatpush1.msra.mxu0 0.0
  %1352 = vmatprep.subr.mxu0 0.0
  %1353 = vmatpush1.msra.mxu0 0.0
  %1354 = vmatprep.subr.mxu0 0.0
  %1355 = vmatpush1.msra.mxu0 0.0
  %1356 = vmatprep.subr.mxu0 0.0
  %1357 = vmatpush1.msra.mxu0 0.0
  %1358 = vmatprep.subr.mxu0 0.0
  %1359 = vmatpush1.msra.mxu0 0.0
  %1360 = vmatprep.subr.mxu0 0.0
  %1361 = vmatpush1.msra.mxu0 0.0
  %1362 = vmatprep.mubr.f32.mxu0 0.0
  %1363 = vmatmul.mubr.f32.gmra.mrb[0].mxu0 %v1293
  %v1364 = vpop.f32.mrb[0].mxu0
  %v1365 = vadd.f32 %v1290, %v1364
  %v1366 = vpop.f32.mrb[0].mxu0
  %1367 = vmatprep.mubr.f32.mxu0 0.0
  %1368 = vmatmul.mubr.f32.gmra.mrb[0].mxu0 %v1296
  %v1369 = vpop.f32.mrb[0].mxu0
  %v1370 = vadd.f32 %v1290, %v1369
  %v1371 = vpop.f32.mrb[0].mxu0
  %1372 = vdwg.mxu0
  %1374 = vrot.lane.b32.xlu0 %v1365, 96
  %v1375 = vpop.permute.xlu0 %1374
  %v1376 = vsel %vm205, %v1365, 0
  %v1378 = vsel %vm205, %v1375, 0
  %1380 = vmatprep.subr.mxu0 0.0
  %1381 = vmatpush1.xpose.msra.mxu0 %v1378
  %1382 = vmatprep.subr.mxu0 0.0
  %1383 = vmatpush1.xpose.msra.mxu0 0.0
  %1384 = vmatprep.subr.mxu0 0.0
  %1385 = vmatpush1.xpose.msra.mxu0 0.0
  %1386 = vmatprep.subr.mxu0 0.0
  %1387 = vmatpush1.xpose.msra.mxu0 0.0
  %1388 = vmatprep.subr.mxu0 0.0
  %1389 = vmatpush1.xpose.msra.mxu0 0.0
  %1390 = vmatprep.subr.mxu0 0.0
  %1391 = vmatpush1.xpose.msra.mxu0 0.0
  %1392 = vmatprep.subr.mxu0 0.0
  %1393 = vmatpush1.xpose.msra.mxu0 0.0
  %1394 = vmatprep.subr.mxu0 0.0
  %1395 = vmatpush1.xpose.msra.mxu0 0.0
  %1396 = vmatprep.subr.mxu0 0.0
  %1397 = vmatpush1.xpose.msra.mxu0 0.0
  %1398 = vmatprep.subr.mxu0 0.0
  %1399 = vmatpush1.xpose.msra.mxu0 0.0
  %1400 = vmatprep.subr.mxu0 0.0
  %1401 = vmatpush1.xpose.msra.mxu0 0.0
  %1402 = vmatprep.subr.mxu0 0.0
  %1403 = vmatpush1.xpose.msra.mxu0 0.0
  %1404 = vmatprep.subr.mxu0 0.0
  %1405 = vmatpush1.xpose.msra.mxu0 0.0
  %1406 = vmatprep.subr.mxu0 0.0
  %1407 = vmatpush1.xpose.msra.mxu0 0.0
  %1408 = vmatprep.subr.mxu0 0.0
  %1409 = vmatpush1.xpose.msra.mxu0 0.0
  %1410 = vmatprep.subr.mxu0 0.0
  %1411 = vmatpush1.xpose.msra.mxu0 0.0
  %1412 = vmatprep.subr.mxu0 0.0
  %1413 = vmatpush1.xpose.msra.mxu0 0.0
  %1414 = vmatprep.subr.mxu0 0.0
  %1415 = vmatpush1.xpose.msra.mxu0 0.0
  %1416 = vmatprep.subr.mxu0 0.0
  %1417 = vmatpush1.xpose.msra.mxu0 0.0
  %1418 = vmatprep.subr.mxu0 0.0
  %1419 = vmatpush1.xpose.msra.mxu0 0.0
  %1420 = vmatprep.subr.mxu0 0.0
  %1421 = vmatpush1.xpose.msra.mxu0 0.0
  %1422 = vmatprep.subr.mxu0 0.0
  %1423 = vmatpush1.xpose.msra.mxu0 0.0
  %1424 = vmatprep.subr.mxu0 0.0
  %1425 = vmatpush1.xpose.msra.mxu0 0.0
  %1426 = vmatprep.subr.mxu0 0.0
  %1427 = vmatpush1.xpose.msra.mxu0 0.0
  %1428 = vmatprep.subr.mxu0 0.0
  %1429 = vmatpush1.xpose.msra.mxu0 0.0
  %1430 = vmatprep.subr.mxu0 0.0
  %1431 = vmatpush1.xpose.msra.mxu0 0.0
  %1432 = vmatprep.subr.mxu0 0.0
  %1433 = vmatpush1.xpose.msra.mxu0 0.0
  %1434 = vmatprep.subr.mxu0 0.0
  %1435 = vmatpush1.xpose.msra.mxu0 0.0
  %1436 = vmatprep.subr.mxu0 0.0
  %1437 = vmatpush1.xpose.msra.mxu0 0.0
  %1438 = vmatprep.subr.mxu0 0.0
  %1439 = vmatpush1.xpose.msra.mxu0 0.0
  %1440 = vmatprep.subr.mxu0 0.0
  %1441 = vmatpush1.xpose.msra.mxu0 0.0
  %1442 = vmatprep.subr.mxu0 0.0
  %1443 = vmatpush1.xpose.msra.mxu0 0.0
  %1444 = vmatprep.mubr.f32.mxu0 0.0
  %1445 = vmatmul.mubr.f32.gmra.mrb[0].mxu0 %v1376
  %v1446 = vpop.f32.mrb[0].mxu0
  %v1447 = vadd.f32 0.0, %v1446
  %v1448 = vpop.f32.mrb[0].mxu0
  %1449 = vdwg.mxu0
  %v1450 = vmul.f32 %v1447, 0.25
  %v1451 = vadd.f32 %v1450, %v284
  %v1452 = vsel %vm286, %v1451, -inf
  %1453 = vmax.xlane.f32.xlu0 %v1452
  %v1454 = vpop.xlane.xlu0 %1453
  %v1455 = vsub.f32 %v1451, %v1454
  %v1456 = vmul.f32 %v1455, 1.442695
  %v1457 = vpow.pop %v1456
  %v1458 = vsel %vm286, %v1457, 0.0
  %1459 = vadd.xlane.f32.xlu0 %v1458
  %v1460 = vpop.xlane.xlu0 %1459
  %v1461 = vrcp.pop %v1460
  %v1462 = vmul.f32 %v1457, %v1461
  %1463 = vrot.lane.b32.xlu0 %v1365, 64
  %v1464 = vpop.permute.xlu0 %1463
  %v1467 = vsel %vm286, %v1462, 0
  %1469 = vmatprep.subr.mxu0 0.0
  %1470 = vmatpush1.msra.mxu0 %v1464
  %1471 = vmatprep.subr.mxu0 0.0
  %1472 = vmatpush1.msra.mxu0 0.0
  %1473 = vmatprep.subr.mxu0 0.0
  %1474 = vmatpush1.msra.mxu0 0.0
  %1475 = vmatprep.subr.mxu0 0.0
  %1476 = vmatpush1.msra.mxu0 0.0
  %1477 = vmatprep.subr.mxu0 0.0
  %1478 = vmatpush1.msra.mxu0 0.0
  %1479 = vmatprep.subr.mxu0 0.0
  %1480 = vmatpush1.msra.mxu0 0.0
  %1481 = vmatprep.subr.mxu0 0.0
  %1482 = vmatpush1.msra.mxu0 0.0
  %1483 = vmatprep.subr.mxu0 0.0
  %1484 = vmatpush1.msra.mxu0 0.0
  %1485 = vmatprep.subr.mxu0 0.0
  %1486 = vmatpush1.msra.mxu0 0.0
  %1487 = vmatprep.subr.mxu0 0.0
  %1488 = vmatpush1.msra.mxu0 0.0
  %1489 = vmatprep.subr.mxu0 0.0
  %1490 = vmatpush1.msra.mxu0 0.0
  %1491 = vmatprep.subr.mxu0 0.0
  %1492 = vmatpush1.msra.mxu0 0.0
  %1493 = vmatprep.subr.mxu0 0.0
  %1494 = vmatpush1.msra.mxu0 0.0
  %1495 = vmatprep.subr.mxu0 0.0
  %1496 = vmatpush1.msra.mxu0 0.0
  %1497 = vmatprep.subr.mxu0 0.0
  %1498 = vmatpush1.msra.mxu0 0.0
  %1499 = vmatprep.subr.mxu0 0.0
  %1500 = vmatpush1.msra.mxu0 0.0
  %1501 = vmatprep.subr.mxu0 0.0
  %1502 = vmatpush1.msra.mxu0 0.0
  %1503 = vmatprep.subr.mxu0 0.0
  %1504 = vmatpush1.msra.mxu0 0.0
  %1505 = vmatprep.subr.mxu0 0.0
  %1506 = vmatpush1.msra.mxu0 0.0
  %1507 = vmatprep.subr.mxu0 0.0
  %1508 = vmatpush1.msra.mxu0 0.0
  %1509 = vmatprep.subr.mxu0 0.0
  %1510 = vmatpush1.msra.mxu0 0.0
  %1511 = vmatprep.subr.mxu0 0.0
  %1512 = vmatpush1.msra.mxu0 0.0
  %1513 = vmatprep.subr.mxu0 0.0
  %1514 = vmatpush1.msra.mxu0 0.0
  %1515 = vmatprep.subr.mxu0 0.0
  %1516 = vmatpush1.msra.mxu0 0.0
  %1517 = vmatprep.subr.mxu0 0.0
  %1518 = vmatpush1.msra.mxu0 0.0
  %1519 = vmatprep.subr.mxu0 0.0
  %1520 = vmatpush1.msra.mxu0 0.0
  %1521 = vmatprep.subr.mxu0 0.0
  %1522 = vmatpush1.msra.mxu0 0.0
  %1523 = vmatprep.subr.mxu0 0.0
  %1524 = vmatpush1.msra.mxu0 0.0
  %1525 = vmatprep.subr.mxu0 0.0
  %1526 = vmatpush1.msra.mxu0 0.0
  %1527 = vmatprep.subr.mxu0 0.0
  %1528 = vmatpush1.msra.mxu0 0.0
  %1529 = vmatprep.subr.mxu0 0.0
  %1530 = vmatpush1.msra.mxu0 0.0
  %1531 = vmatprep.subr.mxu0 0.0
  %1532 = vmatpush1.msra.mxu0 0.0
  %1533 = vmatprep.mubr.f32.mxu0 0.0
  %1534 = vmatmul.mubr.f32.gmra.mrb[0].mxu0 %v1467
  %v1535 = vpop.f32.mrb[0].mxu0
  %v1536 = vadd.f32 0.0, %v1535
  %v1537 = vpop.f32.mrb[0].mxu0
  %1538 = vdwg.mxu0
  %1539 = vrot.lane.b32.xlu0 %v1365, 112
  %v1540 = vpop.permute.xlu0 %1539
  %1541 = vrot.lane.b32.xlu0 %v1365, 80
  %v1542 = vpop.permute.xlu0 %1541
  %v1543 = vsel %vm205, %v1540, 0
  %v1545 = vsel %vm205, %v1542, 0
  %1547 = vmatprep.subr.mxu0 0.0
  %1548 = vmatpush1.xpose.msra.mxu0 %v1545
  %1549 = vmatprep.subr.mxu0 0.0
  %1550 = vmatpush1.xpose.msra.mxu0 0.0
  %1551 = vmatprep.subr.mxu0 0.0
  %1552 = vmatpush1.xpose.msra.mxu0 0.0
  %1553 = vmatprep.subr.mxu0 0.0
  %1554 = vmatpush1.xpose.msra.mxu0 0.0
  %1555 = vmatprep.subr.mxu0 0.0
  %1556 = vmatpush1.xpose.msra.mxu0 0.0
  %1557 = vmatprep.subr.mxu0 0.0
  %1558 = vmatpush1.xpose.msra.mxu0 0.0
  %1559 = vmatprep.subr.mxu0 0.0
  %1560 = vmatpush1.xpose.msra.mxu0 0.0
  %1561 = vmatprep.subr.mxu0 0.0
  %1562 = vmatpush1.xpose.msra.mxu0 0.0
  %1563 = vmatprep.subr.mxu0 0.0
  %1564 = vmatpush1.xpose.msra.mxu0 0.0
  %1565 = vmatprep.subr.mxu0 0.0
  %1566 = vmatpush1.xpose.msra.mxu0 0.0
  %1567 = vmatprep.subr.mxu0 0.0
  %1568 = vmatpush1.xpose.msra.mxu0 0.0
  %1569 = vmatprep.subr.mxu0 0.0
  %1570 = vmatpush1.xpose.msra.mxu0 0.0
  %1571 = vmatprep.subr.mxu0 0.0
  %1572 = vmatpush1.xpose.msra.mxu0 0.0
  %1573 = vmatprep.subr.mxu0 0.0
  %1574 = vmatpush1.xpose.msra.mxu0 0.0
  %1575 = vmatprep.subr.mxu0 0.0
  %1576 = vmatpush1.xpose.msra.mxu0 0.0
  %1577 = vmatprep.subr.mxu0 0.0
  %1578 = vmatpush1.xpose.msra.mxu0 0.0
  %1579 = vmatprep.subr.mxu0 0.0
  %1580 = vmatpush1.xpose.msra.mxu0 0.0
  %1581 = vmatprep.subr.mxu0 0.0
  %1582 = vmatpush1.xpose.msra.mxu0 0.0
  %1583 = vmatprep.subr.mxu0 0.0
  %1584 = vmatpush1.xpose.msra.mxu0 0.0
  %1585 = vmatprep.subr.mxu0 0.0
  %1586 = vmatpush1.xpose.msra.mxu0 0.0
  %1587 = vmatprep.subr.mxu0 0.0
  %1588 = vmatpush1.xpose.msra.mxu0 0.0
  %1589 = vmatprep.subr.mxu0 0.0
  %1590 = vmatpush1.xpose.msra.mxu0 0.0
  %1591 = vmatprep.subr.mxu0 0.0
  %1592 = vmatpush1.xpose.msra.mxu0 0.0
  %1593 = vmatprep.subr.mxu0 0.0
  %1594 = vmatpush1.xpose.msra.mxu0 0.0
  %1595 = vmatprep.subr.mxu0 0.0
  %1596 = vmatpush1.xpose.msra.mxu0 0.0
  %1597 = vmatprep.subr.mxu0 0.0
  %1598 = vmatpush1.xpose.msra.mxu0 0.0
  %1599 = vmatprep.subr.mxu0 0.0
  %1600 = vmatpush1.xpose.msra.mxu0 0.0
  %1601 = vmatprep.subr.mxu0 0.0
  %1602 = vmatpush1.xpose.msra.mxu0 0.0
  %1603 = vmatprep.subr.mxu0 0.0
  %1604 = vmatpush1.xpose.msra.mxu0 0.0
  %1605 = vmatprep.subr.mxu0 0.0
  %1606 = vmatpush1.xpose.msra.mxu0 0.0
  %1607 = vmatprep.subr.mxu0 0.0
  %1608 = vmatpush1.xpose.msra.mxu0 0.0
  %1609 = vmatprep.subr.mxu0 0.0
  %1610 = vmatpush1.xpose.msra.mxu0 0.0
  %1611 = vmatprep.mubr.f32.mxu0 0.0
  %1612 = vmatmul.mubr.f32.gmra.mrb[0].mxu0 %v1543
  %v1613 = vpop.f32.mrb[0].mxu0
  %v1614 = vadd.f32 0.0, %v1613
  %v1615 = vpop.f32.mrb[0].mxu0
  %1616 = vdwg.mxu0
  %v1617 = vmul.f32 %v1614, 0.25
  %v1618 = vadd.f32 %v1617, %v284
  %v1619 = vsel %vm286, %v1618, -inf
  %1620 = vmax.xlane.f32.xlu0 %v1619
  %v1621 = vpop.xlane.xlu0 %1620
  %v1622 = vsub.f32 %v1618, %v1621
  %v1623 = vmul.f32 %v1622, 1.442695
  %v1624 = vpow.pop %v1623
  %v1625 = vsel %vm286, %v1624, 0.0
  %1626 = vadd.xlane.f32.xlu0 %v1625
  %v1627 = vpop.xlane.xlu0 %1626
  %v1628 = vrcp.pop %v1627
  %v1629 = vmul.f32 %v1624, %v1628
  %1630 = vrot.lane.b32.xlu0 %v1365, 48
  %v1631 = vpop.permute.xlu0 %1630
  %v1634 = vsel %vm286, %v1629, 0
  %1636 = vmatprep.subr.mxu0 0.0
  %1637 = vmatpush1.msra.mxu0 %v1631
  %1638 = vmatprep.subr.mxu0 0.0
  %1639 = vmatpush1.msra.mxu0 0.0
  %1640 = vmatprep.subr.mxu0 0.0
  %1641 = vmatpush1.msra.mxu0 0.0
  %1642 = vmatprep.subr.mxu0 0.0
  %1643 = vmatpush1.msra.mxu0 0.0
  %1644 = vmatprep.subr.mxu0 0.0
  %1645 = vmatpush1.msra.mxu0 0.0
  %1646 = vmatprep.subr.mxu0 0.0
  %1647 = vmatpush1.msra.mxu0 0.0
  %1648 = vmatprep.subr.mxu0 0.0
  %1649 = vmatpush1.msra.mxu0 0.0
  %1650 = vmatprep.subr.mxu0 0.0
  %1651 = vmatpush1.msra.mxu0 0.0
  %1652 = vmatprep.subr.mxu0 0.0
  %1653 = vmatpush1.msra.mxu0 0.0
  %1654 = vmatprep.subr.mxu0 0.0
  %1655 = vmatpush1.msra.mxu0 0.0
  %1656 = vmatprep.subr.mxu0 0.0
  %1657 = vmatpush1.msra.mxu0 0.0
  %1658 = vmatprep.subr.mxu0 0.0
  %1659 = vmatpush1.msra.mxu0 0.0
  %1660 = vmatprep.subr.mxu0 0.0
  %1661 = vmatpush1.msra.mxu0 0.0
  %1662 = vmatprep.subr.mxu0 0.0
  %1663 = vmatpush1.msra.mxu0 0.0
  %1664 = vmatprep.subr.mxu0 0.0
  %1665 = vmatpush1.msra.mxu0 0.0
  %1666 = vmatprep.subr.mxu0 0.0
  %1667 = vmatpush1.msra.mxu0 0.0
  %1668 = vmatprep.subr.mxu0 0.0
  %1669 = vmatpush1.msra.mxu0 0.0
  %1670 = vmatprep.subr.mxu0 0.0
  %1671 = vmatpush1.msra.mxu0 0.0
  %1672 = vmatprep.subr.mxu0 0.0
  %1673 = vmatpush1.msra.mxu0 0.0
  %1674 = vmatprep.subr.mxu0 0.0
  %1675 = vmatpush1.msra.mxu0 0.0
  %1676 = vmatprep.subr.mxu0 0.0
  %1677 = vmatpush1.msra.mxu0 0.0
  %1678 = vmatprep.subr.mxu0 0.0
  %1679 = vmatpush1.msra.mxu0 0.0
  %1680 = vmatprep.subr.mxu0 0.0
  %1681 = vmatpush1.msra.mxu0 0.0
  %1682 = vmatprep.subr.mxu0 0.0
  %1683 = vmatpush1.msra.mxu0 0.0
  %1684 = vmatprep.subr.mxu0 0.0
  %1685 = vmatpush1.msra.mxu0 0.0
  %1686 = vmatprep.subr.mxu0 0.0
  %1687 = vmatpush1.msra.mxu0 0.0
  %1688 = vmatprep.subr.mxu0 0.0
  %1689 = vmatpush1.msra.mxu0 0.0
  %1690 = vmatprep.subr.mxu0 0.0
  %1691 = vmatpush1.msra.mxu0 0.0
  %1692 = vmatprep.subr.mxu0 0.0
  %1693 = vmatpush1.msra.mxu0 0.0
  %1694 = vmatprep.subr.mxu0 0.0
  %1695 = vmatpush1.msra.mxu0 0.0
  %1696 = vmatprep.subr.mxu0 0.0
  %1697 = vmatpush1.msra.mxu0 0.0
  %1698 = vmatprep.subr.mxu0 0.0
  %1699 = vmatpush1.msra.mxu0 0.0
  %1700 = vmatprep.mubr.f32.mxu0 0.0
  %1701 = vmatmul.mubr.f32.gmra.mrb[0].mxu0 %v1634
  %v1702 = vpop.f32.mrb[0].mxu0
  %v1703 = vadd.f32 0.0, %v1702
  %v1704 = vpop.f32.mrb[0].mxu0
  %1705 = vdwg.mxu0
  %1707 = vrot.lane.b32.xlu0 %v1703, 16
  %v1708 = vpop.permute.xlu0 %1707
  %v1710 = vsel %vm205, %v1536, %v1708
  %1712 = vrot.lane.b32.xlu0 %v1370, 96
  %v1713 = vpop.permute.xlu0 %1712
  %v1714 = vsel %vm205, %v1370, 0
  %v1716 = vsel %vm205, %v1713, 0
  %1718 = vmatprep.subr.mxu0 0.0
  %1719 = vmatpush1.xpose.msra.mxu0 %v1716
  %1720 = vmatprep.subr.mxu0 0.0
  %1721 = vmatpush1.xpose.msra.mxu0 0.0
  %1722 = vmatprep.subr.mxu0 0.0
  %1723 = vmatpush1.xpose.msra.mxu0 0.0
  %1724 = vmatprep.subr.mxu0 0.0
  %1725 = vmatpush1.xpose.msra.mxu0 0.0
  %1726 = vmatprep.subr.mxu0 0.0
  %1727 = vmatpush1.xpose.msra.mxu0 0.0
  %1728 = vmatprep.subr.mxu0 0.0
  %1729 = vmatpush1.xpose.msra.mxu0 0.0
  %1730 = vmatprep.subr.mxu0 0.0
  %1731 = vmatpush1.xpose.msra.mxu0 0.0
  %1732 = vmatprep.subr.mxu0 0.0
  %1733 = vmatpush1.xpose.msra.mxu0 0.0
  %1734 = vmatprep.subr.mxu0 0.0
  %1735 = vmatpush1.xpose.msra.mxu0 0.0
  %1736 = vmatprep.subr.mxu0 0.0
  %1737 = vmatpush1.xpose.msra.mxu0 0.0
  %1738 = vmatprep.subr.mxu0 0.0
  %1739 = vmatpush1.xpose.msra.mxu0 0.0
  %1740 = vmatprep.subr.mxu0 0.0
  %1741 = vmatpush1.xpose.msra.mxu0 0.0
  %1742 = vmatprep.subr.mxu0 0.0
  %1743 = vmatpush1.xpose.msra.mxu0 0.0
  %1744 = vmatprep.subr.mxu0 0.0
  %1745 = vmatpush1.xpose.msra.mxu0 0.0
  %1746 = vmatprep.subr.mxu0 0.0
  %1747 = vmatpush1.xpose.msra.mxu0 0.0
  %1748 = vmatprep.subr.mxu0 0.0
  %1749 = vmatpush1.xpose.msra.mxu0 0.0
  %1750 = vmatprep.subr.mxu0 0.0
  %1751 = vmatpush1.xpose.msra.mxu0 0.0
  %1752 = vmatprep.subr.mxu0 0.0
  %1753 = vmatpush1.xpose.msra.mxu0 0.0
  %1754 = vmatprep.subr.mxu0 0.0
  %1755 = vmatpush1.xpose.msra.mxu0 0.0
  %1756 = vmatprep.subr.mxu0 0.0
  %1757 = vmatpush1.xpose.msra.mxu0 0.0
  %1758 = vmatprep.subr.mxu0 0.0
  %1759 = vmatpush1.xpose.msra.mxu0 0.0
  %1760 = vmatprep.subr.mxu0 0.0
  %1761 = vmatpush1.xpose.msra.mxu0 0.0
  %1762 = vmatprep.subr.mxu0 0.0
  %1763 = vmatpush1.xpose.msra.mxu0 0.0
  %1764 = vmatprep.subr.mxu0 0.0
  %1765 = vmatpush1.xpose.msra.mxu0 0.0
  %1766 = vmatprep.subr.mxu0 0.0
  %1767 = vmatpush1.xpose.msra.mxu0 0.0
  %1768 = vmatprep.subr.mxu0 0.0
  %1769 = vmatpush1.xpose.msra.mxu0 0.0
  %1770 = vmatprep.subr.mxu0 0.0
  %1771 = vmatpush1.xpose.msra.mxu0 0.0
  %1772 = vmatprep.subr.mxu0 0.0
  %1773 = vmatpush1.xpose.msra.mxu0 0.0
  %1774 = vmatprep.subr.mxu0 0.0
  %1775 = vmatpush1.xpose.msra.mxu0 0.0
  %1776 = vmatprep.subr.mxu0 0.0
  %1777 = vmatpush1.xpose.msra.mxu0 0.0
  %1778 = vmatprep.subr.mxu0 0.0
  %1779 = vmatpush1.xpose.msra.mxu0 0.0
  %1780 = vmatprep.subr.mxu0 0.0
  %1781 = vmatpush1.xpose.msra.mxu0 0.0
  %1782 = vmatprep.mubr.f32.mxu0 0.0
  %1783 = vmatmul.mubr.f32.gmra.mrb[0].mxu0 %v1714
  %v1784 = vpop.f32.mrb[0].mxu0
  %v1785 = vadd.f32 0.0, %v1784
  %v1786 = vpop.f32.mrb[0].mxu0
  %1787 = vdwg.mxu0
  %v1788 = vmul.f32 %v1785, 0.25
  %v1789 = vadd.f32 %v1788, %v627
  %v1790 = vsel %vm286, %v1789, -inf
  %1791 = vmax.xlane.f32.xlu0 %v1790
  %v1792 = vpop.xlane.xlu0 %1791
  %v1793 = vsub.f32 %v1789, %v1792
  %v1794 = vmul.f32 %v1793, 1.442695
  %v1795 = vpow.pop %v1794
  %v1796 = vsel %vm286, %v1795, 0.0
  %1797 = vadd.xlane.f32.xlu0 %v1796
  %v1798 = vpop.xlane.xlu0 %1797
  %v1799 = vrcp.pop %v1798
  %v1800 = vmul.f32 %v1795, %v1799
  %1801 = vrot.lane.b32.xlu0 %v1370, 64
  %v1802 = vpop.permute.xlu0 %1801
  %v1805 = vsel %vm286, %v1800, 0
  %1807 = vmatprep.subr.mxu0 0.0
  %1808 = vmatpush1.msra.mxu0 %v1802
  %1809 = vmatprep.subr.mxu0 0.0
  %1810 = vmatpush1.msra.mxu0 0.0
  %1811 = vmatprep.subr.mxu0 0.0
  %1812 = vmatpush1.msra.mxu0 0.0
  %1813 = vmatprep.subr.mxu0 0.0
  %1814 = vmatpush1.msra.mxu0 0.0
  %1815 = vmatprep.subr.mxu0 0.0
  %1816 = vmatpush1.msra.mxu0 0.0
  %1817 = vmatprep.subr.mxu0 0.0
  %1818 = vmatpush1.msra.mxu0 0.0
  %1819 = vmatprep.subr.mxu0 0.0
  %1820 = vmatpush1.msra.mxu0 0.0
  %1821 = vmatprep.subr.mxu0 0.0
  %1822 = vmatpush1.msra.mxu0 0.0
  %1823 = vmatprep.subr.mxu0 0.0
  %1824 = vmatpush1.msra.mxu0 0.0
  %1825 = vmatprep.subr.mxu0 0.0
  %1826 = vmatpush1.msra.mxu0 0.0
  %1827 = vmatprep.subr.mxu0 0.0
  %1828 = vmatpush1.msra.mxu0 0.0
  %1829 = vmatprep.subr.mxu0 0.0
  %1830 = vmatpush1.msra.mxu0 0.0
  %1831 = vmatprep.subr.mxu0 0.0
  %1832 = vmatpush1.msra.mxu0 0.0
  %1833 = vmatprep.subr.mxu0 0.0
  %1834 = vmatpush1.msra.mxu0 0.0
  %1835 = vmatprep.subr.mxu0 0.0
  %1836 = vmatpush1.msra.mxu0 0.0
  %1837 = vmatprep.subr.mxu0 0.0
  %1838 = vmatpush1.msra.mxu0 0.0
  %1839 = vmatprep.subr.mxu0 0.0
  %1840 = vmatpush1.msra.mxu0 0.0
  %1841 = vmatprep.subr.mxu0 0.0
  %1842 = vmatpush1.msra.mxu0 0.0
  %1843 = vmatprep.subr.mxu0 0.0
  %1844 = vmatpush1.msra.mxu0 0.0
  %1845 = vmatprep.subr.mxu0 0.0
  %1846 = vmatpush1.msra.mxu0 0.0
  %1847 = vmatprep.subr.mxu0 0.0
  %1848 = vmatpush1.msra.mxu0 0.0
  %1849 = vmatprep.subr.mxu0 0.0
  %1850 = vmatpush1.msra.mxu0 0.0
  %1851 = vmatprep.subr.mxu0 0.0
  %1852 = vmatpush1.msra.mxu0 0.0
  %1853 = vmatprep.subr.mxu0 0.0
  %1854 = vmatpush1.msra.mxu0 0.0
  %1855 = vmatprep.subr.mxu0 0.0
  %1856 = vmatpush1.msra.mxu0 0.0
  %1857 = vmatprep.subr.mxu0 0.0
  %1858 = vmatpush1.msra.mxu0 0.0
  %1859 = vmatprep.subr.mxu0 0.0
  %1860 = vmatpush1.msra.mxu0 0.0
  %1861 = vmatprep.subr.mxu0 0.0
  %1862 = vmatpush1.msra.mxu0 0.0
  %1863 = vmatprep.subr.mxu0 0.0
  %1864 = vmatpush1.msra.mxu0 0.0
  %1865 = vmatprep.subr.mxu0 0.0
  %1866 = vmatpush1.msra.mxu0 0.0
  %1867 = vmatprep.subr.mxu0 0.0
  %1868 = vmatpush1.msra.mxu0 0.0
  %1869 = vmatprep.subr.mxu0 0.0
  %1870 = vmatpush1.msra.mxu0 0.0
  %1871 = vmatprep.mubr.f32.mxu0 0.0
  %1872 = vmatmul.mubr.f32.gmra.mrb[0].mxu0 %v1805
  %v1873 = vpop.f32.mrb[0].mxu0
  %v1874 = vadd.f32 0.0, %v1873
  %v1875 = vpop.f32.mrb[0].mxu0
  %1876 = vdwg.mxu0
  %1877 = vrot.lane.b32.xlu0 %v1370, 112
  %v1878 = vpop.permute.xlu0 %1877
  %1879 = vrot.lane.b32.xlu0 %v1370, 80
  %v1880 = vpop.permute.xlu0 %1879
  %v1881 = vsel %vm205, %v1878, 0
  %v1883 = vsel %vm205, %v1880, 0
  %1885 = vmatprep.subr.mxu0 0.0
  %1886 = vmatpush1.xpose.msra.mxu0 %v1883
  %1887 = vmatprep.subr.mxu0 0.0
  %1888 = vmatpush1.xpose.msra.mxu0 0.0
  %1889 = vmatprep.subr.mxu0 0.0
  %1890 = vmatpush1.xpose.msra.mxu0 0.0
  %1891 = vmatprep.subr.mxu0 0.0
  %1892 = vmatpush1.xpose.msra.mxu0 0.0
  %1893 = vmatprep.subr.mxu0 0.0
  %1894 = vmatpush1.xpose.msra.mxu0 0.0
  %1895 = vmatprep.subr.mxu0 0.0
  %1896 = vmatpush1.xpose.msra.mxu0 0.0
  %1897 = vmatprep.subr.mxu0 0.0
  %1898 = vmatpush1.xpose.msra.mxu0 0.0
  %1899 = vmatprep.subr.mxu0 0.0
  %1900 = vmatpush1.xpose.msra.mxu0 0.0
  %1901 = vmatprep.subr.mxu0 0.0
  %1902 = vmatpush1.xpose.msra.mxu0 0.0
  %1903 = vmatprep.subr.mxu0 0.0
  %1904 = vmatpush1.xpose.msra.mxu0 0.0
  %1905 = vmatprep.subr.mxu0 0.0
  %1906 = vmatpush1.xpose.msra.mxu0 0.0
  %1907 = vmatprep.subr.mxu0 0.0
  %1908 = vmatpush1.xpose.msra.mxu0 0.0
  %1909 = vmatprep.subr.mxu0 0.0
  %1910 = vmatpush1.xpose.msra.mxu0 0.0
  %1911 = vmatprep.subr.mxu0 0.0
  %1912 = vmatpush1.xpose.msra.mxu0 0.0
  %1913 = vmatprep.subr.mxu0 0.0
  %1914 = vmatpush1.xpose.msra.mxu0 0.0
  %1915 = vmatprep.subr.mxu0 0.0
  %1916 = vmatpush1.xpose.msra.mxu0 0.0
  %1917 = vmatprep.subr.mxu0 0.0
  %1918 = vmatpush1.xpose.msra.mxu0 0.0
  %1919 = vmatprep.subr.mxu0 0.0
  %1920 = vmatpush1.xpose.msra.mxu0 0.0
  %1921 = vmatprep.subr.mxu0 0.0
  %1922 = vmatpush1.xpose.msra.mxu0 0.0
  %1923 = vmatprep.subr.mxu0 0.0
  %1924 = vmatpush1.xpose.msra.mxu0 0.0
  %1925 = vmatprep.subr.mxu0 0.0
  %1926 = vmatpush1.xpose.msra.mxu0 0.0
  %1927 = vmatprep.subr.mxu0 0.0
  %1928 = vmatpush1.xpose.msra.mxu0 0.0
  %1929 = vmatprep.subr.mxu0 0.0
  %1930 = vmatpush1.xpose.msra.mxu0 0.0
  %1931 = vmatprep.subr.mxu0 0.0
  %1932 = vmatpush1.xpose.msra.mxu0 0.0
  %1933 = vmatprep.subr.mxu0 0.0
  %1934 = vmatpush1.xpose.msra.mxu0 0.0
  %1935 = vmatprep.subr.mxu0 0.0
  %1936 = vmatpush1.xpose.msra.mxu0 0.0
  %1937 = vmatprep.subr.mxu0 0.0
  %1938 = vmatpush1.xpose.msra.mxu0 0.0
  %1939 = vmatprep.subr.mxu0 0.0
  %1940 = vmatpush1.xpose.msra.mxu0 0.0
  %1941 = vmatprep.subr.mxu0 0.0
  %1942 = vmatpush1.xpose.msra.mxu0 0.0
  %1943 = vmatprep.subr.mxu0 0.0
  %1944 = vmatpush1.xpose.msra.mxu0 0.0
  %1945 = vmatprep.subr.mxu0 0.0
  %1946 = vmatpush1.xpose.msra.mxu0 0.0
  %1947 = vmatprep.subr.mxu0 0.0
  %1948 = vmatpush1.xpose.msra.mxu0 0.0
  %1949 = vmatprep.mubr.f32.mxu0 0.0
  %1950 = vmatmul.mubr.f32.gmra.mrb[0].mxu0 %v1881
  %v1951 = vpop.f32.mrb[0].mxu0
  %v1952 = vadd.f32 0.0, %v1951
  %v1953 = vpop.f32.mrb[0].mxu0
  %1954 = vdwg.mxu0
  %v1955 = vmul.f32 %v1952, 0.25
  %v1956 = vadd.f32 %v1955, %v627
  %v1957 = vsel %vm286, %v1956, -inf
  %1958 = vmax.xlane.f32.xlu0 %v1957
  %v1959 = vpop.xlane.xlu0 %1958
  %v1960 = vsub.f32 %v1956, %v1959
  %v1961 = vmul.f32 %v1960, 1.442695
  %v1962 = vpow.pop %v1961
  %v1963 = vsel %vm286, %v1962, 0.0
  %1964 = vadd.xlane.f32.xlu0 %v1963
  %v1965 = vpop.xlane.xlu0 %1964
  %v1966 = vrcp.pop %v1965
  %v1967 = vmul.f32 %v1962, %v1966
  %1968 = vrot.lane.b32.xlu0 %v1370, 48
  %v1969 = vpop.permute.xlu0 %1968
  %v1972 = vsel %vm286, %v1967, 0
  %1974 = vmatprep.subr.mxu0 0.0
  %1975 = vmatpush1.msra.mxu0 %v1969
  %1976 = vmatprep.subr.mxu0 0.0
  %1977 = vmatpush1.msra.mxu0 0.0
  %1978 = vmatprep.subr.mxu0 0.0
  %1979 = vmatpush1.msra.mxu0 0.0
  %1980 = vmatprep.subr.mxu0 0.0
  %1981 = vmatpush1.msra.mxu0 0.0
  %1982 = vmatprep.subr.mxu0 0.0
  %1983 = vmatpush1.msra.mxu0 0.0
  %1984 = vmatprep.subr.mxu0 0.0
  %1985 = vmatpush1.msra.mxu0 0.0
  %1986 = vmatprep.subr.mxu0 0.0
  %1987 = vmatpush1.msra.mxu0 0.0
  %1988 = vmatprep.subr.mxu0 0.0
  %1989 = vmatpush1.msra.mxu0 0.0
  %1990 = vmatprep.subr.mxu0 0.0
  %1991 = vmatpush1.msra.mxu0 0.0
  %1992 = vmatprep.subr.mxu0 0.0
  %1993 = vmatpush1.msra.mxu0 0.0
  %1994 = vmatprep.subr.mxu0 0.0
  %1995 = vmatpush1.msra.mxu0 0.0
  %1996 = vmatprep.subr.mxu0 0.0
  %1997 = vmatpush1.msra.mxu0 0.0
  %1998 = vmatprep.subr.mxu0 0.0
  %1999 = vmatpush1.msra.mxu0 0.0
  %2000 = vmatprep.subr.mxu0 0.0
  %2001 = vmatpush1.msra.mxu0 0.0
  %2002 = vmatprep.subr.mxu0 0.0
  %2003 = vmatpush1.msra.mxu0 0.0
  %2004 = vmatprep.subr.mxu0 0.0
  %2005 = vmatpush1.msra.mxu0 0.0
  %2006 = vmatprep.subr.mxu0 0.0
  %2007 = vmatpush1.msra.mxu0 0.0
  %2008 = vmatprep.subr.mxu0 0.0
  %2009 = vmatpush1.msra.mxu0 0.0
  %2010 = vmatprep.subr.mxu0 0.0
  %2011 = vmatpush1.msra.mxu0 0.0
  %2012 = vmatprep.subr.mxu0 0.0
  %2013 = vmatpush1.msra.mxu0 0.0
  %2014 = vmatprep.subr.mxu0 0.0
  %2015 = vmatpush1.msra.mxu0 0.0
  %2016 = vmatprep.subr.mxu0 0.0
  %2017 = vmatpush1.msra.mxu0 0.0
  %2018 = vmatprep.subr.mxu0 0.0
  %2019 = vmatpush1.msra.mxu0 0.0
  %2020 = vmatprep.subr.mxu0 0.0
  %2021 = vmatpush1.msra.mxu0 0.0
  %2022 = vmatprep.subr.mxu0 0.0
  %2023 = vmatpush1.msra.mxu0 0.0
  %2024 = vmatprep.subr.mxu0 0.0
  %2025 = vmatpush1.msra.mxu0 0.0
  %2026 = vmatprep.subr.mxu0 0.0
  %2027 = vmatpush1.msra.mxu0 0.0
  %2028 = vmatprep.subr.mxu0 0.0
  %2029 = vmatpush1.msra.mxu0 0.0
  %2030 = vmatprep.subr.mxu0 0.0
  %2031 = vmatpush1.msra.mxu0 0.0
  %2032 = vmatprep.subr.mxu0 0.0
  %2033 = vmatpush1.msra.mxu0 0.0
  %2034 = vmatprep.subr.mxu0 0.0
  %2035 = vmatpush1.msra.mxu0 0.0
  %2036 = vmatprep.subr.mxu0 0.0
  %2037 = vmatpush1.msra.mxu0 0.0
  %2038 = vmatprep.mubr.f32.mxu0 0.0
  %2039 = vmatmul.mubr.f32.gmra.mrb[0].mxu0 %v1972
  %v2040 = vpop.f32.mrb[0].mxu0
  %v2041 = vadd.f32 0.0, %v2040
  %v2042 = vpop.f32.mrb[0].mxu0
  %2043 = vdwg.mxu0
  %2045 = vrot.lane.b32.xlu0 %v2041, 16
  %v2046 = vpop.permute.xlu0 %2045
  %v2048 = vsel %vm205, %v1874, %v2046
  %s2049 = scalar_lea.vmem %s6, 32
  %v2050 = vld [vmem:[%s2049] sm:$0xff]
  %v2051 = vld [vmem:[%s2049 + $0x8] sm:$0xff]
  %v2052 = vld [vmem:[%s2049 + $0x10] sm:$0xff]
  %v2053 = vld [vmem:[%s2049 + $0x18] sm:$0xff]
  %s2054 = scalar_lea.vmem %s7, 1
  %v2055 = vld [vmem:[%s2054] sm:$0x1]
  %v2057 = vlaneseq
  %v2058 = vshrl.u32 %v2057, 7
  %v2059 = vsub.s32 0, %v2058
  %v2060 = vrot.slane %v2055, %v2059
  %v2063 = vsel %vm63, %v1710, 0
  %v2066 = vsel %vm63, %v2048, 0
  %2068 = vmatprep.subr.mxu0 0.0
  %2069 = vmatpush1.msra.mxu0 %v2050
  %2070 = vmatprep.subr.mxu0 0.0
  %2071 = vmatpush1.msra.mxu0 %v2051
  %2072 = vmatprep.subr.mxu0 0.0
  %2073 = vmatpush1.msra.mxu0 %v2052
  %2074 = vmatprep.subr.mxu0 0.0
  %2075 = vmatpush1.msra.mxu0 %v2053
  %2076 = vmatprep.subr.mxu0 0.0
  %2077 = vmatpush1.msra.mxu0 0.0
  %2078 = vmatprep.subr.mxu0 0.0
  %2079 = vmatpush1.msra.mxu0 0.0
  %2080 = vmatprep.subr.mxu0 0.0
  %2081 = vmatpush1.msra.mxu0 0.0
  %2082 = vmatprep.subr.mxu0 0.0
  %2083 = vmatpush1.msra.mxu0 0.0
  %2084 = vmatprep.subr.mxu0 0.0
  %2085 = vmatpush1.msra.mxu0 0.0
  %2086 = vmatprep.subr.mxu0 0.0
  %2087 = vmatpush1.msra.mxu0 0.0
  %2088 = vmatprep.subr.mxu0 0.0
  %2089 = vmatpush1.msra.mxu0 0.0
  %2090 = vmatprep.subr.mxu0 0.0
  %2091 = vmatpush1.msra.mxu0 0.0
  %2092 = vmatprep.subr.mxu0 0.0
  %2093 = vmatpush1.msra.mxu0 0.0
  %2094 = vmatprep.subr.mxu0 0.0
  %2095 = vmatpush1.msra.mxu0 0.0
  %2096 = vmatprep.subr.mxu0 0.0
  %2097 = vmatpush1.msra.mxu0 0.0
  %2098 = vmatprep.subr.mxu0 0.0
  %2099 = vmatpush1.msra.mxu0 0.0
  %2100 = vmatprep.subr.mxu0 0.0
  %2101 = vmatpush1.msra.mxu0 0.0
  %2102 = vmatprep.subr.mxu0 0.0
  %2103 = vmatpush1.msra.mxu0 0.0
  %2104 = vmatprep.subr.mxu0 0.0
  %2105 = vmatpush1.msra.mxu0 0.0
  %2106 = vmatprep.subr.mxu0 0.0
  %2107 = vmatpush1.msra.mxu0 0.0
  %2108 = vmatprep.subr.mxu0 0.0
  %2109 = vmatpush1.msra.mxu0 0.0
  %2110 = vmatprep.subr.mxu0 0.0
  %2111 = vmatpush1.msra.mxu0 0.0
  %2112 = vmatprep.subr.mxu0 0.0
  %2113 = vmatpush1.msra.mxu0 0.0
  %2114 = vmatprep.subr.mxu0 0.0
  %2115 = vmatpush1.msra.mxu0 0.0
  %2116 = vmatprep.subr.mxu0 0.0
  %2117 = vmatpush1.msra.mxu0 0.0
  %2118 = vmatprep.subr.mxu0 0.0
  %2119 = vmatpush1.msra.mxu0 0.0
  %2120 = vmatprep.subr.mxu0 0.0
  %2121 = vmatpush1.msra.mxu0 0.0
  %2122 = vmatprep.subr.mxu0 0.0
  %2123 = vmatpush1.msra.mxu0 0.0
  %2124 = vmatprep.subr.mxu0 0.0
  %2125 = vmatpush1.msra.mxu0 0.0
  %2126 = vmatprep.subr.mxu0 0.0
  %2127 = vmatpush1.msra.mxu0 0.0
  %2128 = vmatprep.subr.mxu0 0.0
  %2129 = vmatpush1.msra.mxu0 0.0
  %2130 = vmatprep.subr.mxu0 0.0
  %2131 = vmatpush1.msra.mxu0 0.0
  %2132 = vmatprep.mubr.f32.mxu0 0.0
  %2133 = vmatmul.mubr.f32.gmra.mrb[0].mxu0 %v2063
  %v2134 = vpop.f32.mrb[0].mxu0
  %v2135 = vadd.f32 %v2060, %v2134
  %v2136 = vpop.f32.mrb[0].mxu0
  %2137 = vmatprep.mubr.f32.mxu0 0.0
  %2138 = vmatmul.mubr.f32.gmra.mrb[0].mxu0 %v2066
  %v2139 = vpop.f32.mrb[0].mxu0
  %v2140 = vadd.f32 %v2060, %v2139
  %v2141 = vpop.f32.mrb[0].mxu0
  %2142 = vdwg.mxu0
  %v2143 = vadd.f32 %v2135, %v1277
  %v2144 = vadd.f32 %v2140, %v1278
  %s2145 = scalar_lea.vmem %s12, 1
  %v2146 = vld [vmem:[%s2145] sm:$0x1]
  %s2147 = scalar_lea.vmem %s13, 1
  %v2148 = vld [vmem:[%s2147] sm:$0x1]
  %v2149 = vsel %vm63, %v2143, 0.0
  %2150 = vadd.xlane.f32.xlu0 %v2149
  %v2151 = vpop.xlane.xlu0 %2150
  %v2152 = vsel %vm63, %v2144, 0.0
  %2153 = vadd.xlane.f32.xlu0 %v2152
  %v2154 = vpop.xlane.xlu0 %2153
  %v2155 = vmul.f32 %v2151, %v70
  %v2156 = vmul.f32 %v2154, %v70
  %v2157 = vsub.f32 %v2143, %v2155
  %v2158 = vsub.f32 %v2144, %v2156
  %v2159 = vmul.f32 %v2157, %v2157
  %v2160 = vmul.f32 %v2158, %v2158
  %v2161 = vsel %vm63, %v2159, 0.0
  %2162 = vadd.xlane.f32.xlu0 %v2161
  %v2163 = vpop.xlane.xlu0 %2162
  %v2164 = vsel %vm63, %v2160, 0.0
  %2165 = vadd.xlane.f32.xlu0 %v2164
  %v2166 = vpop.xlane.xlu0 %2165
  %v2167 = vmul.f32 %v2163, %v70
  %v2168 = vmul.f32 %v2166, %v70
  %v2169 = vadd.f32 %v2167, 1e-12
  %v2170 = vadd.f32 %v2168, 1e-12
  %v2171 = vrsqrt.pop %v2169
  %v2172 = vrsqrt.pop %v2170
  %v2173 = vmul.f32 %v2157, %v2171
  %v2174 = vmul.f32 %v2158, %v2172
  %v2176 = vlaneseq
  %v2177 = vshrl.u32 %v2176, 7
  %v2178 = vsub.s32 0, %v2177
  %v2179 = vrot.slane %v2146, %v2178
  %v2181 = vmul.f32 %v2173, %v2179
  %v2182 = vmul.f32 %v2174, %v2179
  %v2184 = vlaneseq
  %v2185 = vshrl.u32 %v2184, 7
  %v2186 = vsub.s32 0, %v2185
  %v2187 = vrot.slane %v2148, %v2186
  %v2189 = vadd.f32 %v2181, %v2187
  %v2190 = vadd.f32 %v2182, %v2187
  %s2191 = scalar_lea.vmem %s8, 32
  %v2192 = vld [vmem:[%s2191] sm:$0xff]
  %v2193 = vld [vmem:[%s2191 + $0x8] sm:$0xff]
  %v2194 = vld [vmem:[%s2191 + $0x10] sm:$0xff]
  %v2195 = vld [vmem:[%s2191 + $0x18] sm:$0xff]
  %s2196 = scalar_lea.vmem %s9, 1
  %v2197 = vld [vmem:[%s2196] sm:$0x1]
  %v2199 = vlaneseq
  %v2200 = vshrl.u32 %v2199, 7
  %v2201 = vsub.s32 0, %v2200
  %v2202 = vrot.slane %v2197, %v2201
  %v2205 = vsel %vm63, %v2189, 0
  %v2208 = vsel %vm63, %v2190, 0
  %2210 = vmatprep.subr.mxu0 0.0
  %2211 = vmatpush1.msra.mxu0 %v2192
  %2212 = vmatprep.subr.mxu0 0.0
  %2213 = vmatpush1.msra.mxu0 %v2193
  %2214 = vmatprep.subr.mxu0 0.0
  %2215 = vmatpush1.msra.mxu0 %v2194
  %2216 = vmatprep.subr.mxu0 0.0
  %2217 = vmatpush1.msra.mxu0 %v2195
  %2218 = vmatprep.subr.mxu0 0.0
  %2219 = vmatpush1.msra.mxu0 0.0
  %2220 = vmatprep.subr.mxu0 0.0
  %2221 = vmatpush1.msra.mxu0 0.0
  %2222 = vmatprep.subr.mxu0 0.0
  %2223 = vmatpush1.msra.mxu0 0.0
  %2224 = vmatprep.subr.mxu0 0.0
  %2225 = vmatpush1.msra.mxu0 0.0
  %2226 = vmatprep.subr.mxu0 0.0
  %2227 = vmatpush1.msra.mxu0 0.0
  %2228 = vmatprep.subr.mxu0 0.0
  %2229 = vmatpush1.msra.mxu0 0.0
  %2230 = vmatprep.subr.mxu0 0.0
  %2231 = vmatpush1.msra.mxu0 0.0
  %2232 = vmatprep.subr.mxu0 0.0
  %2233 = vmatpush1.msra.mxu0 0.0
  %2234 = vmatprep.subr.mxu0 0.0
  %2235 = vmatpush1.msra.mxu0 0.0
  %2236 = vmatprep.subr.mxu0 0.0
  %2237 = vmatpush1.msra.mxu0 0.0
  %2238 = vmatprep.subr.mxu0 0.0
  %2239 = vmatpush1.msra.mxu0 0.0
  %2240 = vmatprep.subr.mxu0 0.0
  %2241 = vmatpush1.msra.mxu0 0.0
  %2242 = vmatprep.subr.mxu0 0.0
  %2243 = vmatpush1.msra.mxu0 0.0
  %2244 = vmatprep.subr.mxu0 0.0
  %2245 = vmatpush1.msra.mxu0 0.0
  %2246 = vmatprep.subr.mxu0 0.0
  %2247 = vmatpush1.msra.mxu0 0.0
  %2248 = vmatprep.subr.mxu0 0.0
  %2249 = vmatpush1.msra.mxu0 0.0
  %2250 = vmatprep.subr.mxu0 0.0
  %2251 = vmatpush1.msra.mxu0 0.0
  %2252 = vmatprep.subr.mxu0 0.0
  %2253 = vmatpush1.msra.mxu0 0.0
  %2254 = vmatprep.subr.mxu0 0.0
  %2255 = vmatpush1.msra.mxu0 0.0
  %2256 = vmatprep.subr.mxu0 0.0
  %2257 = vmatpush1.msra.mxu0 0.0
  %2258 = vmatprep.subr.mxu0 0.0
  %2259 = vmatpush1.msra.mxu0 0.0
  %2260 = vmatprep.subr.mxu0 0.0
  %2261 = vmatpush1.msra.mxu0 0.0
  %2262 = vmatprep.subr.mxu0 0.0
  %2263 = vmatpush1.msra.mxu0 0.0
  %2264 = vmatprep.subr.mxu0 0.0
  %2265 = vmatpush1.msra.mxu0 0.0
  %2266 = vmatprep.subr.mxu0 0.0
  %2267 = vmatpush1.msra.mxu0 0.0
  %2268 = vmatprep.subr.mxu0 0.0
  %2269 = vmatpush1.msra.mxu0 0.0
  %2270 = vmatprep.subr.mxu0 0.0
  %2271 = vmatpush1.msra.mxu0 0.0
  %2272 = vmatprep.subr.mxu0 0.0
  %2273 = vmatpush1.msra.mxu0 0.0
  %2274 = vmatprep.mubr.f32.mxu0 0.0
  %2275 = vmatmul.mubr.f32.gmra.mrb[0].mxu0 %v2205
  %v2276 = vpop.f32.mrb[0].mxu0
  %v2277 = vadd.f32 %v2202, %v2276
  %v2278 = vpop.f32.mrb[0].mxu0
  %2279 = vmatprep.mubr.f32.mxu0 0.0
  %2280 = vmatmul.mubr.f32.gmra.mrb[0].mxu0 %v2208
  %v2281 = vpop.f32.mrb[0].mxu0
  %v2282 = vadd.f32 %v2202, %v2281
  %v2283 = vpop.f32.mrb[0].mxu0
  %2284 = vdwg.mxu0
  %v2285 = vmul.f32 %v2277, %v2277
  %v2286 = vmul.f32 %v2282, %v2282
  %v2287 = vmul.f32 %v2277, %v2285
  %v2288 = vmul.f32 %v2282, %v2286
  %v2289 = vmul.f32 %v2287, 0.044715
  %v2290 = vmul.f32 %v2288, 0.044715
  %v2291 = vadd.f32 %v2277, %v2289
  %v2292 = vadd.f32 %v2282, %v2290
  %v2293 = vmul.f32 %v2291, 0.7978846
  %v2294 = vmul.f32 %v2292, 0.7978846
  %v2295 = vtanh.pop %v2293
  %v2296 = vtanh.pop %v2294
  %v2297 = vadd.f32 %v2295, 1.0
  %v2298 = vadd.f32 %v2296, 1.0
  %v2299 = vmul.f32 %v2297, 0.5
  %v2300 = vmul.f32 %v2298, 0.5
  %v2301 = vmul.f32 %v2277, %v2299
  %v2302 = vmul.f32 %v2282, %v2300
  %s2303 = scalar_lea.vmem %s10, 64
  %v2304 = vld [vmem:[%s2303] sm:$0xff]
  %v2305 = vld [vmem:[%s2303 + $0x8] sm:$0xff]
  %v2306 = vld [vmem:[%s2303 + $0x10] sm:$0xff]
  %v2307 = vld [vmem:[%s2303 + $0x18] sm:$0xff]
  %v2308 = vld [vmem:[%s2303 + $0x20] sm:$0xff]
  %v2309 = vld [vmem:[%s2303 + $0x28] sm:$0xff]
  %v2310 = vld [vmem:[%s2303 + $0x30] sm:$0xff]
  %v2311 = vld [vmem:[%s2303 + $0x38] sm:$0xff]
  %s2312 = scalar_lea.vmem %s11, 1
  %v2313 = vld [vmem:[%s2312] sm:$0x1]
  %v2315 = vlaneseq
  %v2316 = vshrl.u32 %v2315, 7
  %v2317 = vsub.s32 0, %v2316
  %v2318 = vrot.slane %v2313, %v2317
  %v2321 = vsel %vm1151, %v2301, 0
  %v2324 = vsel %vm1151, %v2302, 0
  %2326 = vmatprep.subr.mxu0 0.0
  %2327 = vmatpush1.msra.mxu0 %v2304
  %2328 = vmatprep.subr.mxu0 0.0
  %2329 = vmatpush1.msra.mxu0 %v2305
  %2330 = vmatprep.subr.mxu0 0.0
  %2331 = vmatpush1.msra.mxu0 %v2306
  %2332 = vmatprep.subr.mxu0 0.0
  %2333 = vmatpush1.msra.mxu0 %v2307
  %2334 = vmatprep.subr.mxu0 0.0
  %2335 = vmatpush1.msra.mxu0 %v2308
  %2336 = vmatprep.subr.mxu0 0.0
  %2337 = vmatpush1.msra.mxu0 %v2309
  %2338 = vmatprep.subr.mxu0 0.0
  %2339 = vmatpush1.msra.mxu0 %v2310
  %2340 = vmatprep.subr.mxu0 0.0
  %2341 = vmatpush1.msra.mxu0 %v2311
  %2342 = vmatprep.subr.mxu0 0.0
  %2343 = vmatpush1.msra.mxu0 0.0
  %2344 = vmatprep.subr.mxu0 0.0
  %2345 = vmatpush1.msra.mxu0 0.0
  %2346 = vmatprep.subr.mxu0 0.0
  %2347 = vmatpush1.msra.mxu0 0.0
  %2348 = vmatprep.subr.mxu0 0.0
  %2349 = vmatpush1.msra.mxu0 0.0
  %2350 = vmatprep.subr.mxu0 0.0
  %2351 = vmatpush1.msra.mxu0 0.0
  %2352 = vmatprep.subr.mxu0 0.0
  %2353 = vmatpush1.msra.mxu0 0.0
  %2354 = vmatprep.subr.mxu0 0.0
  %2355 = vmatpush1.msra.mxu0 0.0
  %2356 = vmatprep.subr.mxu0 0.0
  %2357 = vmatpush1.msra.mxu0 0.0
  %2358 = vmatprep.subr.mxu0 0.0
  %2359 = vmatpush1.msra.mxu0 0.0
  %2360 = vmatprep.subr.mxu0 0.0
  %2361 = vmatpush1.msra.mxu0 0.0
  %2362 = vmatprep.subr.mxu0 0.0
  %2363 = vmatpush1.msra.mxu0 0.0
  %2364 = vmatprep.subr.mxu0 0.0
  %2365 = vmatpush1.msra.mxu0 0.0
  %2366 = vmatprep.subr.mxu0 0.0
  %2367 = vmatpush1.msra.mxu0 0.0
  %2368 = vmatprep.subr.mxu0 0.0
  %2369 = vmatpush1.msra.mxu0 0.0
  %2370 = vmatprep.subr.mxu0 0.0
  %2371 = vmatpush1.msra.mxu0 0.0
  %2372 = vmatprep.subr.mxu0 0.0
  %2373 = vmatpush1.msra.mxu0 0.0
  %2374 = vmatprep.subr.mxu0 0.0
  %2375 = vmatpush1.msra.mxu0 0.0
  %2376 = vmatprep.subr.mxu0 0.0
  %2377 = vmatpush1.msra.mxu0 0.0
  %2378 = vmatprep.subr.mxu0 0.0
  %2379 = vmatpush1.msra.mxu0 0.0
  %2380 = vmatprep.subr.mxu0 0.0
  %2381 = vmatpush1.msra.mxu0 0.0
  %2382 = vmatprep.subr.mxu0 0.0
  %2383 = vmatpush1.msra.mxu0 0.0
  %2384 = vmatprep.subr.mxu0 0.0
  %2385 = vmatpush1.msra.mxu0 0.0
  %2386 = vmatprep.subr.mxu0 0.0
  %2387 = vmatpush1.msra.mxu0 0.0
  %2388 = vmatprep.subr.mxu0 0.0
  %2389 = vmatpush1.msra.mxu0 0.0
  %2390 = vmatprep.mubr.f32.mxu0 0.0
  %2391 = vmatmul.mubr.f32.gmra.mrb[0].mxu0 %v2321
  %v2392 = vpop.f32.mrb[0].mxu0
  %v2393 = vadd.f32 %v2318, %v2392
  %v2394 = vpop.f32.mrb[0].mxu0
  %2395 = vmatprep.mubr.f32.mxu0 0.0
  %2396 = vmatmul.mubr.f32.gmra.mrb[0].mxu0 %v2324
  %v2397 = vpop.f32.mrb[0].mxu0
  %v2398 = vadd.f32 %v2318, %v2397
  %v2399 = vpop.f32.mrb[0].mxu0
  %2400 = vdwg.mxu0
  %v2401 = vadd.f32 %v2393, %v2189
  %v2402 = vadd.f32 %v2398, %v2190
  %s2403 = scalar_lea.vmem %s14, 1
  %v2404 = vld [vmem:[%s2403] sm:$0x1]
  %s2405 = scalar_lea.vmem %s15, 1
  %v2406 = vld [vmem:[%s2405] sm:$0x1]
  %v2407 = vsel %vm63, %v2401, 0.0
  %2408 = vadd.xlane.f32.xlu0 %v2407
  %v2409 = vpop.xlane.xlu0 %2408
  %v2410 = vsel %vm63, %v2402, 0.0
  %2411 = vadd.xlane.f32.xlu0 %v2410
  %v2412 = vpop.xlane.xlu0 %2411
  %v2413 = vmul.f32 %v2409, %v70
  %v2414 = vmul.f32 %v2412, %v70
  %v2415 = vsub.f32 %v2401, %v2413
  %v2416 = vsub.f32 %v2402, %v2414
  %v2417 = vmul.f32 %v2415, %v2415
  %v2418 = vmul.f32 %v2416, %v2416
  %v2419 = vsel %vm63, %v2417, 0.0
  %2420 = vadd.xlane.f32.xlu0 %v2419
  %v2421 = vpop.xlane.xlu0 %2420
  %v2422 = vsel %vm63, %v2418, 0.0
  %2423 = vadd.xlane.f32.xlu0 %v2422
  %v2424 = vpop.xlane.xlu0 %2423
  %v2425 = vmul.f32 %v2421, %v70
  %v2426 = vmul.f32 %v2424, %v70
  %v2427 = vadd.f32 %v2425, 1e-12
  %v2428 = vadd.f32 %v2426, 1e-12
  %v2429 = vrsqrt.pop %v2427
  %v2430 = vrsqrt.pop %v2428
  %v2431 = vmul.f32 %v2415, %v2429
  %v2432 = vmul.f32 %v2416, %v2430
  %v2434 = vlaneseq
  %v2435 = vshrl.u32 %v2434, 7
  %v2436 = vsub.s32 0, %v2435
  %v2437 = vrot.slane %v2404, %v2436
  %v2439 = vmul.f32 %v2431, %v2437
  %v2440 = vmul.f32 %v2432, %v2437
  %v2442 = vlaneseq
  %v2443 = vshrl.u32 %v2442, 7
  %v2444 = vsub.s32 0, %v2443
  %v2445 = vrot.slane %v2406, %v2444
  %v2447 = vadd.f32 %v2439, %v2445
  %v2448 = vadd.f32 %v2440, %v2445
  %v2449 = vld [vmem:[%s16] sm:$0xff]
  %v2450 = vld [vmem:[%s16 + $0x8] sm:$0xff]
  %v2451 = vld [vmem:[%s16 + $0x10] sm:$0xff]
  %v2452 = vld [vmem:[%s16 + $0x18] sm:$0xff]
  %v2453 = vld [vmem:[%s17] sm:$0x1]
  %v2455 = vlaneseq
  %v2456 = vshrl.u32 %v2455, 7
  %v2457 = vsub.s32 0, %v2456
  %v2458 = vrot.slane %v2453, %v2457
  %v2461 = vsel %vm63, %v2447, 0
  %v2464 = vsel %vm63, %v2448, 0
  %2466 = vmatprep.subr.mxu0 0.0
  %2467 = vmatpush1.msra.mxu0 %v2449
  %2468 = vmatprep.subr.mxu0 0.0
  %2469 = vmatpush1.msra.mxu0 %v2450
  %2470 = vmatprep.subr.mxu0 0.0
  %2471 = vmatpush1.msra.mxu0 %v2451
  %2472 = vmatprep.subr.mxu0 0.0
  %2473 = vmatpush1.msra.mxu0 %v2452
  %2474 = vmatprep.subr.mxu0 0.0
  %2475 = vmatpush1.msra.mxu0 0.0
  %2476 = vmatprep.subr.mxu0 0.0
  %2477 = vmatpush1.msra.mxu0 0.0
  %2478 = vmatprep.subr.mxu0 0.0
  %2479 = vmatpush1.msra.mxu0 0.0
  %2480 = vmatprep.subr.mxu0 0.0
  %2481 = vmatpush1.msra.mxu0 0.0
  %2482 = vmatprep.subr.mxu0 0.0
  %2483 = vmatpush1.msra.mxu0 0.0
  %2484 = vmatprep.subr.mxu0 0.0
  %2485 = vmatpush1.msra.mxu0 0.0
  %2486 = vmatprep.subr.mxu0 0.0
  %2487 = vmatpush1.msra.mxu0 0.0
  %2488 = vmatprep.subr.mxu0 0.0
  %2489 = vmatpush1.msra.mxu0 0.0
  %2490 = vmatprep.subr.mxu0 0.0
  %2491 = vmatpush1.msra.mxu0 0.0
  %2492 = vmatprep.subr.mxu0 0.0
  %2493 = vmatpush1.msra.mxu0 0.0
  %2494 = vmatprep.subr.mxu0 0.0
  %2495 = vmatpush1.msra.mxu0 0.0
  %2496 = vmatprep.subr.mxu0 0.0
  %2497 = vmatpush1.msra.mxu0 0.0
  %2498 = vmatprep.subr.mxu0 0.0
  %2499 = vmatpush1.msra.mxu0 0.0
  %2500 = vmatprep.subr.mxu0 0.0
  %2501 = vmatpush1.msra.mxu0 0.0
  %2502 = vmatprep.subr.mxu0 0.0
  %2503 = vmatpush1.msra.mxu0 0.0
  %2504 = vmatprep.subr.mxu0 0.0
  %2505 = vmatpush1.msra.mxu0 0.0
  %2506 = vmatprep.subr.mxu0 0.0
  %2507 = vmatpush1.msra.mxu0 0.0
  %2508 = vmatprep.subr.mxu0 0.0
  %2509 = vmatpush1.msra.mxu0 0.0
  %2510 = vmatprep.subr.mxu0 0.0
  %2511 = vmatpush1.msra.mxu0 0.0
  %2512 = vmatprep.subr.mxu0 0.0
  %2513 = vmatpush1.msra.mxu0 0.0
  %2514 = vmatprep.subr.mxu0 0.0
  %2515 = vmatpush1.msra.mxu0 0.0
  %2516 = vmatprep.subr.mxu0 0.0
  %2517 = vmatpush1.msra.mxu0 0.0
  %2518 = vmatprep.subr.mxu0 0.0
  %2519 = vmatpush1.msra.mxu0 0.0
  %2520 = vmatprep.subr.mxu0 0.0
  %2521 = vmatpush1.msra.mxu0 0.0
  %2522 = vmatprep.subr.mxu0 0.0
  %2523 = vmatpush1.msra.mxu0 0.0
  %2524 = vmatprep.subr.mxu0 0.0
  %2525 = vmatpush1.msra.mxu0 0.0
  %2526 = vmatprep.subr.mxu0 0.0
  %2527 = vmatpush1.msra.mxu0 0.0
  %2528 = vmatprep.subr.mxu0 0.0
  %2529 = vmatpush1.msra.mxu0 0.0
  %2530 = vmatprep.mubr.f32.mxu0 0.0
  %2531 = vmatmul.mubr.f32.gmra.mrb[0].mxu0 %v2461
  %v2532 = vpop.f32.mrb[0].mxu0
  %v2533 = vadd.f32 %v2458, %v2532
  %v2534 = vpop.f32.mrb[0].mxu0
  %2535 = vmatprep.mubr.f32.mxu0 0.0
  %2536 = vmatmul.mubr.f32.gmra.mrb[0].mxu0 %v2464
  %v2537 = vpop.f32.mrb[0].mxu0
  %v2538 = vadd.f32 %v2458, %v2537
  %v2539 = vpop.f32.mrb[0].mxu0
  %2540 = vdwg.mxu0
  %2541 = vst [vmem:[%s18] sm:$0xff] %v2533
  %2542 = vst [vmem:[%s18 + $0x8] sm:$0xff] %v2538
  // Predicated region
  $region74: #{fused_forward_logits.1} parent=0 // pred_check
    _
  $region75: #{fused_forward_logits.1} parent=0 // pred_check_branch
    %2544 = sbr.rel (0) target = $region77
  $region76: #{fused_forward_logits.1} parent=0 // pred_region
    _
  $region77: #{fused_forward_logits.1} parent=0 // pred_fallthru
    _
  // Predicated region
  $region78: #{fused_forward_logits.1} parent=0 // pred_check
    _
  $region79: #{fused_forward_logits.1} parent=0 // pred_check_branch
    %2546 = sbr.rel (0) target = $region81
  $region80: #{fused_forward_logits.1} parent=0 // pred_region
    _
  $region81: #{fused_forward_logits.1} parent=0 // pred_fallthru
    _

</llo_original>
